<compile_context>
chip_gen: v7x
topology: tpu7x:2x2x1
jax: 0.10.0
libtpu: 0.0.40
codegen_flags: <defaults>
</compile_context>

<pallas_src>
import functools
import math

import jax
import jax.numpy as jnp
from jax.experimental import pallas as pl
from jax.experimental.pallas import tpu as pltpu


# ----------------------------------------------------------------------------
# In-kernel helpers
# ----------------------------------------------------------------------------
def _layernorm(x, g, b, eps=1e-5):
    mu = jnp.mean(x, axis=-1, keepdims=True)
    var = jnp.mean(jnp.square(x - mu), axis=-1, keepdims=True)  # biased var (PyTorch LN)
    return (x - mu) * jax.lax.rsqrt(var + eps) * g + b


# ----------------------------------------------------------------------------
# Fused attention sub-layer kernel
#   x_ref    : (1, TQ, d)   residual input / query source
#   kv_ref   : (1, n2, d)   key/value source (x itself for self-attn, enc_out else)
#   bias_ref : (1, TQ, n2)  additive mask bias (0 or -1e30)
#   output   : (1, TQ, d)   x + MHA(LN(x), kv)   (lane-dense, heads concatenated)
# ----------------------------------------------------------------------------
def _att_sublayer_kernel(x_ref, kv_ref, bias_ref, g_ref, beta_ref,
                         wq_ref, bq_ref, wkv_ref, bkv_ref, wo_ref, bo_ref,
                         o_ref, *, h, ln_kv):
    x = x_ref[0]                                    # (TQ, d)
    tq, d = x.shape
    dk = d // h
    g = g_ref[...]
    beta = beta_ref[...]

    xn = _layernorm(x, g, beta)                     # query source
    kv_in = kv_ref[0]                               # (n2, d)
    kv_src = _layernorm(kv_in, g, beta) if ln_kv else kv_in

    # Q projection with 1/sqrt(dk) folded in; K and V as one fused (d, 2d) matmul.
    q = (jnp.dot(xn, wq_ref[...], preferred_element_type=jnp.float32)
         + bq_ref[...]) * (1.0 / math.sqrt(dk))     # (TQ, d)
    kv = (jnp.dot(kv_src, wkv_ref[...], preferred_element_type=jnp.float32)
          + bkv_ref[...])                           # (n2, 2d) = [K | V]

    bias = bias_ref[0]                              # (TQ, n2)
    dn = (((1,), (1,)), ((), ()))                   # contract feature dims: q @ k^T

    ctx_parts = []
    for i in range(h):                              # static unroll over heads
        qh = q[:, i * dk:(i + 1) * dk]              # (TQ, dk)
        kh = kv[:, i * dk:(i + 1) * dk]             # (n2, dk)
        vh = kv[:, d + i * dk: d + (i + 1) * dk]    # (n2, dk)
        s = jax.lax.dot_general(qh, kh, dn,
                                preferred_element_type=jnp.float32) + bias
        m = jnp.max(s, axis=-1, keepdims=True)
        p = jnp.exp(s - m)
        p = p * pl.reciprocal(jnp.sum(p, axis=-1, keepdims=True), approx=True)
        ctx_parts.append(jnp.dot(p, vh, preferred_element_type=jnp.float32))
    ctx = jnp.concatenate(ctx_parts, axis=-1)       # (TQ, d) lane-dense

    out = jnp.dot(ctx, wo_ref[...], preferred_element_type=jnp.float32) + bo_ref[...]
    o_ref[0] = x + out                              # residual add in-kernel


def att_sublayer(x, kv, mask, ln_g, ln_b, mha, h, ln_kv):
    B, n1, d = x.shape
    n2 = kv.shape[1]
    # Finite additive bias (avoids inf-inf NaNs for fully-masked rows).
    bias = jnp.where(jnp.broadcast_to(mask, (B, n1, n2)) == 0,
                     jnp.float32(-1e30), jnp.float32(0.0))
    tq = min(n1, 256)
    grid = (B, pl.cdiv(n1, tq))
    kernel = functools.partial(_att_sublayer_kernel, h=h, ln_kv=ln_kv)
    const = lambda b, q: (0, 0)
    return pl.pallas_call(
        kernel,
        out_shape=jax.ShapeDtypeStruct((B, n1, d), jnp.float32),
        grid=grid,
        in_specs=[
            pl.BlockSpec((1, tq, d), lambda b, q: (b, q, 0)),   # x (residual / query)
            pl.BlockSpec((1, n2, d), lambda b, q: (b, 0, 0)),   # kv source
            pl.BlockSpec((1, tq, n2), lambda b, q: (b, q, 0)),  # mask bias
            pl.BlockSpec((1, d), const),                        # ln gamma
            pl.BlockSpec((1, d), const),                        # ln beta
            pl.BlockSpec((d, d), const),                        # wq
            pl.BlockSpec((1, d), const),                        # bq
            pl.BlockSpec((d, 2 * d), const),                    # wkv (K|V fused)
            pl.BlockSpec((1, 2 * d), const),                    # bkv
            pl.BlockSpec((d, d), const),                        # wo
            pl.BlockSpec((1, d), const),                        # bo
        ],
        out_specs=pl.BlockSpec((1, tq, d), lambda b, q: (b, q, 0)),
        compiler_params=pltpu.CompilerParams(
            dimension_semantics=("parallel", "parallel")),
    )(x, kv, bias,
      ln_g.reshape(1, d), ln_b.reshape(1, d),
      mha["wq"], mha["bq"].reshape(1, d),
      mha["wkv"], mha["bkv"].reshape(1, 2 * d),
      mha["wo"], mha["bo"].reshape(1, d))


# ----------------------------------------------------------------------------
# Fused feed-forward sub-layer: x + W2(ReLU(W1(LN(x)) + b1)) + b2
# ----------------------------------------------------------------------------
def _ffn_sublayer_kernel(x_ref, g_ref, beta_ref, w1_ref, b1_ref, w2_ref, b2_ref,
                         o_ref):
    x = x_ref[...]                                   # (TM, d)
    xn = _layernorm(x, g_ref[...], beta_ref[...])
    hmid = jnp.dot(xn, w1_ref[...], preferred_element_type=jnp.float32) + b1_ref[...]
    hmid = jnp.maximum(hmid, 0.0)                    # ReLU
    y = jnp.dot(hmid, w2_ref[...], preferred_element_type=jnp.float32) + b2_ref[...]
    o_ref[...] = x + y                               # residual add in-kernel


def ffn_sublayer(x3, ln_g, ln_b, w1, b1, w2, b2):
    B, n1, d = x3.shape
    M = B * n1
    dff = w1.shape[1]
    x = x3.reshape(M, d)
    tm = min(M, 256)
    const = lambda i: (0, 0)
    # TODO(synk): for production d_model/d_ff on v7x (64 MiB VMEM), switch to a
    # K-tiled accumulation over d_ff instead of holding both weights resident.
    out = pl.pallas_call(
        _ffn_sublayer_kernel,
        out_shape=jax.ShapeDtypeStruct((M, d), jnp.float32),
        grid=(pl.cdiv(M, tm),),
        in_specs=[
            pl.BlockSpec((tm, d), lambda i: (i, 0)),
            pl.BlockSpec((1, d), const),
            pl.BlockSpec((1, d), const),
            pl.BlockSpec((d, dff), const),
            pl.BlockSpec((1, dff), const),
            pl.BlockSpec((dff, d), const),
            pl.BlockSpec((1, d), const),
        ],
        out_specs=pl.BlockSpec((tm, d), lambda i: (i, 0)),
        compiler_params=pltpu.CompilerParams(dimension_semantics=("parallel",)),
    )(x, ln_g.reshape(1, d), ln_b.reshape(1, d),
      w1, b1.reshape(1, dff), w2, b2.reshape(1, d))
    return out.reshape(B, n1, d)


# ----------------------------------------------------------------------------
# DecoderLayer forward (pre-LN residual sub-layers, matching the PyTorch spec)
# ----------------------------------------------------------------------------
def decoder_layer(p, captions, seq_masks, enc_out, att_masks, h):
    x = captions
    # sublayer 0: masked multi-head self-attention
    x = att_sublayer(x, x, seq_masks, p["ln0_g"], p["ln0_b"],
                     p["self_att"], h, ln_kv=True)
    # sublayer 1: cross-attention over encoder output (enc_out is NOT layer-normed)
    x = att_sublayer(x, enc_out, att_masks, p["ln1_g"], p["ln1_b"],
                     p["cross_att"], h, ln_kv=False)
    # sublayer 2: position-wise feed-forward
    x = ffn_sublayer(x, p["ln2_g"], p["ln2_b"], p["w1"], p["b1"], p["w2"], p["b2"])
    return x


# ----------------------------------------------------------------------------
# Deterministic parameter initialization (PyTorch-style uniform for Linear,
# ones/zeros for LayerNorm).  K and V projection weights are fused at init.
# ----------------------------------------------------------------------------
def init_linear(key, din, dout):
    k1, k2 = jax.random.split(key)
    bound = 1.0 / math.sqrt(din)
    w = jax.random.uniform(k1, (din, dout), jnp.float32, -bound, bound)
    b = jax.random.uniform(k2, (dout,), jnp.float32, -bound, bound)
    return w, b


def init_mha(key, d):
    ks = jax.random.split(key, 4)
    wq, bq = init_linear(ks[0], d, d)
    wk, bk = init_linear(ks[1], d, d)
    wv, bv = init_linear(ks[2], d, d)
    wo, bo = init_linear(ks[3], d, d)
    return dict(wq=wq, bq=bq,
                wkv=jnp.concatenate([wk, wv], axis=1),
                bkv=jnp.concatenate([bk, bv], axis=0),
                wo=wo, bo=bo)


def init_decoder_layer(key, settings):
    d, dff = settings["d_model"], settings["d_ff"]
    ks = jax.random.split(key, 4)
    w1, b1 = init_linear(ks[2], d, dff)
    w2, b2 = init_linear(ks[3], dff, d)
    return dict(
        self_att=init_mha(ks[0], d),
        cross_att=init_mha(ks[1], d),
        w1=w1, b1=b1, w2=w2, b2=b2,
        ln0_g=jnp.ones((d,), jnp.float32), ln0_b=jnp.zeros((d,), jnp.float32),
        ln1_g=jnp.ones((d,), jnp.float32), ln1_b=jnp.zeros((d,), jnp.float32),
        ln2_g=jnp.ones((d,), jnp.float32), ln2_b=jnp.zeros((d,), jnp.float32),
    )


# ----------------------------------------------------------------------------
if __name__ == "__main__":
    settings = dict(d_model=32, h=4, d_ff=64, dropout_p=0.1)
    B, n1, n2 = 2, 8, 16

    root = jax.random.PRNGKey(0)
    kp, kc, ke = jax.random.split(root, 3)
    params = init_decoder_layer(kp, settings)

    captions = jax.random.normal(kc, (B, n1, settings["d_model"]), jnp.float32)
    enc_out = jax.random.normal(ke, (B, n2, settings["d_model"]), jnp.float32)
    # causal self-attention mask (B, n1, n1), 0 => masked
    seq_masks = jnp.broadcast_to(
        jnp.tril(jnp.ones((n1, n1), jnp.float32))[None], (B, n1, n1))
    # encoder attention mask (B, 1, n2), all valid
    att_masks = jnp.ones((B, 1, n2), jnp.float32)

    fwd = jax.jit(functools.partial(decoder_layer, h=settings["h"]))
    out = fwd(params, captions, seq_masks, enc_out, att_masks)
    out = jax.block_until_ready(out)

    assert out.shape == (B, n1, settings["d_model"])
    assert bool(jnp.all(jnp.isfinite(out)))
    print("KERNEL_OK")
</pallas_src>

<mosaic_0001>
module attributes {stable_mosaic.version = 11 : i64} {
  func.func @_att_sublayer_kernel(%arg0: i32, %arg1: i32, %arg2: memref<1x8x32xf32, #tpu.memory_space<vmem>>, %arg3: memref<1x8x32xf32, #tpu.memory_space<vmem>>, %arg4: memref<1x8x8xf32, #tpu.memory_space<vmem>>, %arg5: memref<1x32xf32, #tpu.memory_space<vmem>>, %arg6: memref<1x32xf32, #tpu.memory_space<vmem>>, %arg7: memref<32x32xf32, #tpu.memory_space<vmem>>, %arg8: memref<1x32xf32, #tpu.memory_space<vmem>>, %arg9: memref<32x64xf32, #tpu.memory_space<vmem>>, %arg10: memref<1x64xf32, #tpu.memory_space<vmem>>, %arg11: memref<32x32xf32, #tpu.memory_space<vmem>>, %arg12: memref<1x32xf32, #tpu.memory_space<vmem>>, %arg13: memref<1x8x32xf32, #tpu.memory_space<vmem>>) attributes {dimension_semantics = [#tpu.dimension_semantics<parallel>, #tpu.dimension_semantics<parallel>], iteration_bounds = array<i64: 2, 1>, scalar_prefetch = 0 : i64, scratch_operands = 0 : i64, tpu.core_type = #tpu.core_type<tc>, window_params = [{transform_indices = @transform_0, window_bounds = array<i64: 1, 8, 32>}, {transform_indices = @transform_1, window_bounds = array<i64: 1, 8, 32>}, {transform_indices = @transform_2, window_bounds = array<i64: 1, 8, 8>}, {pipeline_mode = #tpu.pipeline_mode<synchronous>, transform_indices = @transform_3, window_bounds = array<i64: 1, 32>}, {pipeline_mode = #tpu.pipeline_mode<synchronous>, transform_indices = @transform_4, window_bounds = array<i64: 1, 32>}, {pipeline_mode = #tpu.pipeline_mode<synchronous>, transform_indices = @transform_5, window_bounds = array<i64: 32, 32>}, {pipeline_mode = #tpu.pipeline_mode<synchronous>, transform_indices = @transform_6, window_bounds = array<i64: 1, 32>}, {pipeline_mode = #tpu.pipeline_mode<synchronous>, transform_indices = @transform_7, window_bounds = array<i64: 32, 64>}, {pipeline_mode = #tpu.pipeline_mode<synchronous>, transform_indices = @transform_8, window_bounds = array<i64: 1, 64>}, {pipeline_mode = #tpu.pipeline_mode<synchronous>, transform_indices = @transform_9, window_bounds = array<i64: 32, 32>}, {pipeline_mode = #tpu.pipeline_mode<synchronous>, transform_indices = @transform_10, window_bounds = array<i64: 1, 32>}, {transform_indices = @transform_11, window_bounds = array<i64: 1, 8, 32>}]} {
    %c0 = arith.constant 0 : index
    %c0_0 = arith.constant 0 : index
    %c0_1 = arith.constant 0 : index
    %0 = vector.load %arg2[%c0, %c0_0, %c0_1] : memref<1x8x32xf32, #tpu.memory_space<vmem>>, vector<1x8x32xf32>
    %1 = vector.shape_cast %0 : vector<1x8x32xf32> to vector<8x32xf32>
    %c0_2 = arith.constant 0 : index
    %c0_3 = arith.constant 0 : index
    %2 = vector.load %arg5[%c0_2, %c0_3] : memref<1x32xf32, #tpu.memory_space<vmem>>, vector<1x32xf32>
    %c0_4 = arith.constant 0 : index
    %c0_5 = arith.constant 0 : index
    %3 = vector.load %arg6[%c0_4, %c0_5] : memref<1x32xf32, #tpu.memory_space<vmem>>, vector<1x32xf32>
    %cst = arith.constant dense<0.000000e+00> : vector<8xf32>
    %4 = vector.multi_reduction <add>, %1, %cst [1] : vector<8x32xf32> to vector<8xf32>
    %5 = vector.shape_cast %4 : vector<8xf32> to vector<8x1xf32>
    %cst_6 = arith.constant 3.200000e+01 : f32
    %6 = vector.broadcast %cst_6 : f32 to vector<8x1xf32>
    %7 = arith.divf %5, %6 : vector<8x1xf32>
    %8 = vector.broadcast %7 : vector<8x1xf32> to vector<8x32xf32>
    %9 = arith.subf %1, %8 : vector<8x32xf32>
    %10 = arith.mulf %9, %9 : vector<8x32xf32>
    %cst_7 = arith.constant dense<0.000000e+00> : vector<8xf32>
    %11 = vector.multi_reduction <add>, %10, %cst_7 [1] : vector<8x32xf32> to vector<8xf32>
    %12 = vector.shape_cast %11 : vector<8xf32> to vector<8x1xf32>
    %cst_8 = arith.constant 3.200000e+01 : f32
    %13 = vector.broadcast %cst_8 : f32 to vector<8x1xf32>
    %14 = arith.divf %12, %13 : vector<8x1xf32>
    %15 = vector.broadcast %7 : vector<8x1xf32> to vector<8x32xf32>
    %16 = arith.subf %1, %15 : vector<8x32xf32>
    %cst_9 = arith.constant 9.99999974E-6 : f32
    %17 = vector.broadcast %cst_9 : f32 to vector<8x1xf32>
    %18 = arith.addf %14, %17 : vector<8x1xf32>
    %19 = math.rsqrt %18 : vector<8x1xf32>
    %20 = vector.broadcast %19 : vector<8x1xf32> to vector<8x32xf32>
    %21 = arith.mulf %16, %20 : vector<8x32xf32>
    %22 = vector.broadcast %2 : vector<1x32xf32> to vector<8x32xf32>
    %23 = arith.mulf %21, %22 : vector<8x32xf32>
    %24 = vector.broadcast %3 : vector<1x32xf32> to vector<8x32xf32>
    %25 = arith.addf %23, %24 : vector<8x32xf32>
    %c0_10 = arith.constant 0 : index
    %c0_11 = arith.constant 0 : index
    %c0_12 = arith.constant 0 : index
    %26 = vector.load %arg3[%c0_10, %c0_11, %c0_12] : memref<1x8x32xf32, #tpu.memory_space<vmem>>, vector<1x8x32xf32>
    %27 = vector.shape_cast %26 : vector<1x8x32xf32> to vector<8x32xf32>
    %cst_13 = arith.constant dense<0.000000e+00> : vector<8xf32>
    %28 = vector.multi_reduction <add>, %27, %cst_13 [1] : vector<8x32xf32> to vector<8xf32>
    %29 = vector.shape_cast %28 : vector<8xf32> to vector<8x1xf32>
    %cst_14 = arith.constant 3.200000e+01 : f32
    %30 = vector.broadcast %cst_14 : f32 to vector<8x1xf32>
    %31 = arith.divf %29, %30 : vector<8x1xf32>
    %32 = vector.broadcast %31 : vector<8x1xf32> to vector<8x32xf32>
    %33 = arith.subf %27, %32 : vector<8x32xf32>
    %34 = arith.mulf %33, %33 : vector<8x32xf32>
    %cst_15 = arith.constant dense<0.000000e+00> : vector<8xf32>
    %35 = vector.multi_reduction <add>, %34, %cst_15 [1] : vector<8x32xf32> to vector<8xf32>
    %36 = vector.shape_cast %35 : vector<8xf32> to vector<8x1xf32>
    %cst_16 = arith.constant 3.200000e+01 : f32
    %37 = vector.broadcast %cst_16 : f32 to vector<8x1xf32>
    %38 = arith.divf %36, %37 : vector<8x1xf32>
    %39 = vector.broadcast %31 : vector<8x1xf32> to vector<8x32xf32>
    %40 = arith.subf %27, %39 : vector<8x32xf32>
    %cst_17 = arith.constant 9.99999974E-6 : f32
    %41 = vector.broadcast %cst_17 : f32 to vector<8x1xf32>
    %42 = arith.addf %38, %41 : vector<8x1xf32>
    %43 = math.rsqrt %42 : vector<8x1xf32>
    %44 = vector.broadcast %43 : vector<8x1xf32> to vector<8x32xf32>
    %45 = arith.mulf %40, %44 : vector<8x32xf32>
    %46 = vector.broadcast %2 : vector<1x32xf32> to vector<8x32xf32>
    %47 = arith.mulf %45, %46 : vector<8x32xf32>
    %48 = vector.broadcast %3 : vector<1x32xf32> to vector<8x32xf32>
    %49 = arith.addf %47, %48 : vector<8x32xf32>
    %c0_18 = arith.constant 0 : index
    %c0_19 = arith.constant 0 : index
    %50 = vector.load %arg7[%c0_18, %c0_19] : memref<32x32xf32, #tpu.memory_space<vmem>>, vector<32x32xf32>
    %cst_20 = arith.constant dense<0.000000e+00> : vector<8x32xf32>
    %51 = tpu.matmul %25, %50, %cst_20 {dimension_numbers = #tpu.dot_dimension_numbers<[1], [0], [0], [1], [0, 0, 1, 1], [], []>} : vector<8x32xf32>, vector<32x32xf32>, vector<8x32xf32> -> vector<8x32xf32>
    %c0_21 = arith.constant 0 : index
    %c0_22 = arith.constant 0 : index
    %52 = vector.load %arg8[%c0_21, %c0_22] : memref<1x32xf32, #tpu.memory_space<vmem>>, vector<1x32xf32>
    %53 = vector.broadcast %52 : vector<1x32xf32> to vector<8x32xf32>
    %54 = arith.addf %51, %53 : vector<8x32xf32>
    %cst_23 = arith.constant 0.353553385 : f32
    %55 = vector.broadcast %cst_23 : f32 to vector<8x32xf32>
    %56 = arith.mulf %54, %55 : vector<8x32xf32>
    %c0_24 = arith.constant 0 : index
    %c0_25 = arith.constant 0 : index
    %57 = vector.load %arg9[%c0_24, %c0_25] : memref<32x64xf32, #tpu.memory_space<vmem>>, vector<32x64xf32>
    %cst_26 = arith.constant dense<0.000000e+00> : vector<8x64xf32>
    %58 = tpu.matmul %49, %57, %cst_26 {dimension_numbers = #tpu.dot_dimension_numbers<[1], [0], [0], [1], [0, 0, 1, 1], [], []>} : vector<8x32xf32>, vector<32x64xf32>, vector<8x64xf32> -> vector<8x64xf32>
    %c0_27 = arith.constant 0 : index
    %c0_28 = arith.constant 0 : index
    %59 = vector.load %arg10[%c0_27, %c0_28] : memref<1x64xf32, #tpu.memory_space<vmem>>, vector<1x64xf32>
    %60 = vector.broadcast %59 : vector<1x64xf32> to vector<8x64xf32>
    %61 = arith.addf %58, %60 : vector<8x64xf32>
    %c0_29 = arith.constant 0 : index
    %c0_30 = arith.constant 0 : index
    %c0_31 = arith.constant 0 : index
    %62 = vector.load %arg4[%c0_29, %c0_30, %c0_31] : memref<1x8x8xf32, #tpu.memory_space<vmem>>, vector<1x8x8xf32>
    %63 = vector.shape_cast %62 : vector<1x8x8xf32> to vector<8x8xf32>
    %64 = vector.extract_strided_slice %56 {offsets = [0, 0], sizes = [8, 8], strides = [1, 1]} : vector<8x32xf32> to vector<8x8xf32>
    %65 = vector.extract_strided_slice %61 {offsets = [0, 0], sizes = [8, 8], strides = [1, 1]} : vector<8x64xf32> to vector<8x8xf32>
    %66 = vector.extract_strided_slice %61 {offsets = [0, 32], sizes = [8, 8], strides = [1, 1]} : vector<8x64xf32> to vector<8x8xf32>
    %cst_32 = arith.constant dense<0.000000e+00> : vector<8x8xf32>
    %67 = tpu.matmul %64, %65, %cst_32 {dimension_numbers = #tpu.dot_dimension_numbers<[1], [1], [0], [0], [0, 0, 1, 0], [], []>} : vector<8x8xf32>, vector<8x8xf32>, vector<8x8xf32> -> vector<8x8xf32>
    %68 = arith.addf %67, %63 : vector<8x8xf32>
    %cst_33 = arith.constant dense<0xFF800000> : vector<8xf32>
    %69 = vector.multi_reduction <maximumf>, %68, %cst_33 [1] : vector<8x8xf32> to vector<8xf32>
    %70 = vector.shape_cast %69 : vector<8xf32> to vector<8x1xf32>
    %71 = vector.broadcast %70 : vector<8x1xf32> to vector<8x8xf32>
    %72 = arith.subf %68, %71 : vector<8x8xf32>
    %73 = math.exp %72 : vector<8x8xf32>
    %cst_34 = arith.constant dense<0.000000e+00> : vector<8xf32>
    %74 = vector.multi_reduction <add>, %73, %cst_34 [1] : vector<8x8xf32> to vector<8xf32>
    %75 = vector.shape_cast %74 : vector<8xf32> to vector<8x1xf32>
    %76 = tpu.reciprocal %75 {approx = true} : vector<8x1xf32> -> vector<8x1xf32>
    %77 = vector.broadcast %76 : vector<8x1xf32> to vector<8x8xf32>
    %78 = arith.mulf %73, %77 : vector<8x8xf32>
    %cst_35 = arith.constant dense<0.000000e+00> : vector<8x8xf32>
    %79 = tpu.matmul %78, %66, %cst_35 {dimension_numbers = #tpu.dot_dimension_numbers<[1], [0], [0], [1], [0, 0, 1, 1], [], []>} : vector<8x8xf32>, vector<8x8xf32>, vector<8x8xf32> -> vector<8x8xf32>
    %80 = vector.extract_strided_slice %56 {offsets = [0, 8], sizes = [8, 8], strides = [1, 1]} : vector<8x32xf32> to vector<8x8xf32>
    %81 = vector.extract_strided_slice %61 {offsets = [0, 8], sizes = [8, 8], strides = [1, 1]} : vector<8x64xf32> to vector<8x8xf32>
    %82 = vector.extract_strided_slice %61 {offsets = [0, 40], sizes = [8, 8], strides = [1, 1]} : vector<8x64xf32> to vector<8x8xf32>
    %cst_36 = arith.constant dense<0.000000e+00> : vector<8x8xf32>
    %83 = tpu.matmul %80, %81, %cst_36 {dimension_numbers = #tpu.dot_dimension_numbers<[1], [1], [0], [0], [0, 0, 1, 0], [], []>} : vector<8x8xf32>, vector<8x8xf32>, vector<8x8xf32> -> vector<8x8xf32>
    %84 = arith.addf %83, %63 : vector<8x8xf32>
    %cst_37 = arith.constant dense<0xFF800000> : vector<8xf32>
    %85 = vector.multi_reduction <maximumf>, %84, %cst_37 [1] : vector<8x8xf32> to vector<8xf32>
    %86 = vector.shape_cast %85 : vector<8xf32> to vector<8x1xf32>
    %87 = vector.broadcast %86 : vector<8x1xf32> to vector<8x8xf32>
    %88 = arith.subf %84, %87 : vector<8x8xf32>
    %89 = math.exp %88 : vector<8x8xf32>
    %cst_38 = arith.constant dense<0.000000e+00> : vector<8xf32>
    %90 = vector.multi_reduction <add>, %89, %cst_38 [1] : vector<8x8xf32> to vector<8xf32>
    %91 = vector.shape_cast %90 : vector<8xf32> to vector<8x1xf32>
    %92 = tpu.reciprocal %91 {approx = true} : vector<8x1xf32> -> vector<8x1xf32>
    %93 = vector.broadcast %92 : vector<8x1xf32> to vector<8x8xf32>
    %94 = arith.mulf %89, %93 : vector<8x8xf32>
    %cst_39 = arith.constant dense<0.000000e+00> : vector<8x8xf32>
    %95 = tpu.matmul %94, %82, %cst_39 {dimension_numbers = #tpu.dot_dimension_numbers<[1], [0], [0], [1], [0, 0, 1, 1], [], []>} : vector<8x8xf32>, vector<8x8xf32>, vector<8x8xf32> -> vector<8x8xf32>
    %96 = vector.extract_strided_slice %56 {offsets = [0, 16], sizes = [8, 8], strides = [1, 1]} : vector<8x32xf32> to vector<8x8xf32>
    %97 = vector.extract_strided_slice %61 {offsets = [0, 16], sizes = [8, 8], strides = [1, 1]} : vector<8x64xf32> to vector<8x8xf32>
    %98 = vector.extract_strided_slice %61 {offsets = [0, 48], sizes = [8, 8], strides = [1, 1]} : vector<8x64xf32> to vector<8x8xf32>
    %cst_40 = arith.constant dense<0.000000e+00> : vector<8x8xf32>
    %99 = tpu.matmul %96, %97, %cst_40 {dimension_numbers = #tpu.dot_dimension_numbers<[1], [1], [0], [0], [0, 0, 1, 0], [], []>} : vector<8x8xf32>, vector<8x8xf32>, vector<8x8xf32> -> vector<8x8xf32>
    %100 = arith.addf %99, %63 : vector<8x8xf32>
    %cst_41 = arith.constant dense<0xFF800000> : vector<8xf32>
    %101 = vector.multi_reduction <maximumf>, %100, %cst_41 [1] : vector<8x8xf32> to vector<8xf32>
    %102 = vector.shape_cast %101 : vector<8xf32> to vector<8x1xf32>
    %103 = vector.broadcast %102 : vector<8x1xf32> to vector<8x8xf32>
    %104 = arith.subf %100, %103 : vector<8x8xf32>
    %105 = math.exp %104 : vector<8x8xf32>
    %cst_42 = arith.constant dense<0.000000e+00> : vector<8xf32>
    %106 = vector.multi_reduction <add>, %105, %cst_42 [1] : vector<8x8xf32> to vector<8xf32>
    %107 = vector.shape_cast %106 : vector<8xf32> to vector<8x1xf32>
    %108 = tpu.reciprocal %107 {approx = true} : vector<8x1xf32> -> vector<8x1xf32>
    %109 = vector.broadcast %108 : vector<8x1xf32> to vector<8x8xf32>
    %110 = arith.mulf %105, %109 : vector<8x8xf32>
    %cst_43 = arith.constant dense<0.000000e+00> : vector<8x8xf32>
    %111 = tpu.matmul %110, %98, %cst_43 {dimension_numbers = #tpu.dot_dimension_numbers<[1], [0], [0], [1], [0, 0, 1, 1], [], []>} : vector<8x8xf32>, vector<8x8xf32>, vector<8x8xf32> -> vector<8x8xf32>
    %112 = vector.extract_strided_slice %56 {offsets = [0, 24], sizes = [8, 8], strides = [1, 1]} : vector<8x32xf32> to vector<8x8xf32>
    %113 = vector.extract_strided_slice %61 {offsets = [0, 24], sizes = [8, 8], strides = [1, 1]} : vector<8x64xf32> to vector<8x8xf32>
    %114 = vector.extract_strided_slice %61 {offsets = [0, 56], sizes = [8, 8], strides = [1, 1]} : vector<8x64xf32> to vector<8x8xf32>
    %cst_44 = arith.constant dense<0.000000e+00> : vector<8x8xf32>
    %115 = tpu.matmul %112, %113, %cst_44 {dimension_numbers = #tpu.dot_dimension_numbers<[1], [1], [0], [0], [0, 0, 1, 0], [], []>} : vector<8x8xf32>, vector<8x8xf32>, vector<8x8xf32> -> vector<8x8xf32>
    %116 = arith.addf %115, %63 : vector<8x8xf32>
    %cst_45 = arith.constant dense<0xFF800000> : vector<8xf32>
    %117 = vector.multi_reduction <maximumf>, %116, %cst_45 [1] : vector<8x8xf32> to vector<8xf32>
    %118 = vector.shape_cast %117 : vector<8xf32> to vector<8x1xf32>
    %119 = vector.broadcast %118 : vector<8x1xf32> to vector<8x8xf32>
    %120 = arith.subf %116, %119 : vector<8x8xf32>
    %121 = math.exp %120 : vector<8x8xf32>
    %cst_46 = arith.constant dense<0.000000e+00> : vector<8xf32>
    %122 = vector.multi_reduction <add>, %121, %cst_46 [1] : vector<8x8xf32> to vector<8xf32>
    %123 = vector.shape_cast %122 : vector<8xf32> to vector<8x1xf32>
    %124 = tpu.reciprocal %123 {approx = true} : vector<8x1xf32> -> vector<8x1xf32>
    %125 = vector.broadcast %124 : vector<8x1xf32> to vector<8x8xf32>
    %126 = arith.mulf %121, %125 : vector<8x8xf32>
    %cst_47 = arith.constant dense<0.000000e+00> : vector<8x8xf32>
    %127 = tpu.matmul %126, %114, %cst_47 {dimension_numbers = #tpu.dot_dimension_numbers<[1], [0], [0], [1], [0, 0, 1, 1], [], []>} : vector<8x8xf32>, vector<8x8xf32>, vector<8x8xf32> -> vector<8x8xf32>
    %128 = tpu.concatenate %79, %95, %111, %127 in 1 : vector<8x8xf32>, vector<8x8xf32>, vector<8x8xf32>, vector<8x8xf32> -> vector<8x32xf32>
    %c0_48 = arith.constant 0 : index
    %c0_49 = arith.constant 0 : index
    %129 = vector.load %arg11[%c0_48, %c0_49] : memref<32x32xf32, #tpu.memory_space<vmem>>, vector<32x32xf32>
    %cst_50 = arith.constant dense<0.000000e+00> : vector<8x32xf32>
    %130 = tpu.matmul %128, %129, %cst_50 {dimension_numbers = #tpu.dot_dimension_numbers<[1], [0], [0], [1], [0, 0, 1, 1], [], []>} : vector<8x32xf32>, vector<32x32xf32>, vector<8x32xf32> -> vector<8x32xf32>
    %c0_51 = arith.constant 0 : index
    %c0_52 = arith.constant 0 : index
    %131 = vector.load %arg12[%c0_51, %c0_52] : memref<1x32xf32, #tpu.memory_space<vmem>>, vector<1x32xf32>
    %132 = vector.broadcast %131 : vector<1x32xf32> to vector<8x32xf32>
    %133 = arith.addf %130, %132 : vector<8x32xf32>
    %134 = arith.addf %1, %133 : vector<8x32xf32>
    %c0_53 = arith.constant 0 : index
    %c0_54 = arith.constant 0 : index
    %c0_55 = arith.constant 0 : index
    %135 = vector.load %arg13[%c0_53, %c0_54, %c0_55] : memref<1x8x32xf32, #tpu.memory_space<vmem>>, vector<1x8x32xf32>
    %136 = vector.shape_cast %135 : vector<1x8x32xf32> to vector<8x32xf32>
    %137 = vector.shape_cast %134 : vector<8x32xf32> to vector<1x8x32xf32>
    tpu.vector_store %arg13[%c0_53, %c0_54, %c0_55], %137 {strides = array<i32>} : memref<1x8x32xf32, #tpu.memory_space<vmem>>, vector<1x8x32xf32>,
    return
  }
  func.func @transform_0(%arg0: i32, %arg1: i32) -> (i32, i32, i32) {
    %c0_i32 = arith.constant 0 : i32
    %c0_i32_0 = arith.constant 0 : i32
    return %arg0, %arg1, %c0_i32 : i32, i32, i32
  }
  func.func @transform_1(%arg0: i32, %arg1: i32) -> (i32, i32, i32) {
    %c0_i32 = arith.constant 0 : i32
    %c0_i32_0 = arith.constant 0 : i32
    %c0_i32_1 = arith.constant 0 : i32
    return %arg0, %c0_i32, %c0_i32_0 : i32, i32, i32
  }
  func.func @transform_2(%arg0: i32, %arg1: i32) -> (i32, i32, i32) {
    %c0_i32 = arith.constant 0 : i32
    %c0_i32_0 = arith.constant 0 : i32
    return %arg0, %arg1, %c0_i32 : i32, i32, i32
  }
  func.func @transform_3(%arg0: i32, %arg1: i32) -> (i32, i32) {
    %c0_i32 = arith.constant 0 : i32
    %c0_i32_0 = arith.constant 0 : i32
    %c0_i32_1 = arith.constant 0 : i32
    return %c0_i32, %c0_i32_0 : i32, i32
  }
  func.func @transform_4(%arg0: i32, %arg1: i32) -> (i32, i32) {
    %c0_i32 = arith.constant 0 : i32
    %c0_i32_0 = arith.constant 0 : i32
    %c0_i32_1 = arith.constant 0 : i32
    return %c0_i32, %c0_i32_0 : i32, i32
  }
  func.func @transform_5(%arg0: i32, %arg1: i32) -> (i32, i32) {
    %c0_i32 = arith.constant 0 : i32
    %c0_i32_0 = arith.constant 0 : i32
    %c0_i32_1 = arith.constant 0 : i32
    return %c0_i32, %c0_i32_0 : i32, i32
  }
  func.func @transform_6(%arg0: i32, %arg1: i32) -> (i32, i32) {
    %c0_i32 = arith.constant 0 : i32
    %c0_i32_0 = arith.constant 0 : i32
    %c0_i32_1 = arith.constant 0 : i32
    return %c0_i32, %c0_i32_0 : i32, i32
  }
  func.func @transform_7(%arg0: i32, %arg1: i32) -> (i32, i32) {
    %c0_i32 = arith.constant 0 : i32
    %c0_i32_0 = arith.constant 0 : i32
    %c0_i32_1 = arith.constant 0 : i32
    return %c0_i32, %c0_i32_0 : i32, i32
  }
  func.func @transform_8(%arg0: i32, %arg1: i32) -> (i32, i32) {
    %c0_i32 = arith.constant 0 : i32
    %c0_i32_0 = arith.constant 0 : i32
    %c0_i32_1 = arith.constant 0 : i32
    return %c0_i32, %c0_i32_0 : i32, i32
  }
  func.func @transform_9(%arg0: i32, %arg1: i32) -> (i32, i32) {
    %c0_i32 = arith.constant 0 : i32
    %c0_i32_0 = arith.constant 0 : i32
    %c0_i32_1 = arith.constant 0 : i32
    return %c0_i32, %c0_i32_0 : i32, i32
  }
  func.func @transform_10(%arg0: i32, %arg1: i32) -> (i32, i32) {
    %c0_i32 = arith.constant 0 : i32
    %c0_i32_0 = arith.constant 0 : i32
    %c0_i32_1 = arith.constant 0 : i32
    return %c0_i32, %c0_i32_0 : i32, i32
  }
  func.func @transform_11(%arg0: i32, %arg1: i32) -> (i32, i32, i32) {
    %c0_i32 = arith.constant 0 : i32
    %c0_i32_0 = arith.constant 0 : i32
    return %arg0, %arg1, %c0_i32 : i32, i32, i32
  }
}

module attributes {stable_mosaic.version = 11 : i64} {
  func.func @_ffn_sublayer_kernel(%arg0: i32, %arg1: memref<16x32xf32, #tpu.memory_space<vmem>>, %arg2: memref<1x32xf32, #tpu.memory_space<vmem>>, %arg3: memref<1x32xf32, #tpu.memory_space<vmem>>, %arg4: memref<32x64xf32, #tpu.memory_space<vmem>>, %arg5: memref<1x64xf32, #tpu.memory_space<vmem>>, %arg6: memref<64x32xf32, #tpu.memory_space<vmem>>, %arg7: memref<1x32xf32, #tpu.memory_space<vmem>>, %arg8: memref<16x32xf32, #tpu.memory_space<vmem>>) attributes {dimension_semantics = [#tpu.dimension_semantics<parallel>], iteration_bounds = array<i64: 1>, scalar_prefetch = 0 : i64, scratch_operands = 0 : i64, tpu.core_type = #tpu.core_type<tc>, window_params = [{transform_indices = @transform_0, window_bounds = array<i64: 16, 32>}, {pipeline_mode = #tpu.pipeline_mode<synchronous>, transform_indices = @transform_1, window_bounds = array<i64: 1, 32>}, {pipeline_mode = #tpu.pipeline_mode<synchronous>, transform_indices = @transform_2, window_bounds = array<i64: 1, 32>}, {pipeline_mode = #tpu.pipeline_mode<synchronous>, transform_indices = @transform_3, window_bounds = array<i64: 32, 64>}, {pipeline_mode = #tpu.pipeline_mode<synchronous>, transform_indices = @transform_4, window_bounds = array<i64: 1, 64>}, {pipeline_mode = #tpu.pipeline_mode<synchronous>, transform_indices = @transform_5, window_bounds = array<i64: 64, 32>}, {pipeline_mode = #tpu.pipeline_mode<synchronous>, transform_indices = @transform_6, window_bounds = array<i64: 1, 32>}, {transform_indices = @transform_7, window_bounds = array<i64: 16, 32>}]} {
    %c0 = arith.constant 0 : index
    %c0_0 = arith.constant 0 : index
    %0 = vector.load %arg1[%c0, %c0_0] : memref<16x32xf32, #tpu.memory_space<vmem>>, vector<16x32xf32>
    %c0_1 = arith.constant 0 : index
    %c0_2 = arith.constant 0 : index
    %1 = vector.load %arg2[%c0_1, %c0_2] : memref<1x32xf32, #tpu.memory_space<vmem>>, vector<1x32xf32>
    %c0_3 = arith.constant 0 : index
    %c0_4 = arith.constant 0 : index
    %2 = vector.load %arg3[%c0_3, %c0_4] : memref<1x32xf32, #tpu.memory_space<vmem>>, vector<1x32xf32>
    %cst = arith.constant dense<0.000000e+00> : vector<16xf32>
    %3 = vector.multi_reduction <add>, %0, %cst [1] : vector<16x32xf32> to vector<16xf32>
    %4 = vector.shape_cast %3 : vector<16xf32> to vector<16x1xf32>
    %cst_5 = arith.constant 3.200000e+01 : f32
    %5 = vector.broadcast %cst_5 : f32 to vector<16x1xf32>
    %6 = arith.divf %4, %5 : vector<16x1xf32>
    %7 = vector.broadcast %6 : vector<16x1xf32> to vector<16x32xf32>
    %8 = arith.subf %0, %7 : vector<16x32xf32>
    %9 = arith.mulf %8, %8 : vector<16x32xf32>
    %cst_6 = arith.constant dense<0.000000e+00> : vector<16xf32>
    %10 = vector.multi_reduction <add>, %9, %cst_6 [1] : vector<16x32xf32> to vector<16xf32>
    %11 = vector.shape_cast %10 : vector<16xf32> to vector<16x1xf32>
    %cst_7 = arith.constant 3.200000e+01 : f32
    %12 = vector.broadcast %cst_7 : f32 to vector<16x1xf32>
    %13 = arith.divf %11, %12 : vector<16x1xf32>
    %14 = vector.broadcast %6 : vector<16x1xf32> to vector<16x32xf32>
    %15 = arith.subf %0, %14 : vector<16x32xf32>
    %cst_8 = arith.constant 9.99999974E-6 : f32
    %16 = vector.broadcast %cst_8 : f32 to vector<16x1xf32>
    %17 = arith.addf %13, %16 : vector<16x1xf32>
    %18 = math.rsqrt %17 : vector<16x1xf32>
    %19 = vector.broadcast %18 : vector<16x1xf32> to vector<16x32xf32>
    %20 = arith.mulf %15, %19 : vector<16x32xf32>
    %21 = vector.broadcast %1 : vector<1x32xf32> to vector<16x32xf32>
    %22 = arith.mulf %20, %21 : vector<16x32xf32>
    %23 = vector.broadcast %2 : vector<1x32xf32> to vector<16x32xf32>
    %24 = arith.addf %22, %23 : vector<16x32xf32>
    %c0_9 = arith.constant 0 : index
    %c0_10 = arith.constant 0 : index
    %25 = vector.load %arg4[%c0_9, %c0_10] : memref<32x64xf32, #tpu.memory_space<vmem>>, vector<32x64xf32>
    %cst_11 = arith.constant dense<0.000000e+00> : vector<16x64xf32>
    %26 = tpu.matmul %24, %25, %cst_11 {dimension_numbers = #tpu.dot_dimension_numbers<[1], [0], [0], [1], [0, 0, 1, 1], [], []>} : vector<16x32xf32>, vector<32x64xf32>, vector<16x64xf32> -> vector<16x64xf32>
    %c0_12 = arith.constant 0 : index
    %c0_13 = arith.constant 0 : index
    %27 = vector.load %arg5[%c0_12, %c0_13] : memref<1x64xf32, #tpu.memory_space<vmem>>, vector<1x64xf32>
    %28 = vector.broadcast %27 : vector<1x64xf32> to vector<16x64xf32>
    %29 = arith.addf %26, %28 : vector<16x64xf32>
    %cst_14 = arith.constant 0.000000e+00 : f32
    %30 = vector.broadcast %cst_14 : f32 to vector<16x64xf32>
    %31 = arith.maximumf %29, %30 : vector<16x64xf32>
    %c0_15 = arith.constant 0 : index
    %c0_16 = arith.constant 0 : index
    %32 = vector.load %arg6[%c0_15, %c0_16] : memref<64x32xf32, #tpu.memory_space<vmem>>, vector<64x32xf32>
    %cst_17 = arith.constant dense<0.000000e+00> : vector<16x32xf32>
    %33 = tpu.matmul %31, %32, %cst_17 {dimension_numbers = #tpu.dot_dimension_numbers<[1], [0], [0], [1], [0, 0, 1, 1], [], []>} : vector<16x64xf32>, vector<64x32xf32>, vector<16x32xf32> -> vector<16x32xf32>
    %c0_18 = arith.constant 0 : index
    %c0_19 = arith.constant 0 : index
    %34 = vector.load %arg7[%c0_18, %c0_19] : memref<1x32xf32, #tpu.memory_space<vmem>>, vector<1x32xf32>
    %35 = vector.broadcast %34 : vector<1x32xf32> to vector<16x32xf32>
    %36 = arith.addf %33, %35 : vector<16x32xf32>
    %37 = arith.addf %0, %36 : vector<16x32xf32>
    %c0_20 = arith.constant 0 : index
    %c0_21 = arith.constant 0 : index
    %38 = vector.load %arg8[%c0_20, %c0_21] : memref<16x32xf32, #tpu.memory_space<vmem>>, vector<16x32xf32>
    tpu.vector_store %arg8[%c0_20, %c0_21], %37 {strides = array<i32>} : memref<16x32xf32, #tpu.memory_space<vmem>>, vector<16x32xf32>,
    return
  }
  func.func @transform_0(%arg0: i32) -> (i32, i32) {
    %c0_i32 = arith.constant 0 : i32
    %c0_i32_0 = arith.constant 0 : i32
    return %arg0, %c0_i32 : i32, i32
  }
  func.func @transform_1(%arg0: i32) -> (i32, i32) {
    %c0_i32 = arith.constant 0 : i32
    %c0_i32_0 = arith.constant 0 : i32
    %c0_i32_1 = arith.constant 0 : i32
    return %c0_i32, %c0_i32_0 : i32, i32
  }
  func.func @transform_2(%arg0: i32) -> (i32, i32) {
    %c0_i32 = arith.constant 0 : i32
    %c0_i32_0 = arith.constant 0 : i32
    %c0_i32_1 = arith.constant 0 : i32
    return %c0_i32, %c0_i32_0 : i32, i32
  }
  func.func @transform_3(%arg0: i32) -> (i32, i32) {
    %c0_i32 = arith.constant 0 : i32
    %c0_i32_0 = arith.constant 0 : i32
    %c0_i32_1 = arith.constant 0 : i32
    return %c0_i32, %c0_i32_0 : i32, i32
  }
  func.func @transform_4(%arg0: i32) -> (i32, i32) {
    %c0_i32 = arith.constant 0 : i32
    %c0_i32_0 = arith.constant 0 : i32
    %c0_i32_1 = arith.constant 0 : i32
    return %c0_i32, %c0_i32_0 : i32, i32
  }
  func.func @transform_5(%arg0: i32) -> (i32, i32) {
    %c0_i32 = arith.constant 0 : i32
    %c0_i32_0 = arith.constant 0 : i32
    %c0_i32_1 = arith.constant 0 : i32
    return %c0_i32, %c0_i32_0 : i32, i32
  }
  func.func @transform_6(%arg0: i32) -> (i32, i32) {
    %c0_i32 = arith.constant 0 : i32
    %c0_i32_0 = arith.constant 0 : i32
    %c0_i32_1 = arith.constant 0 : i32
    return %c0_i32, %c0_i32_0 : i32, i32
  }
  func.func @transform_7(%arg0: i32) -> (i32, i32) {
    %c0_i32 = arith.constant 0 : i32
    %c0_i32_0 = arith.constant 0 : i32
    return %arg0, %c0_i32 : i32, i32
  }
}

module attributes {stable_mosaic.version = 11 : i64} {
  func.func @_att_sublayer_kernel(%arg0: i32, %arg1: i32, %arg2: memref<1x8x32xf32, #tpu.memory_space<vmem>>, %arg3: memref<1x16x32xf32, #tpu.memory_space<vmem>>, %arg4: memref<1x8x16xf32, #tpu.memory_space<vmem>>, %arg5: memref<1x32xf32, #tpu.memory_space<vmem>>, %arg6: memref<1x32xf32, #tpu.memory_space<vmem>>, %arg7: memref<32x32xf32, #tpu.memory_space<vmem>>, %arg8: memref<1x32xf32, #tpu.memory_space<vmem>>, %arg9: memref<32x64xf32, #tpu.memory_space<vmem>>, %arg10: memref<1x64xf32, #tpu.memory_space<vmem>>, %arg11: memref<32x32xf32, #tpu.memory_space<vmem>>, %arg12: memref<1x32xf32, #tpu.memory_space<vmem>>, %arg13: memref<1x8x32xf32, #tpu.memory_space<vmem>>) attributes {dimension_semantics = [#tpu.dimension_semantics<parallel>, #tpu.dimension_semantics<parallel>], iteration_bounds = array<i64: 2, 1>, scalar_prefetch = 0 : i64, scratch_operands = 0 : i64, tpu.core_type = #tpu.core_type<tc>, window_params = [{transform_indices = @transform_0, window_bounds = array<i64: 1, 8, 32>}, {transform_indices = @transform_1, window_bounds = array<i64: 1, 16, 32>}, {transform_indices = @transform_2, window_bounds = array<i64: 1, 8, 16>}, {pipeline_mode = #tpu.pipeline_mode<synchronous>, transform_indices = @transform_3, window_bounds = array<i64: 1, 32>}, {pipeline_mode = #tpu.pipeline_mode<synchronous>, transform_indices = @transform_4, window_bounds = array<i64: 1, 32>}, {pipeline_mode = #tpu.pipeline_mode<synchronous>, transform_indices = @transform_5, window_bounds = array<i64: 32, 32>}, {pipeline_mode = #tpu.pipeline_mode<synchronous>, transform_indices = @transform_6, window_bounds = array<i64: 1, 32>}, {pipeline_mode = #tpu.pipeline_mode<synchronous>, transform_indices = @transform_7, window_bounds = array<i64: 32, 64>}, {pipeline_mode = #tpu.pipeline_mode<synchronous>, transform_indices = @transform_8, window_bounds = array<i64: 1, 64>}, {pipeline_mode = #tpu.pipeline_mode<synchronous>, transform_indices = @transform_9, window_bounds = array<i64: 32, 32>}, {pipeline_mode = #tpu.pipeline_mode<synchronous>, transform_indices = @transform_10, window_bounds = array<i64: 1, 32>}, {transform_indices = @transform_11, window_bounds = array<i64: 1, 8, 32>}]} {
    %c0 = arith.constant 0 : index
    %c0_0 = arith.constant 0 : index
    %c0_1 = arith.constant 0 : index
    %0 = vector.load %arg2[%c0, %c0_0, %c0_1] : memref<1x8x32xf32, #tpu.memory_space<vmem>>, vector<1x8x32xf32>
    %1 = vector.shape_cast %0 : vector<1x8x32xf32> to vector<8x32xf32>
    %c0_2 = arith.constant 0 : index
    %c0_3 = arith.constant 0 : index
    %2 = vector.load %arg5[%c0_2, %c0_3] : memref<1x32xf32, #tpu.memory_space<vmem>>, vector<1x32xf32>
    %c0_4 = arith.constant 0 : index
    %c0_5 = arith.constant 0 : index
    %3 = vector.load %arg6[%c0_4, %c0_5] : memref<1x32xf32, #tpu.memory_space<vmem>>, vector<1x32xf32>
    %cst = arith.constant dense<0.000000e+00> : vector<8xf32>
    %4 = vector.multi_reduction <add>, %1, %cst [1] : vector<8x32xf32> to vector<8xf32>
    %5 = vector.shape_cast %4 : vector<8xf32> to vector<8x1xf32>
    %cst_6 = arith.constant 3.200000e+01 : f32
    %6 = vector.broadcast %cst_6 : f32 to vector<8x1xf32>
    %7 = arith.divf %5, %6 : vector<8x1xf32>
    %8 = vector.broadcast %7 : vector<8x1xf32> to vector<8x32xf32>
    %9 = arith.subf %1, %8 : vector<8x32xf32>
    %10 = arith.mulf %9, %9 : vector<8x32xf32>
    %cst_7 = arith.constant dense<0.000000e+00> : vector<8xf32>
    %11 = vector.multi_reduction <add>, %10, %cst_7 [1] : vector<8x32xf32> to vector<8xf32>
    %12 = vector.shape_cast %11 : vector<8xf32> to vector<8x1xf32>
    %cst_8 = arith.constant 3.200000e+01 : f32
    %13 = vector.broadcast %cst_8 : f32 to vector<8x1xf32>
    %14 = arith.divf %12, %13 : vector<8x1xf32>
    %15 = vector.broadcast %7 : vector<8x1xf32> to vector<8x32xf32>
    %16 = arith.subf %1, %15 : vector<8x32xf32>
    %cst_9 = arith.constant 9.99999974E-6 : f32
    %17 = vector.broadcast %cst_9 : f32 to vector<8x1xf32>
    %18 = arith.addf %14, %17 : vector<8x1xf32>
    %19 = math.rsqrt %18 : vector<8x1xf32>
    %20 = vector.broadcast %19 : vector<8x1xf32> to vector<8x32xf32>
    %21 = arith.mulf %16, %20 : vector<8x32xf32>
    %22 = vector.broadcast %2 : vector<1x32xf32> to vector<8x32xf32>
    %23 = arith.mulf %21, %22 : vector<8x32xf32>
    %24 = vector.broadcast %3 : vector<1x32xf32> to vector<8x32xf32>
    %25 = arith.addf %23, %24 : vector<8x32xf32>
    %c0_10 = arith.constant 0 : index
    %c0_11 = arith.constant 0 : index
    %c0_12 = arith.constant 0 : index
    %26 = vector.load %arg3[%c0_10, %c0_11, %c0_12] : memref<1x16x32xf32, #tpu.memory_space<vmem>>, vector<1x16x32xf32>
    %27 = vector.shape_cast %26 : vector<1x16x32xf32> to vector<16x32xf32>
    %c0_13 = arith.constant 0 : index
    %c0_14 = arith.constant 0 : index
    %28 = vector.load %arg7[%c0_13, %c0_14] : memref<32x32xf32, #tpu.memory_space<vmem>>, vector<32x32xf32>
    %cst_15 = arith.constant dense<0.000000e+00> : vector<8x32xf32>
    %29 = tpu.matmul %25, %28, %cst_15 {dimension_numbers = #tpu.dot_dimension_numbers<[1], [0], [0], [1], [0, 0, 1, 1], [], []>} : vector<8x32xf32>, vector<32x32xf32>, vector<8x32xf32> -> vector<8x32xf32>
    %c0_16 = arith.constant 0 : index
    %c0_17 = arith.constant 0 : index
    %30 = vector.load %arg8[%c0_16, %c0_17] : memref<1x32xf32, #tpu.memory_space<vmem>>, vector<1x32xf32>
    %31 = vector.broadcast %30 : vector<1x32xf32> to vector<8x32xf32>
    %32 = arith.addf %29, %31 : vector<8x32xf32>
    %cst_18 = arith.constant 0.353553385 : f32
    %33 = vector.broadcast %cst_18 : f32 to vector<8x32xf32>
    %34 = arith.mulf %32, %33 : vector<8x32xf32>
    %c0_19 = arith.constant 0 : index
    %c0_20 = arith.constant 0 : index
    %35 = vector.load %arg9[%c0_19, %c0_20] : memref<32x64xf32, #tpu.memory_space<vmem>>, vector<32x64xf32>
    %cst_21 = arith.constant dense<0.000000e+00> : vector<16x64xf32>
    %36 = tpu.matmul %27, %35, %cst_21 {dimension_numbers = #tpu.dot_dimension_numbers<[1], [0], [0], [1], [0, 0, 1, 1], [], []>} : vector<16x32xf32>, vector<32x64xf32>, vector<16x64xf32> -> vector<16x64xf32>
    %c0_22 = arith.constant 0 : index
    %c0_23 = arith.constant 0 : index
    %37 = vector.load %arg10[%c0_22, %c0_23] : memref<1x64xf32, #tpu.memory_space<vmem>>, vector<1x64xf32>
    %38 = vector.broadcast %37 : vector<1x64xf32> to vector<16x64xf32>
    %39 = arith.addf %36, %38 : vector<16x64xf32>
    %c0_24 = arith.constant 0 : index
    %c0_25 = arith.constant 0 : index
    %c0_26 = arith.constant 0 : index
    %40 = vector.load %arg4[%c0_24, %c0_25, %c0_26] : memref<1x8x16xf32, #tpu.memory_space<vmem>>, vector<1x8x16xf32>
    %41 = vector.shape_cast %40 : vector<1x8x16xf32> to vector<8x16xf32>
    %42 = vector.extract_strided_slice %34 {offsets = [0, 0], sizes = [8, 8], strides = [1, 1]} : vector<8x32xf32> to vector<8x8xf32>
    %43 = vector.extract_strided_slice %39 {offsets = [0, 0], sizes = [16, 8], strides = [1, 1]} : vector<16x64xf32> to vector<16x8xf32>
    %44 = vector.extract_strided_slice %39 {offsets = [0, 32], sizes = [16, 8], strides = [1, 1]} : vector<16x64xf32> to vector<16x8xf32>
    %cst_27 = arith.constant dense<0.000000e+00> : vector<8x16xf32>
    %45 = tpu.matmul %42, %43, %cst_27 {dimension_numbers = #tpu.dot_dimension_numbers<[1], [1], [0], [0], [0, 0, 1, 0], [], []>} : vector<8x8xf32>, vector<16x8xf32>, vector<8x16xf32> -> vector<8x16xf32>
    %46 = arith.addf %45, %41 : vector<8x16xf32>
    %cst_28 = arith.constant dense<0xFF800000> : vector<8xf32>
    %47 = vector.multi_reduction <maximumf>, %46, %cst_28 [1] : vector<8x16xf32> to vector<8xf32>
    %48 = vector.shape_cast %47 : vector<8xf32> to vector<8x1xf32>
    %49 = vector.broadcast %48 : vector<8x1xf32> to vector<8x16xf32>
    %50 = arith.subf %46, %49 : vector<8x16xf32>
    %51 = math.exp %50 : vector<8x16xf32>
    %cst_29 = arith.constant dense<0.000000e+00> : vector<8xf32>
    %52 = vector.multi_reduction <add>, %51, %cst_29 [1] : vector<8x16xf32> to vector<8xf32>
    %53 = vector.shape_cast %52 : vector<8xf32> to vector<8x1xf32>
    %54 = tpu.reciprocal %53 {approx = true} : vector<8x1xf32> -> vector<8x1xf32>
    %55 = vector.broadcast %54 : vector<8x1xf32> to vector<8x16xf32>
    %56 = arith.mulf %51, %55 : vector<8x16xf32>
    %cst_30 = arith.constant dense<0.000000e+00> : vector<8x8xf32>
    %57 = tpu.matmul %56, %44, %cst_30 {dimension_numbers = #tpu.dot_dimension_numbers<[1], [0], [0], [1], [0, 0, 1, 1], [], []>} : vector<8x16xf32>, vector<16x8xf32>, vector<8x8xf32> -> vector<8x8xf32>
    %58 = vector.extract_strided_slice %34 {offsets = [0, 8], sizes = [8, 8], strides = [1, 1]} : vector<8x32xf32> to vector<8x8xf32>
    %59 = vector.extract_strided_slice %39 {offsets = [0, 8], sizes = [16, 8], strides = [1, 1]} : vector<16x64xf32> to vector<16x8xf32>
    %60 = vector.extract_strided_slice %39 {offsets = [0, 40], sizes = [16, 8], strides = [1, 1]} : vector<16x64xf32> to vector<16x8xf32>
    %cst_31 = arith.constant dense<0.000000e+00> : vector<8x16xf32>
    %61 = tpu.matmul %58, %59, %cst_31 {dimension_numbers = #tpu.dot_dimension_numbers<[1], [1], [0], [0], [0, 0, 1, 0], [], []>} : vector<8x8xf32>, vector<16x8xf32>, vector<8x16xf32> -> vector<8x16xf32>
    %62 = arith.addf %61, %41 : vector<8x16xf32>
    %cst_32 = arith.constant dense<0xFF800000> : vector<8xf32>
    %63 = vector.multi_reduction <maximumf>, %62, %cst_32 [1] : vector<8x16xf32> to vector<8xf32>
    %64 = vector.shape_cast %63 : vector<8xf32> to vector<8x1xf32>
    %65 = vector.broadcast %64 : vector<8x1xf32> to vector<8x16xf32>
    %66 = arith.subf %62, %65 : vector<8x16xf32>
    %67 = math.exp %66 : vector<8x16xf32>
    %cst_33 = arith.constant dense<0.000000e+00> : vector<8xf32>
    %68 = vector.multi_reduction <add>, %67, %cst_33 [1] : vector<8x16xf32> to vector<8xf32>
    %69 = vector.shape_cast %68 : vector<8xf32> to vector<8x1xf32>
    %70 = tpu.reciprocal %69 {approx = true} : vector<8x1xf32> -> vector<8x1xf32>
    %71 = vector.broadcast %70 : vector<8x1xf32> to vector<8x16xf32>
    %72 = arith.mulf %67, %71 : vector<8x16xf32>
    %cst_34 = arith.constant dense<0.000000e+00> : vector<8x8xf32>
    %73 = tpu.matmul %72, %60, %cst_34 {dimension_numbers = #tpu.dot_dimension_numbers<[1], [0], [0], [1], [0, 0, 1, 1], [], []>} : vector<8x16xf32>, vector<16x8xf32>, vector<8x8xf32> -> vector<8x8xf32>
    %74 = vector.extract_strided_slice %34 {offsets = [0, 16], sizes = [8, 8], strides = [1, 1]} : vector<8x32xf32> to vector<8x8xf32>
    %75 = vector.extract_strided_slice %39 {offsets = [0, 16], sizes = [16, 8], strides = [1, 1]} : vector<16x64xf32> to vector<16x8xf32>
    %76 = vector.extract_strided_slice %39 {offsets = [0, 48], sizes = [16, 8], strides = [1, 1]} : vector<16x64xf32> to vector<16x8xf32>
    %cst_35 = arith.constant dense<0.000000e+00> : vector<8x16xf32>
    %77 = tpu.matmul %74, %75, %cst_35 {dimension_numbers = #tpu.dot_dimension_numbers<[1], [1], [0], [0], [0, 0, 1, 0], [], []>} : vector<8x8xf32>, vector<16x8xf32>, vector<8x16xf32> -> vector<8x16xf32>
    %78 = arith.addf %77, %41 : vector<8x16xf32>
    %cst_36 = arith.constant dense<0xFF800000> : vector<8xf32>
    %79 = vector.multi_reduction <maximumf>, %78, %cst_36 [1] : vector<8x16xf32> to vector<8xf32>
    %80 = vector.shape_cast %79 : vector<8xf32> to vector<8x1xf32>
    %81 = vector.broadcast %80 : vector<8x1xf32> to vector<8x16xf32>
    %82 = arith.subf %78, %81 : vector<8x16xf32>
    %83 = math.exp %82 : vector<8x16xf32>
    %cst_37 = arith.constant dense<0.000000e+00> : vector<8xf32>
    %84 = vector.multi_reduction <add>, %83, %cst_37 [1] : vector<8x16xf32> to vector<8xf32>
    %85 = vector.shape_cast %84 : vector<8xf32> to vector<8x1xf32>
    %86 = tpu.reciprocal %85 {approx = true} : vector<8x1xf32> -> vector<8x1xf32>
    %87 = vector.broadcast %86 : vector<8x1xf32> to vector<8x16xf32>
    %88 = arith.mulf %83, %87 : vector<8x16xf32>
    %cst_38 = arith.constant dense<0.000000e+00> : vector<8x8xf32>
    %89 = tpu.matmul %88, %76, %cst_38 {dimension_numbers = #tpu.dot_dimension_numbers<[1], [0], [0], [1], [0, 0, 1, 1], [], []>} : vector<8x16xf32>, vector<16x8xf32>, vector<8x8xf32> -> vector<8x8xf32>
    %90 = vector.extract_strided_slice %34 {offsets = [0, 24], sizes = [8, 8], strides = [1, 1]} : vector<8x32xf32> to vector<8x8xf32>
    %91 = vector.extract_strided_slice %39 {offsets = [0, 24], sizes = [16, 8], strides = [1, 1]} : vector<16x64xf32> to vector<16x8xf32>
    %92 = vector.extract_strided_slice %39 {offsets = [0, 56], sizes = [16, 8], strides = [1, 1]} : vector<16x64xf32> to vector<16x8xf32>
    %cst_39 = arith.constant dense<0.000000e+00> : vector<8x16xf32>
    %93 = tpu.matmul %90, %91, %cst_39 {dimension_numbers = #tpu.dot_dimension_numbers<[1], [1], [0], [0], [0, 0, 1, 0], [], []>} : vector<8x8xf32>, vector<16x8xf32>, vector<8x16xf32> -> vector<8x16xf32>
    %94 = arith.addf %93, %41 : vector<8x16xf32>
    %cst_40 = arith.constant dense<0xFF800000> : vector<8xf32>
    %95 = vector.multi_reduction <maximumf>, %94, %cst_40 [1] : vector<8x16xf32> to vector<8xf32>
    %96 = vector.shape_cast %95 : vector<8xf32> to vector<8x1xf32>
    %97 = vector.broadcast %96 : vector<8x1xf32> to vector<8x16xf32>
    %98 = arith.subf %94, %97 : vector<8x16xf32>
    %99 = math.exp %98 : vector<8x16xf32>
    %cst_41 = arith.constant dense<0.000000e+00> : vector<8xf32>
    %100 = vector.multi_reduction <add>, %99, %cst_41 [1] : vector<8x16xf32> to vector<8xf32>
    %101 = vector.shape_cast %100 : vector<8xf32> to vector<8x1xf32>
    %102 = tpu.reciprocal %101 {approx = true} : vector<8x1xf32> -> vector<8x1xf32>
    %103 = vector.broadcast %102 : vector<8x1xf32> to vector<8x16xf32>
    %104 = arith.mulf %99, %103 : vector<8x16xf32>
    %cst_42 = arith.constant dense<0.000000e+00> : vector<8x8xf32>
    %105 = tpu.matmul %104, %92, %cst_42 {dimension_numbers = #tpu.dot_dimension_numbers<[1], [0], [0], [1], [0, 0, 1, 1], [], []>} : vector<8x16xf32>, vector<16x8xf32>, vector<8x8xf32> -> vector<8x8xf32>
    %106 = tpu.concatenate %57, %73, %89, %105 in 1 : vector<8x8xf32>, vector<8x8xf32>, vector<8x8xf32>, vector<8x8xf32> -> vector<8x32xf32>
    %c0_43 = arith.constant 0 : index
    %c0_44 = arith.constant 0 : index
    %107 = vector.load %arg11[%c0_43, %c0_44] : memref<32x32xf32, #tpu.memory_space<vmem>>, vector<32x32xf32>
    %cst_45 = arith.constant dense<0.000000e+00> : vector<8x32xf32>
    %108 = tpu.matmul %106, %107, %cst_45 {dimension_numbers = #tpu.dot_dimension_numbers<[1], [0], [0], [1], [0, 0, 1, 1], [], []>} : vector<8x32xf32>, vector<32x32xf32>, vector<8x32xf32> -> vector<8x32xf32>
    %c0_46 = arith.constant 0 : index
    %c0_47 = arith.constant 0 : index
    %109 = vector.load %arg12[%c0_46, %c0_47] : memref<1x32xf32, #tpu.memory_space<vmem>>, vector<1x32xf32>
    %110 = vector.broadcast %109 : vector<1x32xf32> to vector<8x32xf32>
    %111 = arith.addf %108, %110 : vector<8x32xf32>
    %112 = arith.addf %1, %111 : vector<8x32xf32>
    %c0_48 = arith.constant 0 : index
    %c0_49 = arith.constant 0 : index
    %c0_50 = arith.constant 0 : index
    %113 = vector.load %arg13[%c0_48, %c0_49, %c0_50] : memref<1x8x32xf32, #tpu.memory_space<vmem>>, vector<1x8x32xf32>
    %114 = vector.shape_cast %113 : vector<1x8x32xf32> to vector<8x32xf32>
    %115 = vector.shape_cast %112 : vector<8x32xf32> to vector<1x8x32xf32>
    tpu.vector_store %arg13[%c0_48, %c0_49, %c0_50], %115 {strides = array<i32>} : memref<1x8x32xf32, #tpu.memory_space<vmem>>, vector<1x8x32xf32>,
    return
  }
  func.func @transform_0(%arg0: i32, %arg1: i32) -> (i32, i32, i32) {
    %c0_i32 = arith.constant 0 : i32
    %c0_i32_0 = arith.constant 0 : i32
    return %arg0, %arg1, %c0_i32 : i32, i32, i32
  }
  func.func @transform_1(%arg0: i32, %arg1: i32) -> (i32, i32, i32) {
    %c0_i32 = arith.constant 0 : i32
    %c0_i32_0 = arith.constant 0 : i32
    %c0_i32_1 = arith.constant 0 : i32
    return %arg0, %c0_i32, %c0_i32_0 : i32, i32, i32
  }
  func.func @transform_2(%arg0: i32, %arg1: i32) -> (i32, i32, i32) {
    %c0_i32 = arith.constant 0 : i32
    %c0_i32_0 = arith.constant 0 : i32
    return %arg0, %arg1, %c0_i32 : i32, i32, i32
  }
  func.func @transform_3(%arg0: i32, %arg1: i32) -> (i32, i32) {
    %c0_i32 = arith.constant 0 : i32
    %c0_i32_0 = arith.constant 0 : i32
    %c0_i32_1 = arith.constant 0 : i32
    return %c0_i32, %c0_i32_0 : i32, i32
  }
  func.func @transform_4(%arg0: i32, %arg1: i32) -> (i32, i32) {
    %c0_i32 = arith.constant 0 : i32
    %c0_i32_0 = arith.constant 0 : i32
    %c0_i32_1 = arith.constant 0 : i32
    return %c0_i32, %c0_i32_0 : i32, i32
  }
  func.func @transform_5(%arg0: i32, %arg1: i32) -> (i32, i32) {
    %c0_i32 = arith.constant 0 : i32
    %c0_i32_0 = arith.constant 0 : i32
    %c0_i32_1 = arith.constant 0 : i32
    return %c0_i32, %c0_i32_0 : i32, i32
  }
  func.func @transform_6(%arg0: i32, %arg1: i32) -> (i32, i32) {
    %c0_i32 = arith.constant 0 : i32
    %c0_i32_0 = arith.constant 0 : i32
    %c0_i32_1 = arith.constant 0 : i32
    return %c0_i32, %c0_i32_0 : i32, i32
  }
  func.func @transform_7(%arg0: i32, %arg1: i32) -> (i32, i32) {
    %c0_i32 = arith.constant 0 : i32
    %c0_i32_0 = arith.constant 0 : i32
    %c0_i32_1 = arith.constant 0 : i32
    return %c0_i32, %c0_i32_0 : i32, i32
  }
  func.func @transform_8(%arg0: i32, %arg1: i32) -> (i32, i32) {
    %c0_i32 = arith.constant 0 : i32
    %c0_i32_0 = arith.constant 0 : i32
    %c0_i32_1 = arith.constant 0 : i32
    return %c0_i32, %c0_i32_0 : i32, i32
  }
  func.func @transform_9(%arg0: i32, %arg1: i32) -> (i32, i32) {
    %c0_i32 = arith.constant 0 : i32
    %c0_i32_0 = arith.constant 0 : i32
    %c0_i32_1 = arith.constant 0 : i32
    return %c0_i32, %c0_i32_0 : i32, i32
  }
  func.func @transform_10(%arg0: i32, %arg1: i32) -> (i32, i32) {
    %c0_i32 = arith.constant 0 : i32
    %c0_i32_0 = arith.constant 0 : i32
    %c0_i32_1 = arith.constant 0 : i32
    return %c0_i32, %c0_i32_0 : i32, i32
  }
  func.func @transform_11(%arg0: i32, %arg1: i32) -> (i32, i32, i32) {
    %c0_i32 = arith.constant 0 : i32
    %c0_i32_0 = arith.constant 0 : i32
    return %arg0, %arg1, %c0_i32 : i32, i32, i32
  }
}

</mosaic_0001>

<llo_original>
// kernel: decoder_layer.5
$region0: #{decoder_layer.5}
  #allocation0 [shape = 'u32[]', space=smem, size = 0x4, offset = 0x4, fixed_abs, tag = 'smem constant byte address 0x4 - core index']
  #allocation1 [shape = 'u32[144,128]{1,0:T(1,128)}', space=vmem, size = 0x12000, scoped, tag = 'internal scratch']
  %s0 = inlined_call_operand.vmem [shape: f32[16,32], index: 0, kind: input, shape index: {}]
  %s1 = inlined_call_operand.vmem [shape: f32[1,32], index: 1, kind: input, shape index: {}]
  %s2 = inlined_call_operand.vmem [shape: f32[1,32], index: 2, kind: input, shape index: {}]
  %s3 = inlined_call_operand.vmem [shape: f32[32,64], index: 3, kind: input, shape index: {}]
  %s4 = inlined_call_operand.vmem [shape: f32[1,64], index: 4, kind: input, shape index: {}]
  %s5 = inlined_call_operand.vmem [shape: f32[64,32], index: 5, kind: input, shape index: {}]
  %s6 = inlined_call_operand.vmem [shape: f32[1,32], index: 6, kind: input, shape index: {}]
  %s7 = inlined_call_operand.hbm [shape: f32[16,32], index: 7, kind: output, shape index: {}]
  %s8 = sld [smem:[#allocation0]]
  $region38: #{decoder_layer.5} parent=0
    _
  %s10 = ssub.s32 1, %s8
  %s11 = scalar_select 0, %s10, %s8
  $region1: #{decoder_layer.5} parent=0
    #allocation2 [shape = 'u8[8192]{0}', space=vmem, size = 0x2000, scoped, tag = 'output window, operand 0, single buffered']
    #allocation3 [shape = 's32[1]{0}', space=sflag, size = 0x4, scoped, tag = 'scoped memory for decoder_layer.5']
    %12 = vsyncpa [#allocation3], 0
    // Predicated region
    $region2: #{decoder_layer.5} parent=1 // pred_check
      _
    $region3: #{decoder_layer.5} parent=1 // pred_check_branch
      %14 = sbr.rel (0) target = $region5
    $region4: #{decoder_layer.5} parent=1 // pred_region
      _
    $region5: #{decoder_layer.5} parent=1 // pred_fallthru
      _
    // Predicated region
    $region6: #{decoder_layer.5} parent=1 // pred_check
      _
    $region7: #{decoder_layer.5} parent=1 // pred_check_branch
      %16 = sbr.rel (0) target = $region9
    $region8: #{decoder_layer.5} parent=1 // pred_region
      _
    $region9: #{decoder_layer.5} parent=1 // pred_fallthru
      _
    // Predicated region
    $region10: #{decoder_layer.5} parent=1 // pred_check
      _
    $region11: #{decoder_layer.5} parent=1 // pred_check_branch
      %18 = sbr.rel (0) target = $region13
    $region12: #{decoder_layer.5} parent=1 // pred_region
      _
    $region13: #{decoder_layer.5} parent=1 // pred_fallthru
      _
    // Predicated region
    $region14: #{decoder_layer.5} parent=1 // pred_check
      _
    $region15: #{decoder_layer.5} parent=1 // pred_check_branch
      %20 = sbr.rel (0) target = $region17
    $region16: #{decoder_layer.5} parent=1 // pred_region
      _
    $region17: #{decoder_layer.5} parent=1 // pred_fallthru
      _
    // Predicated region
    $region18: #{decoder_layer.5} parent=1 // pred_check
      _
    $region19: #{decoder_layer.5} parent=1 // pred_check_branch
      %22 = sbr.rel (0) target = $region21
    $region20: #{decoder_layer.5} parent=1 // pred_region
      _
    $region21: #{decoder_layer.5} parent=1 // pred_fallthru
      _
    // Predicated region
    $region22: #{decoder_layer.5} parent=1 // pred_check
      _
    $region23: #{decoder_layer.5} parent=1 // pred_check_branch
      %24 = sbr.rel (0) target = $region25
    $region24: #{decoder_layer.5} parent=1 // pred_region
      _
    $region25: #{decoder_layer.5} parent=1 // pred_fallthru
      _
    // Predicated region
    $region26: #{decoder_layer.5} parent=1 // pred_check
      _
    $region27: #{decoder_layer.5} parent=1 // pred_check_branch
      %26 = sbr.rel (0) target = $region29
    $region28: #{decoder_layer.5} parent=1 // pred_region
      _
    $region29: #{decoder_layer.5} parent=1 // pred_fallthru
      _
    %v27 = vld [vmem:[%s0] sm:$0xff]
    %v28 = vld [vmem:[%s0 + $0x8] sm:$0xff]
    %v29 = vld [vmem:[%s1] sm:$0x1]
    %v30 = vld [vmem:[%s2] sm:$0x1]
    %vm31 = vcmask 261120
    %v32 = vsel %vm31, %v27, 0.0
    %33 = vadd.xlane.f32.xlu0 %v32
    %v34 = vpop.xlane.xlu0 %33
    %v35 = vsel %vm31, %v28, 0.0
    %36 = vadd.xlane.f32.xlu0 %v35
    %v37 = vpop.xlane.xlu0 %36
    %v38 = vrcp.pop 32.0
    %v39 = vmul.f32 %v34, %v38
    %v40 = vmul.f32 %v37, %v38
    %v41 = vsub.f32 %v27, %v39
    %v42 = vsub.f32 %v28, %v40
    %v43 = vmul.f32 %v41, %v41
    %v44 = vmul.f32 %v42, %v42
    %v45 = vsel %vm31, %v43, 0.0
    %46 = vadd.xlane.f32.xlu0 %v45
    %v47 = vpop.xlane.xlu0 %46
    %v48 = vsel %vm31, %v44, 0.0
    %49 = vadd.xlane.f32.xlu0 %v48
    %v50 = vpop.xlane.xlu0 %49
    %v51 = vmul.f32 %v47, %v38
    %v52 = vmul.f32 %v50, %v38
    %v53 = vadd.f32 %v51, 1e-05
    %v54 = vadd.f32 %v52, 1e-05
    %v55 = vrsqrt.pop %v53
    %v56 = vrsqrt.pop %v54
    %v57 = vmul.f32 %v41, %v55
    %v58 = vmul.f32 %v42, %v56
    %v60 = vlaneseq
    %v61 = vshrl.u32 %v60, 7
    %v62 = vsub.s32 0, %v61
    %v63 = vrot.slane %v29, %v62
    %v65 = vmul.f32 %v57, %v63
    %v66 = vmul.f32 %v58, %v63
    %v68 = vlaneseq
    %v69 = vshrl.u32 %v68, 7
    %v70 = vsub.s32 0, %v69
    %v71 = vrot.slane %v30, %v70
    %v73 = vadd.f32 %v65, %v71
    %v74 = vadd.f32 %v66, %v71
    %v75 = vld [vmem:[%s3] sm:$0xff]
    %v76 = vld [vmem:[%s3 + $0x8] sm:$0xff]
    %v77 = vld [vmem:[%s3 + $0x10] sm:$0xff]
    %v78 = vld [vmem:[%s3 + $0x18] sm:$0xff]
    %v79 = vld [vmem:[%s4] sm:$0x1]
    %v81 = vlaneseq
    %v82 = vshrl.u32 %v81, 7
    %v83 = vsub.s32 0, %v82
    %v84 = vrot.slane %v79, %v83
    %v87 = vsel %vm31, %v73, 0
    %v90 = vsel %vm31, %v74, 0
    %92 = vmatprep.subr.mxu0 0.0
    %93 = vmatpush1.msra.mxu0 %v75
    %94 = vmatprep.subr.mxu0 0.0
    %95 = vmatpush1.msra.mxu0 %v76
    %96 = vmatprep.subr.mxu0 0.0
    %97 = vmatpush1.msra.mxu0 %v77
    %98 = vmatprep.subr.mxu0 0.0
    %99 = vmatpush1.msra.mxu0 %v78
    %100 = vmatprep.subr.mxu0 0.0
    %101 = vmatpush1.msra.mxu0 0.0
    %102 = vmatprep.subr.mxu0 0.0
    %103 = vmatpush1.msra.mxu0 0.0
    %104 = vmatprep.subr.mxu0 0.0
    %105 = vmatpush1.msra.mxu0 0.0
    %106 = vmatprep.subr.mxu0 0.0
    %107 = vmatpush1.msra.mxu0 0.0
    %108 = vmatprep.subr.mxu0 0.0
    %109 = vmatpush1.msra.mxu0 0.0
    %110 = vmatprep.subr.mxu0 0.0
    %111 = vmatpush1.msra.mxu0 0.0
    %112 = vmatprep.subr.mxu0 0.0
    %113 = vmatpush1.msra.mxu0 0.0
    %114 = vmatprep.subr.mxu0 0.0
    %115 = vmatpush1.msra.mxu0 0.0
    %116 = vmatprep.subr.mxu0 0.0
    %117 = vmatpush1.msra.mxu0 0.0
    %118 = vmatprep.subr.mxu0 0.0
    %119 = vmatpush1.msra.mxu0 0.0
    %120 = vmatprep.subr.mxu0 0.0
    %121 = vmatpush1.msra.mxu0 0.0
    %122 = vmatprep.subr.mxu0 0.0
    %123 = vmatpush1.msra.mxu0 0.0
    %124 = vmatprep.subr.mxu0 0.0
    %125 = vmatpush1.msra.mxu0 0.0
    %126 = vmatprep.subr.mxu0 0.0
    %127 = vmatpush1.msra.mxu0 0.0
    %128 = vmatprep.subr.mxu0 0.0
    %129 = vmatpush1.msra.mxu0 0.0
    %130 = vmatprep.subr.mxu0 0.0
    %131 = vmatpush1.msra.mxu0 0.0
    %132 = vmatprep.subr.mxu0 0.0
    %133 = vmatpush1.msra.mxu0 0.0
    %134 = vmatprep.subr.mxu0 0.0
    %135 = vmatpush1.msra.mxu0 0.0
    %136 = vmatprep.subr.mxu0 0.0
    %137 = vmatpush1.msra.mxu0 0.0
    %138 = vmatprep.subr.mxu0 0.0
    %139 = vmatpush1.msra.mxu0 0.0
    %140 = vmatprep.subr.mxu0 0.0
    %141 = vmatpush1.msra.mxu0 0.0
    %142 = vmatprep.subr.mxu0 0.0
    %143 = vmatpush1.msra.mxu0 0.0
    %144 = vmatprep.subr.mxu0 0.0
    %145 = vmatpush1.msra.mxu0 0.0
    %146 = vmatprep.subr.mxu0 0.0
    %147 = vmatpush1.msra.mxu0 0.0
    %148 = vmatprep.subr.mxu0 0.0
    %149 = vmatpush1.msra.mxu0 0.0
    %150 = vmatprep.subr.mxu0 0.0
    %151 = vmatpush1.msra.mxu0 0.0
    %152 = vmatprep.subr.mxu0 0.0
    %153 = vmatpush1.msra.mxu0 0.0
    %154 = vmatprep.subr.mxu0 0.0
    %155 = vmatpush1.msra.mxu0 0.0
    %156 = vmatprep.mubr.f32.mxu0 0.0
    %157 = vmatmul.mubr.f32.gmra.mrb[0].mxu0 %v87
    %v158 = vpop.f32.mrb[0].mxu0
    %v159 = vadd.f32 %v84, %v158
    %v160 = vpop.f32.mrb[0].mxu0
    %161 = vmatprep.mubr.f32.mxu0 0.0
    %162 = vmatmul.mubr.f32.gmra.mrb[0].mxu0 %v90
    %v163 = vpop.f32.mrb[0].mxu0
    %v164 = vadd.f32 %v84, %v163
    %v165 = vpop.f32.mrb[0].mxu0
    %166 = vdwg.mxu0
    %v167 = vmax.f32 %v159, 0.0
    %v168 = vmax.f32 %v164, 0.0
    %v169 = vld [vmem:[%s5] sm:$0xff]
    %v170 = vld [vmem:[%s5 + $0x8] sm:$0xff]
    %v171 = vld [vmem:[%s5 + $0x10] sm:$0xff]
    %v172 = vld [vmem:[%s5 + $0x18] sm:$0xff]
    %v173 = vld [vmem:[%s5 + $0x20] sm:$0xff]
    %v174 = vld [vmem:[%s5 + $0x28] sm:$0xff]
    %v175 = vld [vmem:[%s5 + $0x30] sm:$0xff]
    %v176 = vld [vmem:[%s5 + $0x38] sm:$0xff]
    %v177 = vld [vmem:[%s6] sm:$0x1]
    %v179 = vlaneseq
    %v180 = vshrl.u32 %v179, 7
    %v181 = vsub.s32 0, %v180
    %v182 = vrot.slane %v177, %v181
    %vm184 = vcmask 523264
    %v186 = vsel %vm184, %v167, 0
    %v189 = vsel %vm184, %v168, 0
    %191 = vmatprep.subr.mxu0 0.0
    %192 = vmatpush1.msra.mxu0 %v169
    %193 = vmatprep.subr.mxu0 0.0
    %194 = vmatpush1.msra.mxu0 %v170
    %195 = vmatprep.subr.mxu0 0.0
    %196 = vmatpush1.msra.mxu0 %v171
    %197 = vmatprep.subr.mxu0 0.0
    %198 = vmatpush1.msra.mxu0 %v172
    %199 = vmatprep.subr.mxu0 0.0
    %200 = vmatpush1.msra.mxu0 %v173
    %201 = vmatprep.subr.mxu0 0.0
    %202 = vmatpush1.msra.mxu0 %v174
    %203 = vmatprep.subr.mxu0 0.0
    %204 = vmatpush1.msra.mxu0 %v175
    %205 = vmatprep.subr.mxu0 0.0
    %206 = vmatpush1.msra.mxu0 %v176
    %207 = vmatprep.subr.mxu0 0.0
    %208 = vmatpush1.msra.mxu0 0.0
    %209 = vmatprep.subr.mxu0 0.0
    %210 = vmatpush1.msra.mxu0 0.0
    %211 = vmatprep.subr.mxu0 0.0
    %212 = vmatpush1.msra.mxu0 0.0
    %213 = vmatprep.subr.mxu0 0.0
    %214 = vmatpush1.msra.mxu0 0.0
    %215 = vmatprep.subr.mxu0 0.0
    %216 = vmatpush1.msra.mxu0 0.0
    %217 = vmatprep.subr.mxu0 0.0
    %218 = vmatpush1.msra.mxu0 0.0
    %219 = vmatprep.subr.mxu0 0.0
    %220 = vmatpush1.msra.mxu0 0.0
    %221 = vmatprep.subr.mxu0 0.0
    %222 = vmatpush1.msra.mxu0 0.0
    %223 = vmatprep.subr.mxu0 0.0
    %224 = vmatpush1.msra.mxu0 0.0
    %225 = vmatprep.subr.mxu0 0.0
    %226 = vmatpush1.msra.mxu0 0.0
    %227 = vmatprep.subr.mxu0 0.0
    %228 = vmatpush1.msra.mxu0 0.0
    %229 = vmatprep.subr.mxu0 0.0
    %230 = vmatpush1.msra.mxu0 0.0
    %231 = vmatprep.subr.mxu0 0.0
    %232 = vmatpush1.msra.mxu0 0.0
    %233 = vmatprep.subr.mxu0 0.0
    %234 = vmatpush1.msra.mxu0 0.0
    %235 = vmatprep.subr.mxu0 0.0
    %236 = vmatpush1.msra.mxu0 0.0
    %237 = vmatprep.subr.mxu0 0.0
    %238 = vmatpush1.msra.mxu0 0.0
    %239 = vmatprep.subr.mxu0 0.0
    %240 = vmatpush1.msra.mxu0 0.0
    %241 = vmatprep.subr.mxu0 0.0
    %242 = vmatpush1.msra.mxu0 0.0
    %243 = vmatprep.subr.mxu0 0.0
    %244 = vmatpush1.msra.mxu0 0.0
    %245 = vmatprep.subr.mxu0 0.0
    %246 = vmatpush1.msra.mxu0 0.0
    %247 = vmatprep.subr.mxu0 0.0
    %248 = vmatpush1.msra.mxu0 0.0
    %249 = vmatprep.subr.mxu0 0.0
    %250 = vmatpush1.msra.mxu0 0.0
    %251 = vmatprep.subr.mxu0 0.0
    %252 = vmatpush1.msra.mxu0 0.0
    %253 = vmatprep.subr.mxu0 0.0
    %254 = vmatpush1.msra.mxu0 0.0
    %255 = vmatprep.mubr.f32.mxu0 0.0
    %256 = vmatmul.mubr.f32.gmra.mrb[0].mxu0 %v186
    %v257 = vpop.f32.mrb[0].mxu0
    %v258 = vadd.f32 %v182, %v257
    %v259 = vpop.f32.mrb[0].mxu0
    %260 = vmatprep.mubr.f32.mxu0 0.0
    %261 = vmatmul.mubr.f32.gmra.mrb[0].mxu0 %v189
    %v262 = vpop.f32.mrb[0].mxu0
    %v263 = vadd.f32 %v182, %v262
    %v264 = vpop.f32.mrb[0].mxu0
    %265 = vdwg.mxu0
    %v266 = vadd.f32 %v27, %v258
    %v267 = vadd.f32 %v28, %v263
    %268 = vst.msk [vmem:[#allocation2] sm:$0xff] %vm31, %v266
    %269 = vst.msk [vmem:[#allocation2 + $0x8] sm:$0xff] %vm31, %v267
    // Predicated region
    $region30: #{decoder_layer.5} parent=1 // pred_check
      _
    $region31: #{decoder_layer.5} parent=1 // pred_check_branch
      %271 = sbr.rel (0) target = $region33
    $region32: #{decoder_layer.5} parent=1 // pred_region
      %s273 = ssub.s32 256, 256
      %274 = vsyncadd [#allocation3], %s273
      %s275 = sshll.u32 [#allocation2], 4
      %s276 = int_to_ptr.vmem [resolvable:$true] %s275
      %281 = dma.vmem_to_hbm [thread:$0]  %s276, 256, %s7, [#allocation3], 128, 128, 8
    $region33: #{decoder_layer.5} parent=1 // pred_fallthru
      _
    // Predicated region
    $region34: #{decoder_layer.5} parent=1 // pred_check
      _
    $region35: #{decoder_layer.5} parent=1 // pred_check_branch
      %283 = sbr.rel (0) target = $region37
    $region36: #{decoder_layer.5} parent=1 // pred_region
      %284 = dma.done [#allocation3], 256
    $region37: #{decoder_layer.5} parent=1 // pred_fallthru
      _
    %285 = vsyncpa [#allocation3], 1

// kernel: decoder_layer.3
$region0: #{decoder_layer.3}
  #allocation0 [shape = 'u32[]', space=smem, size = 0x4, offset = 0x4, fixed_abs, tag = 'smem constant byte address 0x4 - core index']
  #allocation1 [shape = 'u32[144,128]{1,0:T(1,128)}', space=vmem, size = 0x12000, scoped, tag = 'internal scratch']
  %s0 = inlined_call_operand.vmem [shape: f32[2,8,32], index: 0, kind: input, shape index: {}, may-alias: {0,1}]
  %s1 = inlined_call_operand.vmem [shape: f32[2,8,32], index: 1, kind: input, shape index: {}, may-alias: {0,1}]
  %s2 = inlined_call_operand.vmem [shape: f32[2,8,8], index: 2, kind: input, shape index: {}]
  %s3 = inlined_call_operand.vmem [shape: f32[1,32], index: 3, kind: input, shape index: {}]
  %s4 = inlined_call_operand.vmem [shape: f32[1,32], index: 4, kind: input, shape index: {}]
  %s5 = inlined_call_operand.vmem [shape: f32[32,32], index: 5, kind: input, shape index: {}]
  %s6 = inlined_call_operand.vmem [shape: f32[1,32], index: 6, kind: input, shape index: {}]
  %s7 = inlined_call_operand.vmem [shape: f32[32,64], index: 7, kind: input, shape index: {}]
  %s8 = inlined_call_operand.vmem [shape: f32[1,64], index: 8, kind: input, shape index: {}]
  %s9 = inlined_call_operand.vmem [shape: f32[32,32], index: 9, kind: input, shape index: {}]
  %s10 = inlined_call_operand.vmem [shape: f32[1,32], index: 10, kind: input, shape index: {}]
  %s11 = inlined_call_operand.vmem [shape: f32[2,8,32], index: 11, kind: output, shape index: {}]
  %s12 = sld [smem:[#allocation0]]
  $region77: #{decoder_layer.3} parent=0
    _
  %s14 = ssub.s32 1, %s12
  %s15 = scalar_select 0, %s14, %s12
  loop: start=0, step=1, limit=4
  $region2: #{decoder_layer.3} parent=0 // loop_pre_header
    _
  $region3: #{decoder_layer.3} parent=0 // loop_header
    %s17 = sphi 0, %s21
    %p18 = scmp.ge.s32.totalorder %s17, 4
    %s24 = sphi 0, %s36
    %s25 = sphi 0, %s32
    %s26 = sphi 0, %s24
    %s27 = sphi 0, %s25
    %s28 = sphi 0, %s26
    %s29 = sphi 0, %s27
    %s41 = sphi 0, %s43
    %s44 = sphi 0, %s41
    %s45 = sphi 0, %s44
    %s61 = sphi 0, %s45
    %s67 = sphi 0, %s69
    %s70 = sphi 0, %s67
    %s71 = sphi 0, %s70
    %s87 = sphi 0, %s71
    %s95 = sphi 0, %s97
    %s98 = sphi 0, %s95
    %s99 = sphi 0, %s98
    %s115 = sphi 0, %s99
    %s119 = sphi 0, %s119
    %s121 = sphi 0, %s119
    %s122 = sphi 0, %s121
    %s136 = sphi 0, %s122
    %s140 = sphi 0, %s140
    %s142 = sphi 0, %s140
    %s143 = sphi 0, %s142
    %s157 = sphi 0, %s143
    %s161 = sphi 0, %s161
    %s163 = sphi 0, %s161
    %s164 = sphi 0, %s163
    %s178 = sphi 0, %s164
    %s182 = sphi 0, %s182
    %s184 = sphi 0, %s182
    %s185 = sphi 0, %s184
    %s199 = sphi 0, %s185
    %s203 = sphi 0, %s203
    %s205 = sphi 0, %s203
    %s206 = sphi 0, %s205
    %s220 = sphi 0, %s206
    %s224 = sphi 0, %s224
    %s226 = sphi 0, %s224
    %s227 = sphi 0, %s226
    %s241 = sphi 0, %s227
    %s245 = sphi 0, %s245
    %s247 = sphi 0, %s245
    %s248 = sphi 0, %s247
    %s262 = sphi 0, %s248
    %s266 = sphi 0, %s266
    %s268 = sphi 0, %s266
    %s269 = sphi 0, %s268
    %s283 = sphi 0, %s269
    %s291 = sphi 0, %s293
    %s294 = sphi 0, %s291
    %s295 = sphi 0, %s294
    %s311 = sphi 0, %s295
  $region4: #{decoder_layer.3} parent=0 // loop_header_branch
    %20 = sbr.rel (%p18) target = $region8
  $region5: #{decoder_layer.3} parent=0 // loop_body
    %s22 = ssub.s32 %s17, 1
    %s23 = ssub.s32 %s17, 2
    %s30 = sadd.s32 1, %s25
    %p31 = scmp.ge.s32.totalorder %s30, 1
    %s32 = scalar_select %p31, 0, %s30
    %s33 = sadd.s32 1, %s24
    %s34 = scalar_select %p31, %s33, %s24
    %p35 = scmp.ge.s32.totalorder %s34, 2
    %s36 = scalar_select %p35, 0, %s34
    %s37 = ssub.s32 %s24, %s36
    %s38 = ssub.s32 %s25, %s32
    %s39 = sor.u32 %s37, %s38
    %p40 = scmp.eq.s32.totalorder %s39, 0
    %s42 = sadd.s32 %s41, 1
    %s43 = scalar_select %p40, %s41, %s42
    %p46 = pneg %p40
    %p47 = scmp.eq.s32.totalorder %s17, 1
    %p48 = por %p46, %p47
    %p49 = scmp.ne.s32.totalorder %s41, %s44
    %p50 = scmp.eq.s32.totalorder %s17, 0
    %p51 = por %p49, %p50
    %p52 = scmp.ne.s32.totalorder %s41, %s44
    %p53 = scmp.eq.s32.totalorder %s22, 1
    %p54 = por %p52, %p53
    %p55 = scmp.ne.s32.totalorder %s44, %s45
    %p56 = scmp.eq.s32.totalorder %s22, 0
    %p57 = por %p55, %p56
    %p58 = scmp.ne.s32.totalorder %s44, %s45
    %p59 = scmp.eq.s32.totalorder %s23, 1
    %p60 = por %p58, %p59
    %p62 = scmp.ne.s32.totalorder %s45, %s61
    %p63 = scmp.eq.s32.totalorder %s23, 0
    %p64 = por %p62, %p63
    %s65 = ssub.s32 %s24, %s36
    %p66 = scmp.eq.s32.totalorder %s65, 0
    %s68 = sadd.s32 %s67, 1
    %s69 = scalar_select %p66, %s67, %s68
    %p72 = pneg %p66
    %p73 = scmp.eq.s32.totalorder %s17, 1
    %p74 = por %p72, %p73
    %p75 = scmp.ne.s32.totalorder %s67, %s70
    %p76 = scmp.eq.s32.totalorder %s17, 0
    %p77 = por %p75, %p76
    %p78 = scmp.ne.s32.totalorder %s67, %s70
    %p79 = scmp.eq.s32.totalorder %s22, 1
    %p80 = por %p78, %p79
    %p81 = scmp.ne.s32.totalorder %s70, %s71
    %p82 = scmp.eq.s32.totalorder %s22, 0
    %p83 = por %p81, %p82
    %p84 = scmp.ne.s32.totalorder %s70, %s71
    %p85 = scmp.eq.s32.totalorder %s23, 1
    %p86 = por %p84, %p85
    %p88 = scmp.ne.s32.totalorder %s71, %s87
    %p89 = scmp.eq.s32.totalorder %s23, 0
    %p90 = por %p88, %p89
    %s91 = ssub.s32 %s24, %s36
    %s92 = ssub.s32 %s25, %s32
    %s93 = sor.u32 %s91, %s92
    %p94 = scmp.eq.s32.totalorder %s93, 0
    %s96 = sadd.s32 %s95, 1
    %s97 = scalar_select %p94, %s95, %s96
    %p100 = pneg %p94
    %p101 = scmp.eq.s32.totalorder %s17, 1
    %p102 = por %p100, %p101
    %p103 = scmp.ne.s32.totalorder %s95, %s98
    %p104 = scmp.eq.s32.totalorder %s17, 0
    %p105 = por %p103, %p104
    %p106 = scmp.ne.s32.totalorder %s95, %s98
    %p107 = scmp.eq.s32.totalorder %s22, 1
    %p108 = por %p106, %p107
    %p109 = scmp.ne.s32.totalorder %s98, %s99
    %p110 = scmp.eq.s32.totalorder %s22, 0
    %p111 = por %p109, %p110
    %p112 = scmp.ne.s32.totalorder %s98, %s99
    %p113 = scmp.eq.s32.totalorder %s23, 1
    %p114 = por %p112, %p113
    %p116 = scmp.ne.s32.totalorder %s99, %s115
    %p117 = scmp.eq.s32.totalorder %s23, 0
    %p118 = por %p116, %p117
    %s120 = sadd.s32 %s119, 1
    %p123 = scmp.eq.s32.totalorder %s17, 1
    %p124 = scmp.ne.s32.totalorder %s119, %s121
    %p125 = scmp.eq.s32.totalorder %s17, 0
    %p126 = por %p124, %p125
    %p127 = scmp.ne.s32.totalorder %s119, %s121
    %p128 = scmp.eq.s32.totalorder %s22, 1
    %p129 = por %p127, %p128
    %p130 = scmp.ne.s32.totalorder %s121, %s122
    %p131 = scmp.eq.s32.totalorder %s22, 0
    %p132 = por %p130, %p131
    %p133 = scmp.ne.s32.totalorder %s121, %s122
    %p134 = scmp.eq.s32.totalorder %s23, 1
    %p135 = por %p133, %p134
    %p137 = scmp.ne.s32.totalorder %s122, %s136
    %p138 = scmp.eq.s32.totalorder %s23, 0
    %p139 = por %p137, %p138
    %s141 = sadd.s32 %s140, 1
    %p144 = scmp.eq.s32.totalorder %s17, 1
    %p145 = scmp.ne.s32.totalorder %s140, %s142
    %p146 = scmp.eq.s32.totalorder %s17, 0
    %p147 = por %p145, %p146
    %p148 = scmp.ne.s32.totalorder %s140, %s142
    %p149 = scmp.eq.s32.totalorder %s22, 1
    %p150 = por %p148, %p149
    %p151 = scmp.ne.s32.totalorder %s142, %s143
    %p152 = scmp.eq.s32.totalorder %s22, 0
    %p153 = por %p151, %p152
    %p154 = scmp.ne.s32.totalorder %s142, %s143
    %p155 = scmp.eq.s32.totalorder %s23, 1
    %p156 = por %p154, %p155
    %p158 = scmp.ne.s32.totalorder %s143, %s157
    %p159 = scmp.eq.s32.totalorder %s23, 0
    %p160 = por %p158, %p159
    %s162 = sadd.s32 %s161, 1
    %p165 = scmp.eq.s32.totalorder %s17, 1
    %p166 = scmp.ne.s32.totalorder %s161, %s163
    %p167 = scmp.eq.s32.totalorder %s17, 0
    %p168 = por %p166, %p167
    %p169 = scmp.ne.s32.totalorder %s161, %s163
    %p170 = scmp.eq.s32.totalorder %s22, 1
    %p171 = por %p169, %p170
    %p172 = scmp.ne.s32.totalorder %s163, %s164
    %p173 = scmp.eq.s32.totalorder %s22, 0
    %p174 = por %p172, %p173
    %p175 = scmp.ne.s32.totalorder %s163, %s164
    %p176 = scmp.eq.s32.totalorder %s23, 1
    %p177 = por %p175, %p176
    %p179 = scmp.ne.s32.totalorder %s164, %s178
    %p180 = scmp.eq.s32.totalorder %s23, 0
    %p181 = por %p179, %p180
    %s183 = sadd.s32 %s182, 1
    %p186 = scmp.eq.s32.totalorder %s17, 1
    %p187 = scmp.ne.s32.totalorder %s182, %s184
    %p188 = scmp.eq.s32.totalorder %s17, 0
    %p189 = por %p187, %p188
    %p190 = scmp.ne.s32.totalorder %s182, %s184
    %p191 = scmp.eq.s32.totalorder %s22, 1
    %p192 = por %p190, %p191
    %p193 = scmp.ne.s32.totalorder %s184, %s185
    %p194 = scmp.eq.s32.totalorder %s22, 0
    %p195 = por %p193, %p194
    %p196 = scmp.ne.s32.totalorder %s184, %s185
    %p197 = scmp.eq.s32.totalorder %s23, 1
    %p198 = por %p196, %p197
    %p200 = scmp.ne.s32.totalorder %s185, %s199
    %p201 = scmp.eq.s32.totalorder %s23, 0
    %p202 = por %p200, %p201
    %s204 = sadd.s32 %s203, 1
    %p207 = scmp.eq.s32.totalorder %s17, 1
    %p208 = scmp.ne.s32.totalorder %s203, %s205
    %p209 = scmp.eq.s32.totalorder %s17, 0
    %p210 = por %p208, %p209
    %p211 = scmp.ne.s32.totalorder %s203, %s205
    %p212 = scmp.eq.s32.totalorder %s22, 1
    %p213 = por %p211, %p212
    %p214 = scmp.ne.s32.totalorder %s205, %s206
    %p215 = scmp.eq.s32.totalorder %s22, 0
    %p216 = por %p214, %p215
    %p217 = scmp.ne.s32.totalorder %s205, %s206
    %p218 = scmp.eq.s32.totalorder %s23, 1
    %p219 = por %p217, %p218
    %p221 = scmp.ne.s32.totalorder %s206, %s220
    %p222 = scmp.eq.s32.totalorder %s23, 0
    %p223 = por %p221, %p222
    %s225 = sadd.s32 %s224, 1
    %p228 = scmp.eq.s32.totalorder %s17, 1
    %p229 = scmp.ne.s32.totalorder %s224, %s226
    %p230 = scmp.eq.s32.totalorder %s17, 0
    %p231 = por %p229, %p230
    %p232 = scmp.ne.s32.totalorder %s224, %s226
    %p233 = scmp.eq.s32.totalorder %s22, 1
    %p234 = por %p232, %p233
    %p235 = scmp.ne.s32.totalorder %s226, %s227
    %p236 = scmp.eq.s32.totalorder %s22, 0
    %p237 = por %p235, %p236
    %p238 = scmp.ne.s32.totalorder %s226, %s227
    %p239 = scmp.eq.s32.totalorder %s23, 1
    %p240 = por %p238, %p239
    %p242 = scmp.ne.s32.totalorder %s227, %s241
    %p243 = scmp.eq.s32.totalorder %s23, 0
    %p244 = por %p242, %p243
    %s246 = sadd.s32 %s245, 1
    %p249 = scmp.eq.s32.totalorder %s17, 1
    %p250 = scmp.ne.s32.totalorder %s245, %s247
    %p251 = scmp.eq.s32.totalorder %s17, 0
    %p252 = por %p250, %p251
    %p253 = scmp.ne.s32.totalorder %s245, %s247
    %p254 = scmp.eq.s32.totalorder %s22, 1
    %p255 = por %p253, %p254
    %p256 = scmp.ne.s32.totalorder %s247, %s248
    %p257 = scmp.eq.s32.totalorder %s22, 0
    %p258 = por %p256, %p257
    %p259 = scmp.ne.s32.totalorder %s247, %s248
    %p260 = scmp.eq.s32.totalorder %s23, 1
    %p261 = por %p259, %p260
    %p263 = scmp.ne.s32.totalorder %s248, %s262
    %p264 = scmp.eq.s32.totalorder %s23, 0
    %p265 = por %p263, %p264
    %s267 = sadd.s32 %s266, 1
    %p270 = scmp.eq.s32.totalorder %s17, 1
    %p271 = scmp.ne.s32.totalorder %s266, %s268
    %p272 = scmp.eq.s32.totalorder %s17, 0
    %p273 = por %p271, %p272
    %p274 = scmp.ne.s32.totalorder %s266, %s268
    %p275 = scmp.eq.s32.totalorder %s22, 1
    %p276 = por %p274, %p275
    %p277 = scmp.ne.s32.totalorder %s268, %s269
    %p278 = scmp.eq.s32.totalorder %s22, 0
    %p279 = por %p277, %p278
    %p280 = scmp.ne.s32.totalorder %s268, %s269
    %p281 = scmp.eq.s32.totalorder %s23, 1
    %p282 = por %p280, %p281
    %p284 = scmp.ne.s32.totalorder %s269, %s283
    %p285 = scmp.eq.s32.totalorder %s23, 0
    %p286 = por %p284, %p285
    %s287 = ssub.s32 %s24, %s36
    %s288 = ssub.s32 %s25, %s32
    %s289 = sor.u32 %s287, %s288
    %p290 = scmp.eq.s32.totalorder %s289, 0
    %s292 = sadd.s32 %s291, 1
    %s293 = scalar_select %p290, %s291, %s292
    %p296 = pneg %p290
    %p297 = scmp.eq.s32.totalorder %s17, 1
    %p298 = por %p296, %p297
    %p299 = scmp.ne.s32.totalorder %s291, %s294
    %p300 = scmp.eq.s32.totalorder %s17, 0
    %p301 = por %p299, %p300
    %p302 = scmp.ne.s32.totalorder %s291, %s294
    %p303 = scmp.eq.s32.totalorder %s22, 1
    %p304 = por %p302, %p303
    %p305 = scmp.ne.s32.totalorder %s294, %s295
    %p306 = scmp.eq.s32.totalorder %s22, 0
    %p307 = por %p305, %p306
    %p308 = scmp.ne.s32.totalorder %s294, %s295
    %p309 = scmp.eq.s32.totalorder %s23, 1
    %p310 = por %p308, %p309
    %p312 = scmp.ne.s32.totalorder %s295, %s311
    %p313 = scmp.eq.s32.totalorder %s23, 0
    %p314 = por %p312, %p313
    %p315 = scmp.le.s32.totalorder 1, %s17
    %p316 = scmp.lt.s32.totalorder %s17, 3
    %p317 = pnand %p315, %p316
    %p318 = pneg %p317
    // Predicated region
    $region9: #{decoder_layer.3} parent=5 // pred_check
      _
    $region10: #{decoder_layer.3} parent=5 // pred_check_branch
      %320 = sbr.rel (%p317) target = $region12
    $region11: #{decoder_layer.3} parent=5 // pred_region
      %s321 = ssub.s32 %s17, 1
      // Predicated region
      $region13: #{decoder_layer.3} parent=11 // pred_check
        %p322 = pneg %p132
      $region14: #{decoder_layer.3} parent=11 // pred_check_branch
        %324 = sbr.rel (%p322) target = $region16
      $region15: #{decoder_layer.3} parent=11 // pred_region
        _
      $region16: #{decoder_layer.3} parent=11 // pred_fallthru
        _
      // Predicated region
      $region17: #{decoder_layer.3} parent=11 // pred_check
        %p325 = pneg %p153
      $region18: #{decoder_layer.3} parent=11 // pred_check_branch
        %327 = sbr.rel (%p325) target = $region20
      $region19: #{decoder_layer.3} parent=11 // pred_region
        _
      $region20: #{decoder_layer.3} parent=11 // pred_fallthru
        _
      // Predicated region
      $region21: #{decoder_layer.3} parent=11 // pred_check
        %p328 = pneg %p174
      $region22: #{decoder_layer.3} parent=11 // pred_check_branch
        %330 = sbr.rel (%p328) target = $region24
      $region23: #{decoder_layer.3} parent=11 // pred_region
        _
      $region24: #{decoder_layer.3} parent=11 // pred_fallthru
        _
      // Predicated region
      $region25: #{decoder_layer.3} parent=11 // pred_check
        %p331 = pneg %p195
      $region26: #{decoder_layer.3} parent=11 // pred_check_branch
        %333 = sbr.rel (%p331) target = $region28
      $region27: #{decoder_layer.3} parent=11 // pred_region
        _
      $region28: #{decoder_layer.3} parent=11 // pred_fallthru
        _
      // Predicated region
      $region29: #{decoder_layer.3} parent=11 // pred_check
        %p334 = pneg %p216
      $region30: #{decoder_layer.3} parent=11 // pred_check_branch
        %336 = sbr.rel (%p334) target = $region32
      $region31: #{decoder_layer.3} parent=11 // pred_region
        _
      $region32: #{decoder_layer.3} parent=11 // pred_fallthru
        _
      // Predicated region
      $region33: #{decoder_layer.3} parent=11 // pred_check
        %p337 = pneg %p237
      $region34: #{decoder_layer.3} parent=11 // pred_check_branch
        %339 = sbr.rel (%p337) target = $region36
      $region35: #{decoder_layer.3} parent=11 // pred_region
        _
      $region36: #{decoder_layer.3} parent=11 // pred_fallthru
        _
      // Predicated region
      $region37: #{decoder_layer.3} parent=11 // pred_check
        %p340 = pneg %p258
      $region38: #{decoder_layer.3} parent=11 // pred_check_branch
        %342 = sbr.rel (%p340) target = $region40
      $region39: #{decoder_layer.3} parent=11 // pred_region
        _
      $region40: #{decoder_layer.3} parent=11 // pred_fallthru
        _
      // Predicated region
      $region41: #{decoder_layer.3} parent=11 // pred_check
        %p343 = pneg %p279
      $region42: #{decoder_layer.3} parent=11 // pred_check_branch
        %345 = sbr.rel (%p343) target = $region44
      $region43: #{decoder_layer.3} parent=11 // pred_region
        _
      $region44: #{decoder_layer.3} parent=11 // pred_fallthru
        _
    $region12: #{decoder_layer.3} parent=5 // pred_fallthru
      _
    %p346 = scmp.lt.s32.totalorder %s17, 2
    // Predicated region
    $region45: #{decoder_layer.3} parent=5 // pred_check
      %p347 = pneg %p346
    $region46: #{decoder_layer.3} parent=5 // pred_check_branch
      %349 = sbr.rel (%p347) target = $region48
    $region47: #{decoder_layer.3} parent=5 // pred_region
      // Predicated region
      $region49: #{decoder_layer.3} parent=47 // pred_check
        %p350 = pneg %p51
      $region50: #{decoder_layer.3} parent=47 // pred_check_branch
        %352 = sbr.rel (%p350) target = $region52
      $region51: #{decoder_layer.3} parent=47 // pred_region
        %p353 = scmp.lt.s32.totalorder %s24, 1
        %s354 = scalar_select %p353, %s24, 1
        %p355 = scmp.lt.s32.totalorder %s25, 0
        %s356 = scalar_select %p355, %s25, 0
        %s357 = sadd.s32 %s356, %s354
        %s358 = smul.addr %s357, 8
        %s359 = scalar_lea.vmem %s0, %s358
      $region52: #{decoder_layer.3} parent=47 // pred_fallthru
        _
      // Predicated region
      $region53: #{decoder_layer.3} parent=47 // pred_check
        %p360 = pneg %p77
      $region54: #{decoder_layer.3} parent=47 // pred_check_branch
        %362 = sbr.rel (%p360) target = $region56
      $region55: #{decoder_layer.3} parent=47 // pred_region
        %p363 = scmp.lt.s32.totalorder %s24, 1
        %s364 = scalar_select %p363, %s24, 1
        %s365 = smul.addr %s364, 8
        %s366 = scalar_lea.vmem %s1, %s365
      $region56: #{decoder_layer.3} parent=47 // pred_fallthru
        _
      // Predicated region
      $region57: #{decoder_layer.3} parent=47 // pred_check
        %p367 = pneg %p105
      $region58: #{decoder_layer.3} parent=47 // pred_check_branch
        %369 = sbr.rel (%p367) target = $region60
      $region59: #{decoder_layer.3} parent=47 // pred_region
        %p370 = scmp.lt.s32.totalorder %s24, 1
        %s371 = scalar_select %p370, %s24, 1
        %p372 = scmp.lt.s32.totalorder %s25, 0
        %s373 = scalar_select %p372, %s25, 0
        %s374 = sadd.s32 %s373, %s371
        %s375 = smul.addr %s374, 8
        %s376 = scalar_lea.vmem %s2, %s375
      $region60: #{decoder_layer.3} parent=47 // pred_fallthru
        _
    $region48: #{decoder_layer.3} parent=5 // pred_fallthru
      _
    %p377 = scmp.le.s32.totalorder 1, %s17
    %p378 = scmp.lt.s32.totalorder %s17, 3
    %p379 = pnand %p377, %p378
    %p380 = pneg %p379
    // Predicated region
    $region61: #{decoder_layer.3} parent=5 // pred_check
      _
    $region62: #{decoder_layer.3} parent=5 // pred_check_branch
      %382 = sbr.rel (%p379) target = $region64
    $region63: #{decoder_layer.3} parent=5 // pred_region
      %s383 = ssub.s32 %s17, 1
      %p384 = scmp.lt.s32.totalorder %s26, 1
      %s385 = scalar_select %p384, %s26, 1
      %p386 = scmp.lt.s32.totalorder %s27, 0
      %s387 = scalar_select %p386, %s27, 0
      %s388 = sadd.s32 %s387, %s385
      %s389 = smul.addr %s388, 8
      %s390 = scalar_lea.vmem %s0, %s389
      %p391 = pneg %p57
      %p392 = pneg %p54
      %p393 = scmp.lt.s32.totalorder %s26, 1
      %s394 = scalar_select %p393, %s26, 1
      %s395 = smul.addr %s394, 8
      %s396 = scalar_lea.vmem %s1, %s395
      %p397 = pneg %p83
      %p398 = pneg %p80
      %p399 = scmp.lt.s32.totalorder %s26, 1
      %s400 = scalar_select %p399, %s26, 1
      %p401 = scmp.lt.s32.totalorder %s27, 0
      %s402 = scalar_select %p401, %s27, 0
      %s403 = sadd.s32 %s402, %s400
      %s404 = smul.addr %s403, 8
      %s405 = scalar_lea.vmem %s2, %s404
      %p406 = pneg %p111
      %p407 = pneg %p108
      %p408 = pneg %p132
      %p409 = pneg %p129
      %p410 = pneg %p153
      %p411 = pneg %p150
      %p412 = pneg %p174
      %p413 = pneg %p171
      %p414 = pneg %p195
      %p415 = pneg %p192
      %p416 = pneg %p216
      %p417 = pneg %p213
      %p418 = pneg %p237
      %p419 = pneg %p234
      %p420 = pneg %p258
      %p421 = pneg %p255
      %p422 = pneg %p279
      %p423 = pneg %p276
      %p424 = pneg %p307
      %p425 = pneg %p304
      %p426 = scmp.lt.s32.totalorder %s26, 1
      %s427 = scalar_select %p426, %s26, 1
      %p428 = scmp.lt.s32.totalorder %s27, 0
      %s429 = scalar_select %p428, %s27, 0
      %s430 = sadd.s32 %s429, %s427
      %s431 = smul.addr %s430, 8
      %s432 = scalar_lea.vmem %s11, %s431
      %p433 = scmp.lt.s32.totalorder %s26, 1
      %s434 = scalar_select %p433, %s26, 1
      %p435 = scmp.lt.s32.totalorder %s27, 0
      %s436 = scalar_select %p435, %s27, 0
      %s437 = sadd.s32 %s436, %s434
      %s438 = smul.addr %s437, 8
      %s439 = scalar_lea.vmem %s0, %s438
      %p440 = scmp.lt.s32.totalorder %s26, 1
      %s441 = scalar_select %p440, %s26, 1
      %s442 = smul.addr %s441, 8
      %s443 = scalar_lea.vmem %s1, %s442
      %p444 = scmp.lt.s32.totalorder %s26, 1
      %s445 = scalar_select %p444, %s26, 1
      %p446 = scmp.lt.s32.totalorder %s27, 0
      %s447 = scalar_select %p446, %s27, 0
      %s448 = sadd.s32 %s447, %s445
      %s449 = smul.addr %s448, 8
      %s450 = scalar_lea.vmem %s2, %s449
      %p451 = scmp.lt.s32.totalorder %s26, 1
      %s452 = scalar_select %p451, %s26, 1
      %p453 = scmp.lt.s32.totalorder %s27, 0
      %s454 = scalar_select %p453, %s27, 0
      %s455 = sadd.s32 %s454, %s452
      %s456 = smul.addr %s455, 8
      %s457 = scalar_lea.vmem %s11, %s456
      %v458 = vld [vmem:[%s439] sm:$0xff]
      %v459 = vld [vmem:[%s3] sm:$0x1]
      %v460 = vld [vmem:[%s4] sm:$0x1]
      %vm461 = vcmask 261120
      %v462 = vsel %vm461, %v458, 0.0
      %463 = vadd.xlane.f32.xlu0 %v462
      %v464 = vpop.xlane.xlu0 %463
      %v465 = vrcp.pop 32.0
      %v466 = vmul.f32 %v464, %v465
      %v467 = vsub.f32 %v458, %v466
      %v468 = vmul.f32 %v467, %v467
      %v469 = vsel %vm461, %v468, 0.0
      %470 = vadd.xlane.f32.xlu0 %v469
      %v471 = vpop.xlane.xlu0 %470
      %v472 = vmul.f32 %v471, %v465
      %v473 = vadd.f32 %v472, 1e-05
      %v474 = vrsqrt.pop %v473
      %v475 = vmul.f32 %v467, %v474
      %v477 = vlaneseq
      %v478 = vshrl.u32 %v477, 7
      %v479 = vsub.s32 0, %v478
      %v480 = vrot.slane %v459, %v479
      %v482 = vmul.f32 %v475, %v480
      %v484 = vlaneseq
      %v485 = vshrl.u32 %v484, 7
      %v486 = vsub.s32 0, %v485
      %v487 = vrot.slane %v460, %v486
      %v489 = vadd.f32 %v482, %v487
      %v490 = vld [vmem:[%s443] sm:$0xff]
      %v491 = vsel %vm461, %v490, 0.0
      %492 = vadd.xlane.f32.xlu0 %v491
      %v493 = vpop.xlane.xlu0 %492
      %v494 = vmul.f32 %v493, %v465
      %v495 = vsub.f32 %v490, %v494
      %v496 = vmul.f32 %v495, %v495
      %v497 = vsel %vm461, %v496, 0.0
      %498 = vadd.xlane.f32.xlu0 %v497
      %v499 = vpop.xlane.xlu0 %498
      %v500 = vmul.f32 %v499, %v465
      %v501 = vadd.f32 %v500, 1e-05
      %v502 = vrsqrt.pop %v501
      %v503 = vmul.f32 %v495, %v502
      %v504 = vmul.f32 %v503, %v480
      %v505 = vadd.f32 %v504, %v487
      %v506 = vld [vmem:[%s5] sm:$0xff]
      %v507 = vld [vmem:[%s5 + $0x8] sm:$0xff]
      %v508 = vld [vmem:[%s5 + $0x10] sm:$0xff]
      %v509 = vld [vmem:[%s5 + $0x18] sm:$0xff]
      %v510 = vld [vmem:[%s6] sm:$0x1]
      %v512 = vlaneseq
      %v513 = vshrl.u32 %v512, 7
      %v514 = vsub.s32 0, %v513
      %v515 = vrot.slane %v510, %v514
      %v518 = vsel %vm461, %v489, 0
      %520 = vmatprep.subr.mxu0 0.0
      %521 = vmatpush1.msra.mxu0 %v506
      %522 = vmatprep.subr.mxu0 0.0
      %523 = vmatpush1.msra.mxu0 %v507
      %524 = vmatprep.subr.mxu0 0.0
      %525 = vmatpush1.msra.mxu0 %v508
      %526 = vmatprep.subr.mxu0 0.0
      %527 = vmatpush1.msra.mxu0 %v509
      %528 = vmatprep.subr.mxu0 0.0
      %529 = vmatpush1.msra.mxu0 0.0
      %530 = vmatprep.subr.mxu0 0.0
      %531 = vmatpush1.msra.mxu0 0.0
      %532 = vmatprep.subr.mxu0 0.0
      %533 = vmatpush1.msra.mxu0 0.0
      %534 = vmatprep.subr.mxu0 0.0
      %535 = vmatpush1.msra.mxu0 0.0
      %536 = vmatprep.subr.mxu0 0.0
      %537 = vmatpush1.msra.mxu0 0.0
      %538 = vmatprep.subr.mxu0 0.0
      %539 = vmatpush1.msra.mxu0 0.0
      %540 = vmatprep.subr.mxu0 0.0
      %541 = vmatpush1.msra.mxu0 0.0
      %542 = vmatprep.subr.mxu0 0.0
      %543 = vmatpush1.msra.mxu0 0.0
      %544 = vmatprep.subr.mxu0 0.0
      %545 = vmatpush1.msra.mxu0 0.0
      %546 = vmatprep.subr.mxu0 0.0
      %547 = vmatpush1.msra.mxu0 0.0
      %548 = vmatprep.subr.mxu0 0.0
      %549 = vmatpush1.msra.mxu0 0.0
      %550 = vmatprep.subr.mxu0 0.0
      %551 = vmatpush1.msra.mxu0 0.0
      %552 = vmatprep.subr.mxu0 0.0
      %553 = vmatpush1.msra.mxu0 0.0
      %554 = vmatprep.subr.mxu0 0.0
      %555 = vmatpush1.msra.mxu0 0.0
      %556 = vmatprep.subr.mxu0 0.0
      %557 = vmatpush1.msra.mxu0 0.0
      %558 = vmatprep.subr.mxu0 0.0
      %559 = vmatpush1.msra.mxu0 0.0
      %560 = vmatprep.subr.mxu0 0.0
      %561 = vmatpush1.msra.mxu0 0.0
      %562 = vmatprep.subr.mxu0 0.0
      %563 = vmatpush1.msra.mxu0 0.0
      %564 = vmatprep.subr.mxu0 0.0
      %565 = vmatpush1.msra.mxu0 0.0
      %566 = vmatprep.subr.mxu0 0.0
      %567 = vmatpush1.msra.mxu0 0.0
      %568 = vmatprep.subr.mxu0 0.0
      %569 = vmatpush1.msra.mxu0 0.0
      %570 = vmatprep.subr.mxu0 0.0
      %571 = vmatpush1.msra.mxu0 0.0
      %572 = vmatprep.subr.mxu0 0.0
      %573 = vmatpush1.msra.mxu0 0.0
      %574 = vmatprep.subr.mxu0 0.0
      %575 = vmatpush1.msra.mxu0 0.0
      %576 = vmatprep.subr.mxu0 0.0
      %577 = vmatpush1.msra.mxu0 0.0
      %578 = vmatprep.subr.mxu0 0.0
      %579 = vmatpush1.msra.mxu0 0.0
      %580 = vmatprep.subr.mxu0 0.0
      %581 = vmatpush1.msra.mxu0 0.0
      %582 = vmatprep.subr.mxu0 0.0
      %583 = vmatpush1.msra.mxu0 0.0
      %584 = vmatprep.mubr.f32.mxu0 0.0
      %585 = vmatmul.mubr.f32.gmra.mrb[0].mxu0 %v518
      %v586 = vpop.f32.mrb[0].mxu0
      %v587 = vadd.f32 %v515, %v586
      %v588 = vpop.f32.mrb[0].mxu0
      %589 = vdwg.mxu0
      %v590 = vmul.f32 %v587, 0.35355338
      %v591 = vld [vmem:[%s7] sm:$0xff]
      %v592 = vld [vmem:[%s7 + $0x8] sm:$0xff]
      %v593 = vld [vmem:[%s7 + $0x10] sm:$0xff]
      %v594 = vld [vmem:[%s7 + $0x18] sm:$0xff]
      %v595 = vld [vmem:[%s8] sm:$0x1]
      %v597 = vlaneseq
      %v598 = vshrl.u32 %v597, 7
      %v599 = vsub.s32 0, %v598
      %v600 = vrot.slane %v595, %v599
      %v603 = vsel %vm461, %v505, 0
      %605 = vmatprep.subr.mxu0 0.0
      %606 = vmatpush1.msra.mxu0 %v591
      %607 = vmatprep.subr.mxu0 0.0
      %608 = vmatpush1.msra.mxu0 %v592
      %609 = vmatprep.subr.mxu0 0.0
      %610 = vmatpush1.msra.mxu0 %v593
      %611 = vmatprep.subr.mxu0 0.0
      %612 = vmatpush1.msra.mxu0 %v594
      %613 = vmatprep.subr.mxu0 0.0
      %614 = vmatpush1.msra.mxu0 0.0
      %615 = vmatprep.subr.mxu0 0.0
      %616 = vmatpush1.msra.mxu0 0.0
      %617 = vmatprep.subr.mxu0 0.0
      %618 = vmatpush1.msra.mxu0 0.0
      %619 = vmatprep.subr.mxu0 0.0
      %620 = vmatpush1.msra.mxu0 0.0
      %621 = vmatprep.subr.mxu0 0.0
      %622 = vmatpush1.msra.mxu0 0.0
      %623 = vmatprep.subr.mxu0 0.0
      %624 = vmatpush1.msra.mxu0 0.0
      %625 = vmatprep.subr.mxu0 0.0
      %626 = vmatpush1.msra.mxu0 0.0
      %627 = vmatprep.subr.mxu0 0.0
      %628 = vmatpush1.msra.mxu0 0.0
      %629 = vmatprep.subr.mxu0 0.0
      %630 = vmatpush1.msra.mxu0 0.0
      %631 = vmatprep.subr.mxu0 0.0
      %632 = vmatpush1.msra.mxu0 0.0
      %633 = vmatprep.subr.mxu0 0.0
      %634 = vmatpush1.msra.mxu0 0.0
      %635 = vmatprep.subr.mxu0 0.0
      %636 = vmatpush1.msra.mxu0 0.0
      %637 = vmatprep.subr.mxu0 0.0
      %638 = vmatpush1.msra.mxu0 0.0
      %639 = vmatprep.subr.mxu0 0.0
      %640 = vmatpush1.msra.mxu0 0.0
      %641 = vmatprep.subr.mxu0 0.0
      %642 = vmatpush1.msra.mxu0 0.0
      %643 = vmatprep.subr.mxu0 0.0
      %644 = vmatpush1.msra.mxu0 0.0
      %645 = vmatprep.subr.mxu0 0.0
      %646 = vmatpush1.msra.mxu0 0.0
      %647 = vmatprep.subr.mxu0 0.0
      %648 = vmatpush1.msra.mxu0 0.0
      %649 = vmatprep.subr.mxu0 0.0
      %650 = vmatpush1.msra.mxu0 0.0
      %651 = vmatprep.subr.mxu0 0.0
      %652 = vmatpush1.msra.mxu0 0.0
      %653 = vmatprep.subr.mxu0 0.0
      %654 = vmatpush1.msra.mxu0 0.0
      %655 = vmatprep.subr.mxu0 0.0
      %656 = vmatpush1.msra.mxu0 0.0
      %657 = vmatprep.subr.mxu0 0.0
      %658 = vmatpush1.msra.mxu0 0.0
      %659 = vmatprep.subr.mxu0 0.0
      %660 = vmatpush1.msra.mxu0 0.0
      %661 = vmatprep.subr.mxu0 0.0
      %662 = vmatpush1.msra.mxu0 0.0
      %663 = vmatprep.subr.mxu0 0.0
      %664 = vmatpush1.msra.mxu0 0.0
      %665 = vmatprep.subr.mxu0 0.0
      %666 = vmatpush1.msra.mxu0 0.0
      %667 = vmatprep.subr.mxu0 0.0
      %668 = vmatpush1.msra.mxu0 0.0
      %669 = vmatprep.mubr.f32.mxu0 0.0
      %670 = vmatmul.mubr.f32.gmra.mrb[0].mxu0 %v603
      %v671 = vpop.f32.mrb[0].mxu0
      %v672 = vadd.f32 %v600, %v671
      %v673 = vpop.f32.mrb[0].mxu0
      %674 = vdwg.mxu0
      %v675 = vld [vmem:[%s450] sm:$0xff]
      %vm676 = vcmask 64512
      %v678 = vsel %vm676, %v590, 0
      %v681 = vsel %vm676, %v672, 0
      %683 = vmatprep.subr.mxu0 0.0
      %684 = vmatpush1.xpose.msra.mxu0 %v681
      %685 = vmatprep.subr.mxu0 0.0
      %686 = vmatpush1.xpose.msra.mxu0 0.0
      %687 = vmatprep.subr.mxu0 0.0
      %688 = vmatpush1.xpose.msra.mxu0 0.0
      %689 = vmatprep.subr.mxu0 0.0
      %690 = vmatpush1.xpose.msra.mxu0 0.0
      %691 = vmatprep.subr.mxu0 0.0
      %692 = vmatpush1.xpose.msra.mxu0 0.0
      %693 = vmatprep.subr.mxu0 0.0
      %694 = vmatpush1.xpose.msra.mxu0 0.0
      %695 = vmatprep.subr.mxu0 0.0
      %696 = vmatpush1.xpose.msra.mxu0 0.0
      %697 = vmatprep.subr.mxu0 0.0
      %698 = vmatpush1.xpose.msra.mxu0 0.0
      %699 = vmatprep.subr.mxu0 0.0
      %700 = vmatpush1.xpose.msra.mxu0 0.0
      %701 = vmatprep.subr.mxu0 0.0
      %702 = vmatpush1.xpose.msra.mxu0 0.0
      %703 = vmatprep.subr.mxu0 0.0
      %704 = vmatpush1.xpose.msra.mxu0 0.0
      %705 = vmatprep.subr.mxu0 0.0
      %706 = vmatpush1.xpose.msra.mxu0 0.0
      %707 = vmatprep.subr.mxu0 0.0
      %708 = vmatpush1.xpose.msra.mxu0 0.0
      %709 = vmatprep.subr.mxu0 0.0
      %710 = vmatpush1.xpose.msra.mxu0 0.0
      %711 = vmatprep.subr.mxu0 0.0
      %712 = vmatpush1.xpose.msra.mxu0 0.0
      %713 = vmatprep.subr.mxu0 0.0
      %714 = vmatpush1.xpose.msra.mxu0 0.0
      %715 = vmatprep.subr.mxu0 0.0
      %716 = vmatpush1.xpose.msra.mxu0 0.0
      %717 = vmatprep.subr.mxu0 0.0
      %718 = vmatpush1.xpose.msra.mxu0 0.0
      %719 = vmatprep.subr.mxu0 0.0
      %720 = vmatpush1.xpose.msra.mxu0 0.0
      %721 = vmatprep.subr.mxu0 0.0
      %722 = vmatpush1.xpose.msra.mxu0 0.0
      %723 = vmatprep.subr.mxu0 0.0
      %724 = vmatpush1.xpose.msra.mxu0 0.0
      %725 = vmatprep.subr.mxu0 0.0
      %726 = vmatpush1.xpose.msra.mxu0 0.0
      %727 = vmatprep.subr.mxu0 0.0
      %728 = vmatpush1.xpose.msra.mxu0 0.0
      %729 = vmatprep.subr.mxu0 0.0
      %730 = vmatpush1.xpose.msra.mxu0 0.0
      %731 = vmatprep.subr.mxu0 0.0
      %732 = vmatpush1.xpose.msra.mxu0 0.0
      %733 = vmatprep.subr.mxu0 0.0
      %734 = vmatpush1.xpose.msra.mxu0 0.0
      %735 = vmatprep.subr.mxu0 0.0
      %736 = vmatpush1.xpose.msra.mxu0 0.0
      %737 = vmatprep.subr.mxu0 0.0
      %738 = vmatpush1.xpose.msra.mxu0 0.0
      %739 = vmatprep.subr.mxu0 0.0
      %740 = vmatpush1.xpose.msra.mxu0 0.0
      %741 = vmatprep.subr.mxu0 0.0
      %742 = vmatpush1.xpose.msra.mxu0 0.0
      %743 = vmatprep.subr.mxu0 0.0
      %744 = vmatpush1.xpose.msra.mxu0 0.0
      %745 = vmatprep.subr.mxu0 0.0
      %746 = vmatpush1.xpose.msra.mxu0 0.0
      %747 = vmatprep.mubr.f32.mxu0 0.0
      %748 = vmatmul.mubr.f32.gmra.mrb[0].mxu0 %v678
      %v749 = vpop.f32.mrb[0].mxu0
      %v750 = vadd.f32 %v675, %v749
      %v751 = vpop.f32.mrb[0].mxu0
      %752 = vdwg.mxu0
      %v753 = vsel %vm676, %v750, -inf
      %754 = vmax.xlane.f32.xlu0 %v753
      %v755 = vpop.xlane.xlu0 %754
      %v756 = vsub.f32 %v750, %v755
      %v757 = vmul.f32 %v756, 1.442695
      %v758 = vpow.pop %v757
      %v759 = vsel %vm676, %v758, 0.0
      %760 = vadd.xlane.f32.xlu0 %v759
      %v761 = vpop.xlane.xlu0 %760
      %v762 = vrcp.pop %v761
      %v763 = vmul.f32 %v758, %v762
      %764 = vrot.lane.b32.xlu0 %v672, 96
      %v765 = vpop.permute.xlu0 %764
      %v768 = vsel %vm676, %v763, 0
      %770 = vmatprep.subr.mxu0 0.0
      %771 = vmatpush1.msra.mxu0 %v765
      %772 = vmatprep.subr.mxu0 0.0
      %773 = vmatpush1.msra.mxu0 0.0
      %774 = vmatprep.subr.mxu0 0.0
      %775 = vmatpush1.msra.mxu0 0.0
      %776 = vmatprep.subr.mxu0 0.0
      %777 = vmatpush1.msra.mxu0 0.0
      %778 = vmatprep.subr.mxu0 0.0
      %779 = vmatpush1.msra.mxu0 0.0
      %780 = vmatprep.subr.mxu0 0.0
      %781 = vmatpush1.msra.mxu0 0.0
      %782 = vmatprep.subr.mxu0 0.0
      %783 = vmatpush1.msra.mxu0 0.0
      %784 = vmatprep.subr.mxu0 0.0
      %785 = vmatpush1.msra.mxu0 0.0
      %786 = vmatprep.subr.mxu0 0.0
      %787 = vmatpush1.msra.mxu0 0.0
      %788 = vmatprep.subr.mxu0 0.0
      %789 = vmatpush1.msra.mxu0 0.0
      %790 = vmatprep.subr.mxu0 0.0
      %791 = vmatpush1.msra.mxu0 0.0
      %792 = vmatprep.subr.mxu0 0.0
      %793 = vmatpush1.msra.mxu0 0.0
      %794 = vmatprep.subr.mxu0 0.0
      %795 = vmatpush1.msra.mxu0 0.0
      %796 = vmatprep.subr.mxu0 0.0
      %797 = vmatpush1.msra.mxu0 0.0
      %798 = vmatprep.subr.mxu0 0.0
      %799 = vmatpush1.msra.mxu0 0.0
      %800 = vmatprep.subr.mxu0 0.0
      %801 = vmatpush1.msra.mxu0 0.0
      %802 = vmatprep.subr.mxu0 0.0
      %803 = vmatpush1.msra.mxu0 0.0
      %804 = vmatprep.subr.mxu0 0.0
      %805 = vmatpush1.msra.mxu0 0.0
      %806 = vmatprep.subr.mxu0 0.0
      %807 = vmatpush1.msra.mxu0 0.0
      %808 = vmatprep.subr.mxu0 0.0
      %809 = vmatpush1.msra.mxu0 0.0
      %810 = vmatprep.subr.mxu0 0.0
      %811 = vmatpush1.msra.mxu0 0.0
      %812 = vmatprep.subr.mxu0 0.0
      %813 = vmatpush1.msra.mxu0 0.0
      %814 = vmatprep.subr.mxu0 0.0
      %815 = vmatpush1.msra.mxu0 0.0
      %816 = vmatprep.subr.mxu0 0.0
      %817 = vmatpush1.msra.mxu0 0.0
      %818 = vmatprep.subr.mxu0 0.0
      %819 = vmatpush1.msra.mxu0 0.0
      %820 = vmatprep.subr.mxu0 0.0
      %821 = vmatpush1.msra.mxu0 0.0
      %822 = vmatprep.subr.mxu0 0.0
      %823 = vmatpush1.msra.mxu0 0.0
      %824 = vmatprep.subr.mxu0 0.0
      %825 = vmatpush1.msra.mxu0 0.0
      %826 = vmatprep.subr.mxu0 0.0
      %827 = vmatpush1.msra.mxu0 0.0
      %828 = vmatprep.subr.mxu0 0.0
      %829 = vmatpush1.msra.mxu0 0.0
      %830 = vmatprep.subr.mxu0 0.0
      %831 = vmatpush1.msra.mxu0 0.0
      %832 = vmatprep.subr.mxu0 0.0
      %833 = vmatpush1.msra.mxu0 0.0
      %834 = vmatprep.mubr.f32.mxu0 0.0
      %835 = vmatmul.mubr.f32.gmra.mrb[0].mxu0 %v768
      %v836 = vpop.f32.mrb[0].mxu0
      %v837 = vadd.f32 0.0, %v836
      %v838 = vpop.f32.mrb[0].mxu0
      %839 = vdwg.mxu0
      %840 = vrot.lane.b32.xlu0 %v590, 120
      %v841 = vpop.permute.xlu0 %840
      %842 = vrot.lane.b32.xlu0 %v672, 120
      %v843 = vpop.permute.xlu0 %842
      %v844 = vsel %vm676, %v841, 0
      %v846 = vsel %vm676, %v843, 0
      %848 = vmatprep.subr.mxu0 0.0
      %849 = vmatpush1.xpose.msra.mxu0 %v846
      %850 = vmatprep.subr.mxu0 0.0
      %851 = vmatpush1.xpose.msra.mxu0 0.0
      %852 = vmatprep.subr.mxu0 0.0
      %853 = vmatpush1.xpose.msra.mxu0 0.0
      %854 = vmatprep.subr.mxu0 0.0
      %855 = vmatpush1.xpose.msra.mxu0 0.0
      %856 = vmatprep.subr.mxu0 0.0
      %857 = vmatpush1.xpose.msra.mxu0 0.0
      %858 = vmatprep.subr.mxu0 0.0
      %859 = vmatpush1.xpose.msra.mxu0 0.0
      %860 = vmatprep.subr.mxu0 0.0
      %861 = vmatpush1.xpose.msra.mxu0 0.0
      %862 = vmatprep.subr.mxu0 0.0
      %863 = vmatpush1.xpose.msra.mxu0 0.0
      %864 = vmatprep.subr.mxu0 0.0
      %865 = vmatpush1.xpose.msra.mxu0 0.0
      %866 = vmatprep.subr.mxu0 0.0
      %867 = vmatpush1.xpose.msra.mxu0 0.0
      %868 = vmatprep.subr.mxu0 0.0
      %869 = vmatpush1.xpose.msra.mxu0 0.0
      %870 = vmatprep.subr.mxu0 0.0
      %871 = vmatpush1.xpose.msra.mxu0 0.0
      %872 = vmatprep.subr.mxu0 0.0
      %873 = vmatpush1.xpose.msra.mxu0 0.0
      %874 = vmatprep.subr.mxu0 0.0
      %875 = vmatpush1.xpose.msra.mxu0 0.0
      %876 = vmatprep.subr.mxu0 0.0
      %877 = vmatpush1.xpose.msra.mxu0 0.0
      %878 = vmatprep.subr.mxu0 0.0
      %879 = vmatpush1.xpose.msra.mxu0 0.0
      %880 = vmatprep.subr.mxu0 0.0
      %881 = vmatpush1.xpose.msra.mxu0 0.0
      %882 = vmatprep.subr.mxu0 0.0
      %883 = vmatpush1.xpose.msra.mxu0 0.0
      %884 = vmatprep.subr.mxu0 0.0
      %885 = vmatpush1.xpose.msra.mxu0 0.0
      %886 = vmatprep.subr.mxu0 0.0
      %887 = vmatpush1.xpose.msra.mxu0 0.0
      %888 = vmatprep.subr.mxu0 0.0
      %889 = vmatpush1.xpose.msra.mxu0 0.0
      %890 = vmatprep.subr.mxu0 0.0
      %891 = vmatpush1.xpose.msra.mxu0 0.0
      %892 = vmatprep.subr.mxu0 0.0
      %893 = vmatpush1.xpose.msra.mxu0 0.0
      %894 = vmatprep.subr.mxu0 0.0
      %895 = vmatpush1.xpose.msra.mxu0 0.0
      %896 = vmatprep.subr.mxu0 0.0
      %897 = vmatpush1.xpose.msra.mxu0 0.0
      %898 = vmatprep.subr.mxu0 0.0
      %899 = vmatpush1.xpose.msra.mxu0 0.0
      %900 = vmatprep.subr.mxu0 0.0
      %901 = vmatpush1.xpose.msra.mxu0 0.0
      %902 = vmatprep.subr.mxu0 0.0
      %903 = vmatpush1.xpose.msra.mxu0 0.0
      %904 = vmatprep.subr.mxu0 0.0
      %905 = vmatpush1.xpose.msra.mxu0 0.0
      %906 = vmatprep.subr.mxu0 0.0
      %907 = vmatpush1.xpose.msra.mxu0 0.0
      %908 = vmatprep.subr.mxu0 0.0
      %909 = vmatpush1.xpose.msra.mxu0 0.0
      %910 = vmatprep.subr.mxu0 0.0
      %911 = vmatpush1.xpose.msra.mxu0 0.0
      %912 = vmatprep.mubr.f32.mxu0 0.0
      %913 = vmatmul.mubr.f32.gmra.mrb[0].mxu0 %v844
      %v914 = vpop.f32.mrb[0].mxu0
      %v915 = vadd.f32 %v675, %v914
      %v916 = vpop.f32.mrb[0].mxu0
      %917 = vdwg.mxu0
      %v918 = vsel %vm676, %v915, -inf
      %919 = vmax.xlane.f32.xlu0 %v918
      %v920 = vpop.xlane.xlu0 %919
      %v921 = vsub.f32 %v915, %v920
      %v922 = vmul.f32 %v921, 1.442695
      %v923 = vpow.pop %v922
      %v924 = vsel %vm676, %v923, 0.0
      %925 = vadd.xlane.f32.xlu0 %v924
      %v926 = vpop.xlane.xlu0 %925
      %v927 = vrcp.pop %v926
      %v928 = vmul.f32 %v923, %v927
      %929 = vrot.lane.b32.xlu0 %v672, 88
      %v930 = vpop.permute.xlu0 %929
      %v933 = vsel %vm676, %v928, 0
      %935 = vmatprep.subr.mxu0 0.0
      %936 = vmatpush1.msra.mxu0 %v930
      %937 = vmatprep.subr.mxu0 0.0
      %938 = vmatpush1.msra.mxu0 0.0
      %939 = vmatprep.subr.mxu0 0.0
      %940 = vmatpush1.msra.mxu0 0.0
      %941 = vmatprep.subr.mxu0 0.0
      %942 = vmatpush1.msra.mxu0 0.0
      %943 = vmatprep.subr.mxu0 0.0
      %944 = vmatpush1.msra.mxu0 0.0
      %945 = vmatprep.subr.mxu0 0.0
      %946 = vmatpush1.msra.mxu0 0.0
      %947 = vmatprep.subr.mxu0 0.0
      %948 = vmatpush1.msra.mxu0 0.0
      %949 = vmatprep.subr.mxu0 0.0
      %950 = vmatpush1.msra.mxu0 0.0
      %951 = vmatprep.subr.mxu0 0.0
      %952 = vmatpush1.msra.mxu0 0.0
      %953 = vmatprep.subr.mxu0 0.0
      %954 = vmatpush1.msra.mxu0 0.0
      %955 = vmatprep.subr.mxu0 0.0
      %956 = vmatpush1.msra.mxu0 0.0
      %957 = vmatprep.subr.mxu0 0.0
      %958 = vmatpush1.msra.mxu0 0.0
      %959 = vmatprep.subr.mxu0 0.0
      %960 = vmatpush1.msra.mxu0 0.0
      %961 = vmatprep.subr.mxu0 0.0
      %962 = vmatpush1.msra.mxu0 0.0
      %963 = vmatprep.subr.mxu0 0.0
      %964 = vmatpush1.msra.mxu0 0.0
      %965 = vmatprep.subr.mxu0 0.0
      %966 = vmatpush1.msra.mxu0 0.0
      %967 = vmatprep.subr.mxu0 0.0
      %968 = vmatpush1.msra.mxu0 0.0
      %969 = vmatprep.subr.mxu0 0.0
      %970 = vmatpush1.msra.mxu0 0.0
      %971 = vmatprep.subr.mxu0 0.0
      %972 = vmatpush1.msra.mxu0 0.0
      %973 = vmatprep.subr.mxu0 0.0
      %974 = vmatpush1.msra.mxu0 0.0
      %975 = vmatprep.subr.mxu0 0.0
      %976 = vmatpush1.msra.mxu0 0.0
      %977 = vmatprep.subr.mxu0 0.0
      %978 = vmatpush1.msra.mxu0 0.0
      %979 = vmatprep.subr.mxu0 0.0
      %980 = vmatpush1.msra.mxu0 0.0
      %981 = vmatprep.subr.mxu0 0.0
      %982 = vmatpush1.msra.mxu0 0.0
      %983 = vmatprep.subr.mxu0 0.0
      %984 = vmatpush1.msra.mxu0 0.0
      %985 = vmatprep.subr.mxu0 0.0
      %986 = vmatpush1.msra.mxu0 0.0
      %987 = vmatprep.subr.mxu0 0.0
      %988 = vmatpush1.msra.mxu0 0.0
      %989 = vmatprep.subr.mxu0 0.0
      %990 = vmatpush1.msra.mxu0 0.0
      %991 = vmatprep.subr.mxu0 0.0
      %992 = vmatpush1.msra.mxu0 0.0
      %993 = vmatprep.subr.mxu0 0.0
      %994 = vmatpush1.msra.mxu0 0.0
      %995 = vmatprep.subr.mxu0 0.0
      %996 = vmatpush1.msra.mxu0 0.0
      %997 = vmatprep.subr.mxu0 0.0
      %998 = vmatpush1.msra.mxu0 0.0
      %999 = vmatprep.mubr.f32.mxu0 0.0
      %1000 = vmatmul.mubr.f32.gmra.mrb[0].mxu0 %v933
      %v1001 = vpop.f32.mrb[0].mxu0
      %v1002 = vadd.f32 0.0, %v1001
      %v1003 = vpop.f32.mrb[0].mxu0
      %1004 = vdwg.mxu0
      %1005 = vrot.lane.b32.xlu0 %v590, 112
      %v1006 = vpop.permute.xlu0 %1005
      %1007 = vrot.lane.b32.xlu0 %v672, 112
      %v1008 = vpop.permute.xlu0 %1007
      %v1009 = vsel %vm676, %v1006, 0
      %v1011 = vsel %vm676, %v1008, 0
      %1013 = vmatprep.subr.mxu0 0.0
      %1014 = vmatpush1.xpose.msra.mxu0 %v1011
      %1015 = vmatprep.subr.mxu0 0.0
      %1016 = vmatpush1.xpose.msra.mxu0 0.0
      %1017 = vmatprep.subr.mxu0 0.0
      %1018 = vmatpush1.xpose.msra.mxu0 0.0
      %1019 = vmatprep.subr.mxu0 0.0
      %1020 = vmatpush1.xpose.msra.mxu0 0.0
      %1021 = vmatprep.subr.mxu0 0.0
      %1022 = vmatpush1.xpose.msra.mxu0 0.0
      %1023 = vmatprep.subr.mxu0 0.0
      %1024 = vmatpush1.xpose.msra.mxu0 0.0
      %1025 = vmatprep.subr.mxu0 0.0
      %1026 = vmatpush1.xpose.msra.mxu0 0.0
      %1027 = vmatprep.subr.mxu0 0.0
      %1028 = vmatpush1.xpose.msra.mxu0 0.0
      %1029 = vmatprep.subr.mxu0 0.0
      %1030 = vmatpush1.xpose.msra.mxu0 0.0
      %1031 = vmatprep.subr.mxu0 0.0
      %1032 = vmatpush1.xpose.msra.mxu0 0.0
      %1033 = vmatprep.subr.mxu0 0.0
      %1034 = vmatpush1.xpose.msra.mxu0 0.0
      %1035 = vmatprep.subr.mxu0 0.0
      %1036 = vmatpush1.xpose.msra.mxu0 0.0
      %1037 = vmatprep.subr.mxu0 0.0
      %1038 = vmatpush1.xpose.msra.mxu0 0.0
      %1039 = vmatprep.subr.mxu0 0.0
      %1040 = vmatpush1.xpose.msra.mxu0 0.0
      %1041 = vmatprep.subr.mxu0 0.0
      %1042 = vmatpush1.xpose.msra.mxu0 0.0
      %1043 = vmatprep.subr.mxu0 0.0
      %1044 = vmatpush1.xpose.msra.mxu0 0.0
      %1045 = vmatprep.subr.mxu0 0.0
      %1046 = vmatpush1.xpose.msra.mxu0 0.0
      %1047 = vmatprep.subr.mxu0 0.0
      %1048 = vmatpush1.xpose.msra.mxu0 0.0
      %1049 = vmatprep.subr.mxu0 0.0
      %1050 = vmatpush1.xpose.msra.mxu0 0.0
      %1051 = vmatprep.subr.mxu0 0.0
      %1052 = vmatpush1.xpose.msra.mxu0 0.0
      %1053 = vmatprep.subr.mxu0 0.0
      %1054 = vmatpush1.xpose.msra.mxu0 0.0
      %1055 = vmatprep.subr.mxu0 0.0
      %1056 = vmatpush1.xpose.msra.mxu0 0.0
      %1057 = vmatprep.subr.mxu0 0.0
      %1058 = vmatpush1.xpose.msra.mxu0 0.0
      %1059 = vmatprep.subr.mxu0 0.0
      %1060 = vmatpush1.xpose.msra.mxu0 0.0
      %1061 = vmatprep.subr.mxu0 0.0
      %1062 = vmatpush1.xpose.msra.mxu0 0.0
      %1063 = vmatprep.subr.mxu0 0.0
      %1064 = vmatpush1.xpose.msra.mxu0 0.0
      %1065 = vmatprep.subr.mxu0 0.0
      %1066 = vmatpush1.xpose.msra.mxu0 0.0
      %1067 = vmatprep.subr.mxu0 0.0
      %1068 = vmatpush1.xpose.msra.mxu0 0.0
      %1069 = vmatprep.subr.mxu0 0.0
      %1070 = vmatpush1.xpose.msra.mxu0 0.0
      %1071 = vmatprep.subr.mxu0 0.0
      %1072 = vmatpush1.xpose.msra.mxu0 0.0
      %1073 = vmatprep.subr.mxu0 0.0
      %1074 = vmatpush1.xpose.msra.mxu0 0.0
      %1075 = vmatprep.subr.mxu0 0.0
      %1076 = vmatpush1.xpose.msra.mxu0 0.0
      %1077 = vmatprep.mubr.f32.mxu0 0.0
      %1078 = vmatmul.mubr.f32.gmra.mrb[0].mxu0 %v1009
      %v1079 = vpop.f32.mrb[0].mxu0
      %v1080 = vadd.f32 %v675, %v1079
      %v1081 = vpop.f32.mrb[0].mxu0
      %1082 = vdwg.mxu0
      %v1083 = vsel %vm676, %v1080, -inf
      %1084 = vmax.xlane.f32.xlu0 %v1083
      %v1085 = vpop.xlane.xlu0 %1084
      %v1086 = vsub.f32 %v1080, %v1085
      %v1087 = vmul.f32 %v1086, 1.442695
      %v1088 = vpow.pop %v1087
      %v1089 = vsel %vm676, %v1088, 0.0
      %1090 = vadd.xlane.f32.xlu0 %v1089
      %v1091 = vpop.xlane.xlu0 %1090
      %v1092 = vrcp.pop %v1091
      %v1093 = vmul.f32 %v1088, %v1092
      %1094 = vrot.lane.b32.xlu0 %v672, 80
      %v1095 = vpop.permute.xlu0 %1094
      %v1098 = vsel %vm676, %v1093, 0
      %1100 = vmatprep.subr.mxu0 0.0
      %1101 = vmatpush1.msra.mxu0 %v1095
      %1102 = vmatprep.subr.mxu0 0.0
      %1103 = vmatpush1.msra.mxu0 0.0
      %1104 = vmatprep.subr.mxu0 0.0
      %1105 = vmatpush1.msra.mxu0 0.0
      %1106 = vmatprep.subr.mxu0 0.0
      %1107 = vmatpush1.msra.mxu0 0.0
      %1108 = vmatprep.subr.mxu0 0.0
      %1109 = vmatpush1.msra.mxu0 0.0
      %1110 = vmatprep.subr.mxu0 0.0
      %1111 = vmatpush1.msra.mxu0 0.0
      %1112 = vmatprep.subr.mxu0 0.0
      %1113 = vmatpush1.msra.mxu0 0.0
      %1114 = vmatprep.subr.mxu0 0.0
      %1115 = vmatpush1.msra.mxu0 0.0
      %1116 = vmatprep.subr.mxu0 0.0
      %1117 = vmatpush1.msra.mxu0 0.0
      %1118 = vmatprep.subr.mxu0 0.0
      %1119 = vmatpush1.msra.mxu0 0.0
      %1120 = vmatprep.subr.mxu0 0.0
      %1121 = vmatpush1.msra.mxu0 0.0
      %1122 = vmatprep.subr.mxu0 0.0
      %1123 = vmatpush1.msra.mxu0 0.0
      %1124 = vmatprep.subr.mxu0 0.0
      %1125 = vmatpush1.msra.mxu0 0.0
      %1126 = vmatprep.subr.mxu0 0.0
      %1127 = vmatpush1.msra.mxu0 0.0
      %1128 = vmatprep.subr.mxu0 0.0
      %1129 = vmatpush1.msra.mxu0 0.0
      %1130 = vmatprep.subr.mxu0 0.0
      %1131 = vmatpush1.msra.mxu0 0.0
      %1132 = vmatprep.subr.mxu0 0.0
      %1133 = vmatpush1.msra.mxu0 0.0
      %1134 = vmatprep.subr.mxu0 0.0
      %1135 = vmatpush1.msra.mxu0 0.0
      %1136 = vmatprep.subr.mxu0 0.0
      %1137 = vmatpush1.msra.mxu0 0.0
      %1138 = vmatprep.subr.mxu0 0.0
      %1139 = vmatpush1.msra.mxu0 0.0
      %1140 = vmatprep.subr.mxu0 0.0
      %1141 = vmatpush1.msra.mxu0 0.0
      %1142 = vmatprep.subr.mxu0 0.0
      %1143 = vmatpush1.msra.mxu0 0.0
      %1144 = vmatprep.subr.mxu0 0.0
      %1145 = vmatpush1.msra.mxu0 0.0
      %1146 = vmatprep.subr.mxu0 0.0
      %1147 = vmatpush1.msra.mxu0 0.0
      %1148 = vmatprep.subr.mxu0 0.0
      %1149 = vmatpush1.msra.mxu0 0.0
      %1150 = vmatprep.subr.mxu0 0.0
      %1151 = vmatpush1.msra.mxu0 0.0
      %1152 = vmatprep.subr.mxu0 0.0
      %1153 = vmatpush1.msra.mxu0 0.0
      %1154 = vmatprep.subr.mxu0 0.0
      %1155 = vmatpush1.msra.mxu0 0.0
      %1156 = vmatprep.subr.mxu0 0.0
      %1157 = vmatpush1.msra.mxu0 0.0
      %1158 = vmatprep.subr.mxu0 0.0
      %1159 = vmatpush1.msra.mxu0 0.0
      %1160 = vmatprep.subr.mxu0 0.0
      %1161 = vmatpush1.msra.mxu0 0.0
      %1162 = vmatprep.subr.mxu0 0.0
      %1163 = vmatpush1.msra.mxu0 0.0
      %1164 = vmatprep.mubr.f32.mxu0 0.0
      %1165 = vmatmul.mubr.f32.gmra.mrb[0].mxu0 %v1098
      %v1166 = vpop.f32.mrb[0].mxu0
      %v1167 = vadd.f32 0.0, %v1166
      %v1168 = vpop.f32.mrb[0].mxu0
      %1169 = vdwg.mxu0
      %1170 = vrot.lane.b32.xlu0 %v590, 104
      %v1171 = vpop.permute.xlu0 %1170
      %1172 = vrot.lane.b32.xlu0 %v672, 104
      %v1173 = vpop.permute.xlu0 %1172
      %v1174 = vsel %vm676, %v1171, 0
      %v1176 = vsel %vm676, %v1173, 0
      %1178 = vmatprep.subr.mxu0 0.0
      %1179 = vmatpush1.xpose.msra.mxu0 %v1176
      %1180 = vmatprep.subr.mxu0 0.0
      %1181 = vmatpush1.xpose.msra.mxu0 0.0
      %1182 = vmatprep.subr.mxu0 0.0
      %1183 = vmatpush1.xpose.msra.mxu0 0.0
      %1184 = vmatprep.subr.mxu0 0.0
      %1185 = vmatpush1.xpose.msra.mxu0 0.0
      %1186 = vmatprep.subr.mxu0 0.0
      %1187 = vmatpush1.xpose.msra.mxu0 0.0
      %1188 = vmatprep.subr.mxu0 0.0
      %1189 = vmatpush1.xpose.msra.mxu0 0.0
      %1190 = vmatprep.subr.mxu0 0.0
      %1191 = vmatpush1.xpose.msra.mxu0 0.0
      %1192 = vmatprep.subr.mxu0 0.0
      %1193 = vmatpush1.xpose.msra.mxu0 0.0
      %1194 = vmatprep.subr.mxu0 0.0
      %1195 = vmatpush1.xpose.msra.mxu0 0.0
      %1196 = vmatprep.subr.mxu0 0.0
      %1197 = vmatpush1.xpose.msra.mxu0 0.0
      %1198 = vmatprep.subr.mxu0 0.0
      %1199 = vmatpush1.xpose.msra.mxu0 0.0
      %1200 = vmatprep.subr.mxu0 0.0
      %1201 = vmatpush1.xpose.msra.mxu0 0.0
      %1202 = vmatprep.subr.mxu0 0.0
      %1203 = vmatpush1.xpose.msra.mxu0 0.0
      %1204 = vmatprep.subr.mxu0 0.0
      %1205 = vmatpush1.xpose.msra.mxu0 0.0
      %1206 = vmatprep.subr.mxu0 0.0
      %1207 = vmatpush1.xpose.msra.mxu0 0.0
      %1208 = vmatprep.subr.mxu0 0.0
      %1209 = vmatpush1.xpose.msra.mxu0 0.0
      %1210 = vmatprep.subr.mxu0 0.0
      %1211 = vmatpush1.xpose.msra.mxu0 0.0
      %1212 = vmatprep.subr.mxu0 0.0
      %1213 = vmatpush1.xpose.msra.mxu0 0.0
      %1214 = vmatprep.subr.mxu0 0.0
      %1215 = vmatpush1.xpose.msra.mxu0 0.0
      %1216 = vmatprep.subr.mxu0 0.0
      %1217 = vmatpush1.xpose.msra.mxu0 0.0
      %1218 = vmatprep.subr.mxu0 0.0
      %1219 = vmatpush1.xpose.msra.mxu0 0.0
      %1220 = vmatprep.subr.mxu0 0.0
      %1221 = vmatpush1.xpose.msra.mxu0 0.0
      %1222 = vmatprep.subr.mxu0 0.0
      %1223 = vmatpush1.xpose.msra.mxu0 0.0
      %1224 = vmatprep.subr.mxu0 0.0
      %1225 = vmatpush1.xpose.msra.mxu0 0.0
      %1226 = vmatprep.subr.mxu0 0.0
      %1227 = vmatpush1.xpose.msra.mxu0 0.0
      %1228 = vmatprep.subr.mxu0 0.0
      %1229 = vmatpush1.xpose.msra.mxu0 0.0
      %1230 = vmatprep.subr.mxu0 0.0
      %1231 = vmatpush1.xpose.msra.mxu0 0.0
      %1232 = vmatprep.subr.mxu0 0.0
      %1233 = vmatpush1.xpose.msra.mxu0 0.0
      %1234 = vmatprep.subr.mxu0 0.0
      %1235 = vmatpush1.xpose.msra.mxu0 0.0
      %1236 = vmatprep.subr.mxu0 0.0
      %1237 = vmatpush1.xpose.msra.mxu0 0.0
      %1238 = vmatprep.subr.mxu0 0.0
      %1239 = vmatpush1.xpose.msra.mxu0 0.0
      %1240 = vmatprep.subr.mxu0 0.0
      %1241 = vmatpush1.xpose.msra.mxu0 0.0
      %1242 = vmatprep.mubr.f32.mxu0 0.0
      %1243 = vmatmul.mubr.f32.gmra.mrb[0].mxu0 %v1174
      %v1244 = vpop.f32.mrb[0].mxu0
      %v1245 = vadd.f32 %v675, %v1244
      %v1246 = vpop.f32.mrb[0].mxu0
      %1247 = vdwg.mxu0
      %v1248 = vsel %vm676, %v1245, -inf
      %1249 = vmax.xlane.f32.xlu0 %v1248
      %v1250 = vpop.xlane.xlu0 %1249
      %v1251 = vsub.f32 %v1245, %v1250
      %v1252 = vmul.f32 %v1251, 1.442695
      %v1253 = vpow.pop %v1252
      %v1254 = vsel %vm676, %v1253, 0.0
      %1255 = vadd.xlane.f32.xlu0 %v1254
      %v1256 = vpop.xlane.xlu0 %1255
      %v1257 = vrcp.pop %v1256
      %v1258 = vmul.f32 %v1253, %v1257
      %1259 = vrot.lane.b32.xlu0 %v672, 72
      %v1260 = vpop.permute.xlu0 %1259
      %v1263 = vsel %vm676, %v1258, 0
      %1265 = vmatprep.subr.mxu0 0.0
      %1266 = vmatpush1.msra.mxu0 %v1260
      %1267 = vmatprep.subr.mxu0 0.0
      %1268 = vmatpush1.msra.mxu0 0.0
      %1269 = vmatprep.subr.mxu0 0.0
      %1270 = vmatpush1.msra.mxu0 0.0
      %1271 = vmatprep.subr.mxu0 0.0
      %1272 = vmatpush1.msra.mxu0 0.0
      %1273 = vmatprep.subr.mxu0 0.0
      %1274 = vmatpush1.msra.mxu0 0.0
      %1275 = vmatprep.subr.mxu0 0.0
      %1276 = vmatpush1.msra.mxu0 0.0
      %1277 = vmatprep.subr.mxu0 0.0
      %1278 = vmatpush1.msra.mxu0 0.0
      %1279 = vmatprep.subr.mxu0 0.0
      %1280 = vmatpush1.msra.mxu0 0.0
      %1281 = vmatprep.subr.mxu0 0.0
      %1282 = vmatpush1.msra.mxu0 0.0
      %1283 = vmatprep.subr.mxu0 0.0
      %1284 = vmatpush1.msra.mxu0 0.0
      %1285 = vmatprep.subr.mxu0 0.0
      %1286 = vmatpush1.msra.mxu0 0.0
      %1287 = vmatprep.subr.mxu0 0.0
      %1288 = vmatpush1.msra.mxu0 0.0
      %1289 = vmatprep.subr.mxu0 0.0
      %1290 = vmatpush1.msra.mxu0 0.0
      %1291 = vmatprep.subr.mxu0 0.0
      %1292 = vmatpush1.msra.mxu0 0.0
      %1293 = vmatprep.subr.mxu0 0.0
      %1294 = vmatpush1.msra.mxu0 0.0
      %1295 = vmatprep.subr.mxu0 0.0
      %1296 = vmatpush1.msra.mxu0 0.0
      %1297 = vmatprep.subr.mxu0 0.0
      %1298 = vmatpush1.msra.mxu0 0.0
      %1299 = vmatprep.subr.mxu0 0.0
      %1300 = vmatpush1.msra.mxu0 0.0
      %1301 = vmatprep.subr.mxu0 0.0
      %1302 = vmatpush1.msra.mxu0 0.0
      %1303 = vmatprep.subr.mxu0 0.0
      %1304 = vmatpush1.msra.mxu0 0.0
      %1305 = vmatprep.subr.mxu0 0.0
      %1306 = vmatpush1.msra.mxu0 0.0
      %1307 = vmatprep.subr.mxu0 0.0
      %1308 = vmatpush1.msra.mxu0 0.0
      %1309 = vmatprep.subr.mxu0 0.0
      %1310 = vmatpush1.msra.mxu0 0.0
      %1311 = vmatprep.subr.mxu0 0.0
      %1312 = vmatpush1.msra.mxu0 0.0
      %1313 = vmatprep.subr.mxu0 0.0
      %1314 = vmatpush1.msra.mxu0 0.0
      %1315 = vmatprep.subr.mxu0 0.0
      %1316 = vmatpush1.msra.mxu0 0.0
      %1317 = vmatprep.subr.mxu0 0.0
      %1318 = vmatpush1.msra.mxu0 0.0
      %1319 = vmatprep.subr.mxu0 0.0
      %1320 = vmatpush1.msra.mxu0 0.0
      %1321 = vmatprep.subr.mxu0 0.0
      %1322 = vmatpush1.msra.mxu0 0.0
      %1323 = vmatprep.subr.mxu0 0.0
      %1324 = vmatpush1.msra.mxu0 0.0
      %1325 = vmatprep.subr.mxu0 0.0
      %1326 = vmatpush1.msra.mxu0 0.0
      %1327 = vmatprep.subr.mxu0 0.0
      %1328 = vmatpush1.msra.mxu0 0.0
      %1329 = vmatprep.mubr.f32.mxu0 0.0
      %1330 = vmatmul.mubr.f32.gmra.mrb[0].mxu0 %v1263
      %v1331 = vpop.f32.mrb[0].mxu0
      %v1332 = vadd.f32 0.0, %v1331
      %v1333 = vpop.f32.mrb[0].mxu0
      %1334 = vdwg.mxu0
      %1336 = vrot.lane.b32.xlu0 %v1002, 8
      %v1337 = vpop.permute.xlu0 %1336
      %1340 = vrot.lane.b32.xlu0 %v1167, 16
      %v1341 = vpop.permute.xlu0 %1340
      %1344 = vrot.lane.b32.xlu0 %v1332, 24
      %v1345 = vpop.permute.xlu0 %1344
      %v1347 = vsel %vm676, %v837, %v1337
      %vm1348 = vcmask 130048
      %v1349 = vsel %vm1348, %v1347, %v1341
      %vm1350 = vcmask 195584
      %v1351 = vsel %vm1350, %v1349, %v1345
      %v1352 = vld [vmem:[%s9] sm:$0xff]
      %v1353 = vld [vmem:[%s9 + $0x8] sm:$0xff]
      %v1354 = vld [vmem:[%s9 + $0x10] sm:$0xff]
      %v1355 = vld [vmem:[%s9 + $0x18] sm:$0xff]
      %v1356 = vld [vmem:[%s10] sm:$0x1]
      %v1358 = vlaneseq
      %v1359 = vshrl.u32 %v1358, 7
      %v1360 = vsub.s32 0, %v1359
      %v1361 = vrot.slane %v1356, %v1360
      %v1364 = vsel %vm461, %v1351, 0
      %1366 = vmatprep.subr.mxu0 0.0
      %1367 = vmatpush1.msra.mxu0 %v1352
      %1368 = vmatprep.subr.mxu0 0.0
      %1369 = vmatpush1.msra.mxu0 %v1353
      %1370 = vmatprep.subr.mxu0 0.0
      %1371 = vmatpush1.msra.mxu0 %v1354
      %1372 = vmatprep.subr.mxu0 0.0
      %1373 = vmatpush1.msra.mxu0 %v1355
      %1374 = vmatprep.subr.mxu0 0.0
      %1375 = vmatpush1.msra.mxu0 0.0
      %1376 = vmatprep.subr.mxu0 0.0
      %1377 = vmatpush1.msra.mxu0 0.0
      %1378 = vmatprep.subr.mxu0 0.0
      %1379 = vmatpush1.msra.mxu0 0.0
      %1380 = vmatprep.subr.mxu0 0.0
      %1381 = vmatpush1.msra.mxu0 0.0
      %1382 = vmatprep.subr.mxu0 0.0
      %1383 = vmatpush1.msra.mxu0 0.0
      %1384 = vmatprep.subr.mxu0 0.0
      %1385 = vmatpush1.msra.mxu0 0.0
      %1386 = vmatprep.subr.mxu0 0.0
      %1387 = vmatpush1.msra.mxu0 0.0
      %1388 = vmatprep.subr.mxu0 0.0
      %1389 = vmatpush1.msra.mxu0 0.0
      %1390 = vmatprep.subr.mxu0 0.0
      %1391 = vmatpush1.msra.mxu0 0.0
      %1392 = vmatprep.subr.mxu0 0.0
      %1393 = vmatpush1.msra.mxu0 0.0
      %1394 = vmatprep.subr.mxu0 0.0
      %1395 = vmatpush1.msra.mxu0 0.0
      %1396 = vmatprep.subr.mxu0 0.0
      %1397 = vmatpush1.msra.mxu0 0.0
      %1398 = vmatprep.subr.mxu0 0.0
      %1399 = vmatpush1.msra.mxu0 0.0
      %1400 = vmatprep.subr.mxu0 0.0
      %1401 = vmatpush1.msra.mxu0 0.0
      %1402 = vmatprep.subr.mxu0 0.0
      %1403 = vmatpush1.msra.mxu0 0.0
      %1404 = vmatprep.subr.mxu0 0.0
      %1405 = vmatpush1.msra.mxu0 0.0
      %1406 = vmatprep.subr.mxu0 0.0
      %1407 = vmatpush1.msra.mxu0 0.0
      %1408 = vmatprep.subr.mxu0 0.0
      %1409 = vmatpush1.msra.mxu0 0.0
      %1410 = vmatprep.subr.mxu0 0.0
      %1411 = vmatpush1.msra.mxu0 0.0
      %1412 = vmatprep.subr.mxu0 0.0
      %1413 = vmatpush1.msra.mxu0 0.0
      %1414 = vmatprep.subr.mxu0 0.0
      %1415 = vmatpush1.msra.mxu0 0.0
      %1416 = vmatprep.subr.mxu0 0.0
      %1417 = vmatpush1.msra.mxu0 0.0
      %1418 = vmatprep.subr.mxu0 0.0
      %1419 = vmatpush1.msra.mxu0 0.0
      %1420 = vmatprep.subr.mxu0 0.0
      %1421 = vmatpush1.msra.mxu0 0.0
      %1422 = vmatprep.subr.mxu0 0.0
      %1423 = vmatpush1.msra.mxu0 0.0
      %1424 = vmatprep.subr.mxu0 0.0
      %1425 = vmatpush1.msra.mxu0 0.0
      %1426 = vmatprep.subr.mxu0 0.0
      %1427 = vmatpush1.msra.mxu0 0.0
      %1428 = vmatprep.subr.mxu0 0.0
      %1429 = vmatpush1.msra.mxu0 0.0
      %1430 = vmatprep.mubr.f32.mxu0 0.0
      %1431 = vmatmul.mubr.f32.gmra.mrb[0].mxu0 %v1364
      %v1432 = vpop.f32.mrb[0].mxu0
      %v1433 = vadd.f32 %v1361, %v1432
      %v1434 = vpop.f32.mrb[0].mxu0
      %1435 = vdwg.mxu0
      %v1436 = vadd.f32 %v458, %v1433
      %1437 = vst.msk [vmem:[%s457] sm:$0xff] %vm461, %v1436
      %p1438 = scmp.lt.s32.totalorder %s26, 1
      %s1439 = scalar_select %p1438, %s26, 1
      %p1440 = scmp.lt.s32.totalorder %s27, 0
      %s1441 = scalar_select %p1440, %s27, 0
      %s1442 = sadd.s32 %s1441, %s1439
      %s1443 = smul.addr %s1442, 8
      %s1444 = scalar_lea.vmem %s11, %s1443
      // Predicated region
      $region65: #{decoder_layer.3} parent=63 // pred_check
        %p1445 = pneg %p304
      $region66: #{decoder_layer.3} parent=63 // pred_check_branch
        %1447 = sbr.rel (%p1445) target = $region68
      $region67: #{decoder_layer.3} parent=63 // pred_region
        _
      $region68: #{decoder_layer.3} parent=63 // pred_fallthru
        _
    $region64: #{decoder_layer.3} parent=5 // pred_fallthru
      _
    %p1448 = scmp.le.s32.totalorder 2, %s17
    // Predicated region
    $region69: #{decoder_layer.3} parent=5 // pred_check
      %p1449 = pneg %p1448
    $region70: #{decoder_layer.3} parent=5 // pred_check_branch
      %1451 = sbr.rel (%p1449) target = $region72
    $region71: #{decoder_layer.3} parent=5 // pred_region
      %s1452 = ssub.s32 %s17, 2
      // Predicated region
      $region73: #{decoder_layer.3} parent=71 // pred_check
        %p1453 = pneg %p310
      $region74: #{decoder_layer.3} parent=71 // pred_check_branch
        %1455 = sbr.rel (%p1453) target = $region76
      $region75: #{decoder_layer.3} parent=71 // pred_region
        %p1456 = scmp.lt.s32.totalorder %s28, 1
        %s1457 = scalar_select %p1456, %s28, 1
        %p1458 = scmp.lt.s32.totalorder %s29, 0
        %s1459 = scalar_select %p1458, %s29, 0
        %s1460 = sadd.s32 %s1459, %s1457
        %s1461 = smul.addr %s1460, 8
        %s1462 = scalar_lea.vmem %s11, %s1461
      $region76: #{decoder_layer.3} parent=71 // pred_fallthru
        _
    $region72: #{decoder_layer.3} parent=5 // pred_fallthru
      _
  $region6: #{decoder_layer.3} parent=0 // loop_footer
    %s21 = sadd.s32 1, %s17
  $region7: #{decoder_layer.3} parent=0 // loop_footer_branch
    %16 = sbr.rel target = $region3
  $region8: #{decoder_layer.3} parent=0 // loop_exit
    _

// kernel: decoder_layer.4
$region0: #{decoder_layer.4}
  #allocation0 [shape = 'u32[]', space=smem, size = 0x4, offset = 0x4, fixed_abs, tag = 'smem constant byte address 0x4 - core index']
  #allocation1 [shape = 'u32[144,128]{1,0:T(1,128)}', space=vmem, size = 0x12000, scoped, tag = 'internal scratch']
  %s0 = inlined_call_operand.vmem [shape: f32[2,8,32], index: 0, kind: input, shape index: {}]
  %s1 = inlined_call_operand.vmem [shape: f32[2,16,32], index: 1, kind: input, shape index: {}]
  %s2 = inlined_call_operand.vmem [shape: f32[2,8,16], index: 2, kind: input, shape index: {}]
  %s3 = inlined_call_operand.vmem [shape: f32[1,32], index: 3, kind: input, shape index: {}]
  %s4 = inlined_call_operand.vmem [shape: f32[1,32], index: 4, kind: input, shape index: {}]
  %s5 = inlined_call_operand.vmem [shape: f32[32,32], index: 5, kind: input, shape index: {}]
  %s6 = inlined_call_operand.vmem [shape: f32[1,32], index: 6, kind: input, shape index: {}]
  %s7 = inlined_call_operand.vmem [shape: f32[32,64], index: 7, kind: input, shape index: {}]
  %s8 = inlined_call_operand.vmem [shape: f32[1,64], index: 8, kind: input, shape index: {}]
  %s9 = inlined_call_operand.vmem [shape: f32[32,32], index: 9, kind: input, shape index: {}]
  %s10 = inlined_call_operand.vmem [shape: f32[1,32], index: 10, kind: input, shape index: {}]
  %s11 = inlined_call_operand.vmem [shape: f32[2,8,32], index: 11, kind: output, shape index: {}]
  %s12 = sld [smem:[#allocation0]]
  $region77: #{decoder_layer.4} parent=0
    _
  %s14 = ssub.s32 1, %s12
  %s15 = scalar_select 0, %s14, %s12
  loop: start=0, step=1, limit=4
  $region2: #{decoder_layer.4} parent=0 // loop_pre_header
    _
  $region3: #{decoder_layer.4} parent=0 // loop_header
    %s17 = sphi 0, %s21
    %p18 = scmp.ge.s32.totalorder %s17, 4
    %s24 = sphi 0, %s36
    %s25 = sphi 0, %s32
    %s26 = sphi 0, %s24
    %s27 = sphi 0, %s25
    %s28 = sphi 0, %s26
    %s29 = sphi 0, %s27
    %s41 = sphi 0, %s43
    %s44 = sphi 0, %s41
    %s45 = sphi 0, %s44
    %s61 = sphi 0, %s45
    %s67 = sphi 0, %s69
    %s70 = sphi 0, %s67
    %s71 = sphi 0, %s70
    %s87 = sphi 0, %s71
    %s95 = sphi 0, %s97
    %s98 = sphi 0, %s95
    %s99 = sphi 0, %s98
    %s115 = sphi 0, %s99
    %s119 = sphi 0, %s119
    %s121 = sphi 0, %s119
    %s122 = sphi 0, %s121
    %s136 = sphi 0, %s122
    %s140 = sphi 0, %s140
    %s142 = sphi 0, %s140
    %s143 = sphi 0, %s142
    %s157 = sphi 0, %s143
    %s161 = sphi 0, %s161
    %s163 = sphi 0, %s161
    %s164 = sphi 0, %s163
    %s178 = sphi 0, %s164
    %s182 = sphi 0, %s182
    %s184 = sphi 0, %s182
    %s185 = sphi 0, %s184
    %s199 = sphi 0, %s185
    %s203 = sphi 0, %s203
    %s205 = sphi 0, %s203
    %s206 = sphi 0, %s205
    %s220 = sphi 0, %s206
    %s224 = sphi 0, %s224
    %s226 = sphi 0, %s224
    %s227 = sphi 0, %s226
    %s241 = sphi 0, %s227
    %s245 = sphi 0, %s245
    %s247 = sphi 0, %s245
    %s248 = sphi 0, %s247
    %s262 = sphi 0, %s248
    %s266 = sphi 0, %s266
    %s268 = sphi 0, %s266
    %s269 = sphi 0, %s268
    %s283 = sphi 0, %s269
    %s291 = sphi 0, %s293
    %s294 = sphi 0, %s291
    %s295 = sphi 0, %s294
    %s311 = sphi 0, %s295
  $region4: #{decoder_layer.4} parent=0 // loop_header_branch
    %20 = sbr.rel (%p18) target = $region8
  $region5: #{decoder_layer.4} parent=0 // loop_body
    %s22 = ssub.s32 %s17, 1
    %s23 = ssub.s32 %s17, 2
    %s30 = sadd.s32 1, %s25
    %p31 = scmp.ge.s32.totalorder %s30, 1
    %s32 = scalar_select %p31, 0, %s30
    %s33 = sadd.s32 1, %s24
    %s34 = scalar_select %p31, %s33, %s24
    %p35 = scmp.ge.s32.totalorder %s34, 2
    %s36 = scalar_select %p35, 0, %s34
    %s37 = ssub.s32 %s24, %s36
    %s38 = ssub.s32 %s25, %s32
    %s39 = sor.u32 %s37, %s38
    %p40 = scmp.eq.s32.totalorder %s39, 0
    %s42 = sadd.s32 %s41, 1
    %s43 = scalar_select %p40, %s41, %s42
    %p46 = pneg %p40
    %p47 = scmp.eq.s32.totalorder %s17, 1
    %p48 = por %p46, %p47
    %p49 = scmp.ne.s32.totalorder %s41, %s44
    %p50 = scmp.eq.s32.totalorder %s17, 0
    %p51 = por %p49, %p50
    %p52 = scmp.ne.s32.totalorder %s41, %s44
    %p53 = scmp.eq.s32.totalorder %s22, 1
    %p54 = por %p52, %p53
    %p55 = scmp.ne.s32.totalorder %s44, %s45
    %p56 = scmp.eq.s32.totalorder %s22, 0
    %p57 = por %p55, %p56
    %p58 = scmp.ne.s32.totalorder %s44, %s45
    %p59 = scmp.eq.s32.totalorder %s23, 1
    %p60 = por %p58, %p59
    %p62 = scmp.ne.s32.totalorder %s45, %s61
    %p63 = scmp.eq.s32.totalorder %s23, 0
    %p64 = por %p62, %p63
    %s65 = ssub.s32 %s24, %s36
    %p66 = scmp.eq.s32.totalorder %s65, 0
    %s68 = sadd.s32 %s67, 1
    %s69 = scalar_select %p66, %s67, %s68
    %p72 = pneg %p66
    %p73 = scmp.eq.s32.totalorder %s17, 1
    %p74 = por %p72, %p73
    %p75 = scmp.ne.s32.totalorder %s67, %s70
    %p76 = scmp.eq.s32.totalorder %s17, 0
    %p77 = por %p75, %p76
    %p78 = scmp.ne.s32.totalorder %s67, %s70
    %p79 = scmp.eq.s32.totalorder %s22, 1
    %p80 = por %p78, %p79
    %p81 = scmp.ne.s32.totalorder %s70, %s71
    %p82 = scmp.eq.s32.totalorder %s22, 0
    %p83 = por %p81, %p82
    %p84 = scmp.ne.s32.totalorder %s70, %s71
    %p85 = scmp.eq.s32.totalorder %s23, 1
    %p86 = por %p84, %p85
    %p88 = scmp.ne.s32.totalorder %s71, %s87
    %p89 = scmp.eq.s32.totalorder %s23, 0
    %p90 = por %p88, %p89
    %s91 = ssub.s32 %s24, %s36
    %s92 = ssub.s32 %s25, %s32
    %s93 = sor.u32 %s91, %s92
    %p94 = scmp.eq.s32.totalorder %s93, 0
    %s96 = sadd.s32 %s95, 1
    %s97 = scalar_select %p94, %s95, %s96
    %p100 = pneg %p94
    %p101 = scmp.eq.s32.totalorder %s17, 1
    %p102 = por %p100, %p101
    %p103 = scmp.ne.s32.totalorder %s95, %s98
    %p104 = scmp.eq.s32.totalorder %s17, 0
    %p105 = por %p103, %p104
    %p106 = scmp.ne.s32.totalorder %s95, %s98
    %p107 = scmp.eq.s32.totalorder %s22, 1
    %p108 = por %p106, %p107
    %p109 = scmp.ne.s32.totalorder %s98, %s99
    %p110 = scmp.eq.s32.totalorder %s22, 0
    %p111 = por %p109, %p110
    %p112 = scmp.ne.s32.totalorder %s98, %s99
    %p113 = scmp.eq.s32.totalorder %s23, 1
    %p114 = por %p112, %p113
    %p116 = scmp.ne.s32.totalorder %s99, %s115
    %p117 = scmp.eq.s32.totalorder %s23, 0
    %p118 = por %p116, %p117
    %s120 = sadd.s32 %s119, 1
    %p123 = scmp.eq.s32.totalorder %s17, 1
    %p124 = scmp.ne.s32.totalorder %s119, %s121
    %p125 = scmp.eq.s32.totalorder %s17, 0
    %p126 = por %p124, %p125
    %p127 = scmp.ne.s32.totalorder %s119, %s121
    %p128 = scmp.eq.s32.totalorder %s22, 1
    %p129 = por %p127, %p128
    %p130 = scmp.ne.s32.totalorder %s121, %s122
    %p131 = scmp.eq.s32.totalorder %s22, 0
    %p132 = por %p130, %p131
    %p133 = scmp.ne.s32.totalorder %s121, %s122
    %p134 = scmp.eq.s32.totalorder %s23, 1
    %p135 = por %p133, %p134
    %p137 = scmp.ne.s32.totalorder %s122, %s136
    %p138 = scmp.eq.s32.totalorder %s23, 0
    %p139 = por %p137, %p138
    %s141 = sadd.s32 %s140, 1
    %p144 = scmp.eq.s32.totalorder %s17, 1
    %p145 = scmp.ne.s32.totalorder %s140, %s142
    %p146 = scmp.eq.s32.totalorder %s17, 0
    %p147 = por %p145, %p146
    %p148 = scmp.ne.s32.totalorder %s140, %s142
    %p149 = scmp.eq.s32.totalorder %s22, 1
    %p150 = por %p148, %p149
    %p151 = scmp.ne.s32.totalorder %s142, %s143
    %p152 = scmp.eq.s32.totalorder %s22, 0
    %p153 = por %p151, %p152
    %p154 = scmp.ne.s32.totalorder %s142, %s143
    %p155 = scmp.eq.s32.totalorder %s23, 1
    %p156 = por %p154, %p155
    %p158 = scmp.ne.s32.totalorder %s143, %s157
    %p159 = scmp.eq.s32.totalorder %s23, 0
    %p160 = por %p158, %p159
    %s162 = sadd.s32 %s161, 1
    %p165 = scmp.eq.s32.totalorder %s17, 1
    %p166 = scmp.ne.s32.totalorder %s161, %s163
    %p167 = scmp.eq.s32.totalorder %s17, 0
    %p168 = por %p166, %p167
    %p169 = scmp.ne.s32.totalorder %s161, %s163
    %p170 = scmp.eq.s32.totalorder %s22, 1
    %p171 = por %p169, %p170
    %p172 = scmp.ne.s32.totalorder %s163, %s164
    %p173 = scmp.eq.s32.totalorder %s22, 0
    %p174 = por %p172, %p173
    %p175 = scmp.ne.s32.totalorder %s163, %s164
    %p176 = scmp.eq.s32.totalorder %s23, 1
    %p177 = por %p175, %p176
    %p179 = scmp.ne.s32.totalorder %s164, %s178
    %p180 = scmp.eq.s32.totalorder %s23, 0
    %p181 = por %p179, %p180
    %s183 = sadd.s32 %s182, 1
    %p186 = scmp.eq.s32.totalorder %s17, 1
    %p187 = scmp.ne.s32.totalorder %s182, %s184
    %p188 = scmp.eq.s32.totalorder %s17, 0
    %p189 = por %p187, %p188
    %p190 = scmp.ne.s32.totalorder %s182, %s184
    %p191 = scmp.eq.s32.totalorder %s22, 1
    %p192 = por %p190, %p191
    %p193 = scmp.ne.s32.totalorder %s184, %s185
    %p194 = scmp.eq.s32.totalorder %s22, 0
    %p195 = por %p193, %p194
    %p196 = scmp.ne.s32.totalorder %s184, %s185
    %p197 = scmp.eq.s32.totalorder %s23, 1
    %p198 = por %p196, %p197
    %p200 = scmp.ne.s32.totalorder %s185, %s199
    %p201 = scmp.eq.s32.totalorder %s23, 0
    %p202 = por %p200, %p201
    %s204 = sadd.s32 %s203, 1
    %p207 = scmp.eq.s32.totalorder %s17, 1
    %p208 = scmp.ne.s32.totalorder %s203, %s205
    %p209 = scmp.eq.s32.totalorder %s17, 0
    %p210 = por %p208, %p209
    %p211 = scmp.ne.s32.totalorder %s203, %s205
    %p212 = scmp.eq.s32.totalorder %s22, 1
    %p213 = por %p211, %p212
    %p214 = scmp.ne.s32.totalorder %s205, %s206
    %p215 = scmp.eq.s32.totalorder %s22, 0
    %p216 = por %p214, %p215
    %p217 = scmp.ne.s32.totalorder %s205, %s206
    %p218 = scmp.eq.s32.totalorder %s23, 1
    %p219 = por %p217, %p218
    %p221 = scmp.ne.s32.totalorder %s206, %s220
    %p222 = scmp.eq.s32.totalorder %s23, 0
    %p223 = por %p221, %p222
    %s225 = sadd.s32 %s224, 1
    %p228 = scmp.eq.s32.totalorder %s17, 1
    %p229 = scmp.ne.s32.totalorder %s224, %s226
    %p230 = scmp.eq.s32.totalorder %s17, 0
    %p231 = por %p229, %p230
    %p232 = scmp.ne.s32.totalorder %s224, %s226
    %p233 = scmp.eq.s32.totalorder %s22, 1
    %p234 = por %p232, %p233
    %p235 = scmp.ne.s32.totalorder %s226, %s227
    %p236 = scmp.eq.s32.totalorder %s22, 0
    %p237 = por %p235, %p236
    %p238 = scmp.ne.s32.totalorder %s226, %s227
    %p239 = scmp.eq.s32.totalorder %s23, 1
    %p240 = por %p238, %p239
    %p242 = scmp.ne.s32.totalorder %s227, %s241
    %p243 = scmp.eq.s32.totalorder %s23, 0
    %p244 = por %p242, %p243
    %s246 = sadd.s32 %s245, 1
    %p249 = scmp.eq.s32.totalorder %s17, 1
    %p250 = scmp.ne.s32.totalorder %s245, %s247
    %p251 = scmp.eq.s32.totalorder %s17, 0
    %p252 = por %p250, %p251
    %p253 = scmp.ne.s32.totalorder %s245, %s247
    %p254 = scmp.eq.s32.totalorder %s22, 1
    %p255 = por %p253, %p254
    %p256 = scmp.ne.s32.totalorder %s247, %s248
    %p257 = scmp.eq.s32.totalorder %s22, 0
    %p258 = por %p256, %p257
    %p259 = scmp.ne.s32.totalorder %s247, %s248
    %p260 = scmp.eq.s32.totalorder %s23, 1
    %p261 = por %p259, %p260
    %p263 = scmp.ne.s32.totalorder %s248, %s262
    %p264 = scmp.eq.s32.totalorder %s23, 0
    %p265 = por %p263, %p264
    %s267 = sadd.s32 %s266, 1
    %p270 = scmp.eq.s32.totalorder %s17, 1
    %p271 = scmp.ne.s32.totalorder %s266, %s268
    %p272 = scmp.eq.s32.totalorder %s17, 0
    %p273 = por %p271, %p272
    %p274 = scmp.ne.s32.totalorder %s266, %s268
    %p275 = scmp.eq.s32.totalorder %s22, 1
    %p276 = por %p274, %p275
    %p277 = scmp.ne.s32.totalorder %s268, %s269
    %p278 = scmp.eq.s32.totalorder %s22, 0
    %p279 = por %p277, %p278
    %p280 = scmp.ne.s32.totalorder %s268, %s269
    %p281 = scmp.eq.s32.totalorder %s23, 1
    %p282 = por %p280, %p281
    %p284 = scmp.ne.s32.totalorder %s269, %s283
    %p285 = scmp.eq.s32.totalorder %s23, 0
    %p286 = por %p284, %p285
    %s287 = ssub.s32 %s24, %s36
    %s288 = ssub.s32 %s25, %s32
    %s289 = sor.u32 %s287, %s288
    %p290 = scmp.eq.s32.totalorder %s289, 0
    %s292 = sadd.s32 %s291, 1
    %s293 = scalar_select %p290, %s291, %s292
    %p296 = pneg %p290
    %p297 = scmp.eq.s32.totalorder %s17, 1
    %p298 = por %p296, %p297
    %p299 = scmp.ne.s32.totalorder %s291, %s294
    %p300 = scmp.eq.s32.totalorder %s17, 0
    %p301 = por %p299, %p300
    %p302 = scmp.ne.s32.totalorder %s291, %s294
    %p303 = scmp.eq.s32.totalorder %s22, 1
    %p304 = por %p302, %p303
    %p305 = scmp.ne.s32.totalorder %s294, %s295
    %p306 = scmp.eq.s32.totalorder %s22, 0
    %p307 = por %p305, %p306
    %p308 = scmp.ne.s32.totalorder %s294, %s295
    %p309 = scmp.eq.s32.totalorder %s23, 1
    %p310 = por %p308, %p309
    %p312 = scmp.ne.s32.totalorder %s295, %s311
    %p313 = scmp.eq.s32.totalorder %s23, 0
    %p314 = por %p312, %p313
    %p315 = scmp.le.s32.totalorder 1, %s17
    %p316 = scmp.lt.s32.totalorder %s17, 3
    %p317 = pnand %p315, %p316
    %p318 = pneg %p317
    // Predicated region
    $region9: #{decoder_layer.4} parent=5 // pred_check
      _
    $region10: #{decoder_layer.4} parent=5 // pred_check_branch
      %320 = sbr.rel (%p317) target = $region12
    $region11: #{decoder_layer.4} parent=5 // pred_region
      %s321 = ssub.s32 %s17, 1
      // Predicated region
      $region13: #{decoder_layer.4} parent=11 // pred_check
        %p322 = pneg %p132
      $region14: #{decoder_layer.4} parent=11 // pred_check_branch
        %324 = sbr.rel (%p322) target = $region16
      $region15: #{decoder_layer.4} parent=11 // pred_region
        _
      $region16: #{decoder_layer.4} parent=11 // pred_fallthru
        _
      // Predicated region
      $region17: #{decoder_layer.4} parent=11 // pred_check
        %p325 = pneg %p153
      $region18: #{decoder_layer.4} parent=11 // pred_check_branch
        %327 = sbr.rel (%p325) target = $region20
      $region19: #{decoder_layer.4} parent=11 // pred_region
        _
      $region20: #{decoder_layer.4} parent=11 // pred_fallthru
        _
      // Predicated region
      $region21: #{decoder_layer.4} parent=11 // pred_check
        %p328 = pneg %p174
      $region22: #{decoder_layer.4} parent=11 // pred_check_branch
        %330 = sbr.rel (%p328) target = $region24
      $region23: #{decoder_layer.4} parent=11 // pred_region
        _
      $region24: #{decoder_layer.4} parent=11 // pred_fallthru
        _
      // Predicated region
      $region25: #{decoder_layer.4} parent=11 // pred_check
        %p331 = pneg %p195
      $region26: #{decoder_layer.4} parent=11 // pred_check_branch
        %333 = sbr.rel (%p331) target = $region28
      $region27: #{decoder_layer.4} parent=11 // pred_region
        _
      $region28: #{decoder_layer.4} parent=11 // pred_fallthru
        _
      // Predicated region
      $region29: #{decoder_layer.4} parent=11 // pred_check
        %p334 = pneg %p216
      $region30: #{decoder_layer.4} parent=11 // pred_check_branch
        %336 = sbr.rel (%p334) target = $region32
      $region31: #{decoder_layer.4} parent=11 // pred_region
        _
      $region32: #{decoder_layer.4} parent=11 // pred_fallthru
        _
      // Predicated region
      $region33: #{decoder_layer.4} parent=11 // pred_check
        %p337 = pneg %p237
      $region34: #{decoder_layer.4} parent=11 // pred_check_branch
        %339 = sbr.rel (%p337) target = $region36
      $region35: #{decoder_layer.4} parent=11 // pred_region
        _
      $region36: #{decoder_layer.4} parent=11 // pred_fallthru
        _
      // Predicated region
      $region37: #{decoder_layer.4} parent=11 // pred_check
        %p340 = pneg %p258
      $region38: #{decoder_layer.4} parent=11 // pred_check_branch
        %342 = sbr.rel (%p340) target = $region40
      $region39: #{decoder_layer.4} parent=11 // pred_region
        _
      $region40: #{decoder_layer.4} parent=11 // pred_fallthru
        _
      // Predicated region
      $region41: #{decoder_layer.4} parent=11 // pred_check
        %p343 = pneg %p279
      $region42: #{decoder_layer.4} parent=11 // pred_check_branch
        %345 = sbr.rel (%p343) target = $region44
      $region43: #{decoder_layer.4} parent=11 // pred_region
        _
      $region44: #{decoder_layer.4} parent=11 // pred_fallthru
        _
    $region12: #{decoder_layer.4} parent=5 // pred_fallthru
      _
    %p346 = scmp.lt.s32.totalorder %s17, 2
    // Predicated region
    $region45: #{decoder_layer.4} parent=5 // pred_check
      %p347 = pneg %p346
    $region46: #{decoder_layer.4} parent=5 // pred_check_branch
      %349 = sbr.rel (%p347) target = $region48
    $region47: #{decoder_layer.4} parent=5 // pred_region
      // Predicated region
      $region49: #{decoder_layer.4} parent=47 // pred_check
        %p350 = pneg %p51
      $region50: #{decoder_layer.4} parent=47 // pred_check_branch
        %352 = sbr.rel (%p350) target = $region52
      $region51: #{decoder_layer.4} parent=47 // pred_region
        %p353 = scmp.lt.s32.totalorder %s24, 1
        %s354 = scalar_select %p353, %s24, 1
        %p355 = scmp.lt.s32.totalorder %s25, 0
        %s356 = scalar_select %p355, %s25, 0
        %s357 = sadd.s32 %s356, %s354
        %s358 = smul.addr %s357, 8
        %s359 = scalar_lea.vmem %s0, %s358
      $region52: #{decoder_layer.4} parent=47 // pred_fallthru
        _
      // Predicated region
      $region53: #{decoder_layer.4} parent=47 // pred_check
        %p360 = pneg %p77
      $region54: #{decoder_layer.4} parent=47 // pred_check_branch
        %362 = sbr.rel (%p360) target = $region56
      $region55: #{decoder_layer.4} parent=47 // pred_region
        %p363 = scmp.lt.s32.totalorder %s24, 1
        %s364 = scalar_select %p363, %s24, 1
        %s365 = smul.addr %s364, 2
        %s366 = smul.addr %s365, 8
        %s367 = scalar_lea.vmem %s1, %s366
      $region56: #{decoder_layer.4} parent=47 // pred_fallthru
        _
      // Predicated region
      $region57: #{decoder_layer.4} parent=47 // pred_check
        %p368 = pneg %p105
      $region58: #{decoder_layer.4} parent=47 // pred_check_branch
        %370 = sbr.rel (%p368) target = $region60
      $region59: #{decoder_layer.4} parent=47 // pred_region
        %p371 = scmp.lt.s32.totalorder %s24, 1
        %s372 = scalar_select %p371, %s24, 1
        %p373 = scmp.lt.s32.totalorder %s25, 0
        %s374 = scalar_select %p373, %s25, 0
        %s375 = sadd.s32 %s374, %s372
        %s376 = smul.addr %s375, 8
        %s377 = scalar_lea.vmem %s2, %s376
      $region60: #{decoder_layer.4} parent=47 // pred_fallthru
        _
    $region48: #{decoder_layer.4} parent=5 // pred_fallthru
      _
    %p378 = scmp.le.s32.totalorder 1, %s17
    %p379 = scmp.lt.s32.totalorder %s17, 3
    %p380 = pnand %p378, %p379
    %p381 = pneg %p380
    // Predicated region
    $region61: #{decoder_layer.4} parent=5 // pred_check
      _
    $region62: #{decoder_layer.4} parent=5 // pred_check_branch
      %383 = sbr.rel (%p380) target = $region64
    $region63: #{decoder_layer.4} parent=5 // pred_region
      %s384 = ssub.s32 %s17, 1
      %p385 = scmp.lt.s32.totalorder %s26, 1
      %s386 = scalar_select %p385, %s26, 1
      %p387 = scmp.lt.s32.totalorder %s27, 0
      %s388 = scalar_select %p387, %s27, 0
      %s389 = sadd.s32 %s388, %s386
      %s390 = smul.addr %s389, 8
      %s391 = scalar_lea.vmem %s0, %s390
      %p392 = pneg %p57
      %p393 = pneg %p54
      %p394 = scmp.lt.s32.totalorder %s26, 1
      %s395 = scalar_select %p394, %s26, 1
      %s396 = smul.addr %s395, 2
      %s397 = smul.addr %s396, 8
      %s398 = scalar_lea.vmem %s1, %s397
      %p399 = pneg %p83
      %p400 = pneg %p80
      %p401 = scmp.lt.s32.totalorder %s26, 1
      %s402 = scalar_select %p401, %s26, 1
      %p403 = scmp.lt.s32.totalorder %s27, 0
      %s404 = scalar_select %p403, %s27, 0
      %s405 = sadd.s32 %s404, %s402
      %s406 = smul.addr %s405, 8
      %s407 = scalar_lea.vmem %s2, %s406
      %p408 = pneg %p111
      %p409 = pneg %p108
      %p410 = pneg %p132
      %p411 = pneg %p129
      %p412 = pneg %p153
      %p413 = pneg %p150
      %p414 = pneg %p174
      %p415 = pneg %p171
      %p416 = pneg %p195
      %p417 = pneg %p192
      %p418 = pneg %p216
      %p419 = pneg %p213
      %p420 = pneg %p237
      %p421 = pneg %p234
      %p422 = pneg %p258
      %p423 = pneg %p255
      %p424 = pneg %p279
      %p425 = pneg %p276
      %p426 = pneg %p307
      %p427 = pneg %p304
      %p428 = scmp.lt.s32.totalorder %s26, 1
      %s429 = scalar_select %p428, %s26, 1
      %p430 = scmp.lt.s32.totalorder %s27, 0
      %s431 = scalar_select %p430, %s27, 0
      %s432 = sadd.s32 %s431, %s429
      %s433 = smul.addr %s432, 8
      %s434 = scalar_lea.vmem %s11, %s433
      %p435 = scmp.lt.s32.totalorder %s26, 1
      %s436 = scalar_select %p435, %s26, 1
      %p437 = scmp.lt.s32.totalorder %s27, 0
      %s438 = scalar_select %p437, %s27, 0
      %s439 = sadd.s32 %s438, %s436
      %s440 = smul.addr %s439, 8
      %s441 = scalar_lea.vmem %s0, %s440
      %p442 = scmp.lt.s32.totalorder %s26, 1
      %s443 = scalar_select %p442, %s26, 1
      %s444 = smul.addr %s443, 2
      %s445 = smul.addr %s444, 8
      %s446 = scalar_lea.vmem %s1, %s445
      %p447 = scmp.lt.s32.totalorder %s26, 1
      %s448 = scalar_select %p447, %s26, 1
      %p449 = scmp.lt.s32.totalorder %s27, 0
      %s450 = scalar_select %p449, %s27, 0
      %s451 = sadd.s32 %s450, %s448
      %s452 = smul.addr %s451, 8
      %s453 = scalar_lea.vmem %s2, %s452
      %p454 = scmp.lt.s32.totalorder %s26, 1
      %s455 = scalar_select %p454, %s26, 1
      %p456 = scmp.lt.s32.totalorder %s27, 0
      %s457 = scalar_select %p456, %s27, 0
      %s458 = sadd.s32 %s457, %s455
      %s459 = smul.addr %s458, 8
      %s460 = scalar_lea.vmem %s11, %s459
      %v461 = vld [vmem:[%s441] sm:$0xff]
      %v462 = vld [vmem:[%s3] sm:$0x1]
      %v463 = vld [vmem:[%s4] sm:$0x1]
      %vm464 = vcmask 261120
      %v465 = vsel %vm464, %v461, 0.0
      %466 = vadd.xlane.f32.xlu0 %v465
      %v467 = vpop.xlane.xlu0 %466
      %v468 = vrcp.pop 32.0
      %v469 = vmul.f32 %v467, %v468
      %v470 = vsub.f32 %v461, %v469
      %v471 = vmul.f32 %v470, %v470
      %v472 = vsel %vm464, %v471, 0.0
      %473 = vadd.xlane.f32.xlu0 %v472
      %v474 = vpop.xlane.xlu0 %473
      %v475 = vmul.f32 %v474, %v468
      %v476 = vadd.f32 %v475, 1e-05
      %v477 = vrsqrt.pop %v476
      %v478 = vmul.f32 %v470, %v477
      %v480 = vlaneseq
      %v481 = vshrl.u32 %v480, 7
      %v482 = vsub.s32 0, %v481
      %v483 = vrot.slane %v462, %v482
      %v485 = vmul.f32 %v478, %v483
      %v487 = vlaneseq
      %v488 = vshrl.u32 %v487, 7
      %v489 = vsub.s32 0, %v488
      %v490 = vrot.slane %v463, %v489
      %v492 = vadd.f32 %v485, %v490
      %v493 = vld [vmem:[%s446] sm:$0xff]
      %v494 = vld [vmem:[%s446 + $0x8] sm:$0xff]
      %v495 = vld [vmem:[%s5] sm:$0xff]
      %v496 = vld [vmem:[%s5 + $0x8] sm:$0xff]
      %v497 = vld [vmem:[%s5 + $0x10] sm:$0xff]
      %v498 = vld [vmem:[%s5 + $0x18] sm:$0xff]
      %v499 = vld [vmem:[%s6] sm:$0x1]
      %v501 = vlaneseq
      %v502 = vshrl.u32 %v501, 7
      %v503 = vsub.s32 0, %v502
      %v504 = vrot.slane %v499, %v503
      %v507 = vsel %vm464, %v492, 0
      %509 = vmatprep.subr.mxu0 0.0
      %510 = vmatpush1.msra.mxu0 %v495
      %511 = vmatprep.subr.mxu0 0.0
      %512 = vmatpush1.msra.mxu0 %v496
      %513 = vmatprep.subr.mxu0 0.0
      %514 = vmatpush1.msra.mxu0 %v497
      %515 = vmatprep.subr.mxu0 0.0
      %516 = vmatpush1.msra.mxu0 %v498
      %517 = vmatprep.subr.mxu0 0.0
      %518 = vmatpush1.msra.mxu0 0.0
      %519 = vmatprep.subr.mxu0 0.0
      %520 = vmatpush1.msra.mxu0 0.0
      %521 = vmatprep.subr.mxu0 0.0
      %522 = vmatpush1.msra.mxu0 0.0
      %523 = vmatprep.subr.mxu0 0.0
      %524 = vmatpush1.msra.mxu0 0.0
      %525 = vmatprep.subr.mxu0 0.0
      %526 = vmatpush1.msra.mxu0 0.0
      %527 = vmatprep.subr.mxu0 0.0
      %528 = vmatpush1.msra.mxu0 0.0
      %529 = vmatprep.subr.mxu0 0.0
      %530 = vmatpush1.msra.mxu0 0.0
      %531 = vmatprep.subr.mxu0 0.0
      %532 = vmatpush1.msra.mxu0 0.0
      %533 = vmatprep.subr.mxu0 0.0
      %534 = vmatpush1.msra.mxu0 0.0
      %535 = vmatprep.subr.mxu0 0.0
      %536 = vmatpush1.msra.mxu0 0.0
      %537 = vmatprep.subr.mxu0 0.0
      %538 = vmatpush1.msra.mxu0 0.0
      %539 = vmatprep.subr.mxu0 0.0
      %540 = vmatpush1.msra.mxu0 0.0
      %541 = vmatprep.subr.mxu0 0.0
      %542 = vmatpush1.msra.mxu0 0.0
      %543 = vmatprep.subr.mxu0 0.0
      %544 = vmatpush1.msra.mxu0 0.0
      %545 = vmatprep.subr.mxu0 0.0
      %546 = vmatpush1.msra.mxu0 0.0
      %547 = vmatprep.subr.mxu0 0.0
      %548 = vmatpush1.msra.mxu0 0.0
      %549 = vmatprep.subr.mxu0 0.0
      %550 = vmatpush1.msra.mxu0 0.0
      %551 = vmatprep.subr.mxu0 0.0
      %552 = vmatpush1.msra.mxu0 0.0
      %553 = vmatprep.subr.mxu0 0.0
      %554 = vmatpush1.msra.mxu0 0.0
      %555 = vmatprep.subr.mxu0 0.0
      %556 = vmatpush1.msra.mxu0 0.0
      %557 = vmatprep.subr.mxu0 0.0
      %558 = vmatpush1.msra.mxu0 0.0
      %559 = vmatprep.subr.mxu0 0.0
      %560 = vmatpush1.msra.mxu0 0.0
      %561 = vmatprep.subr.mxu0 0.0
      %562 = vmatpush1.msra.mxu0 0.0
      %563 = vmatprep.subr.mxu0 0.0
      %564 = vmatpush1.msra.mxu0 0.0
      %565 = vmatprep.subr.mxu0 0.0
      %566 = vmatpush1.msra.mxu0 0.0
      %567 = vmatprep.subr.mxu0 0.0
      %568 = vmatpush1.msra.mxu0 0.0
      %569 = vmatprep.subr.mxu0 0.0
      %570 = vmatpush1.msra.mxu0 0.0
      %571 = vmatprep.subr.mxu0 0.0
      %572 = vmatpush1.msra.mxu0 0.0
      %573 = vmatprep.mubr.f32.mxu0 0.0
      %574 = vmatmul.mubr.f32.gmra.mrb[0].mxu0 %v507
      %v575 = vpop.f32.mrb[0].mxu0
      %v576 = vadd.f32 %v504, %v575
      %v577 = vpop.f32.mrb[0].mxu0
      %578 = vdwg.mxu0
      %v579 = vmul.f32 %v576, 0.35355338
      %v580 = vld [vmem:[%s7] sm:$0xff]
      %v581 = vld [vmem:[%s7 + $0x8] sm:$0xff]
      %v582 = vld [vmem:[%s7 + $0x10] sm:$0xff]
      %v583 = vld [vmem:[%s7 + $0x18] sm:$0xff]
      %v584 = vld [vmem:[%s8] sm:$0x1]
      %v586 = vlaneseq
      %v587 = vshrl.u32 %v586, 7
      %v588 = vsub.s32 0, %v587
      %v589 = vrot.slane %v584, %v588
      %v592 = vsel %vm464, %v493, 0
      %v595 = vsel %vm464, %v494, 0
      %597 = vmatprep.subr.mxu0 0.0
      %598 = vmatpush1.msra.mxu0 %v580
      %599 = vmatprep.subr.mxu0 0.0
      %600 = vmatpush1.msra.mxu0 %v581
      %601 = vmatprep.subr.mxu0 0.0
      %602 = vmatpush1.msra.mxu0 %v582
      %603 = vmatprep.subr.mxu0 0.0
      %604 = vmatpush1.msra.mxu0 %v583
      %605 = vmatprep.subr.mxu0 0.0
      %606 = vmatpush1.msra.mxu0 0.0
      %607 = vmatprep.subr.mxu0 0.0
      %608 = vmatpush1.msra.mxu0 0.0
      %609 = vmatprep.subr.mxu0 0.0
      %610 = vmatpush1.msra.mxu0 0.0
      %611 = vmatprep.subr.mxu0 0.0
      %612 = vmatpush1.msra.mxu0 0.0
      %613 = vmatprep.subr.mxu0 0.0
      %614 = vmatpush1.msra.mxu0 0.0
      %615 = vmatprep.subr.mxu0 0.0
      %616 = vmatpush1.msra.mxu0 0.0
      %617 = vmatprep.subr.mxu0 0.0
      %618 = vmatpush1.msra.mxu0 0.0
      %619 = vmatprep.subr.mxu0 0.0
      %620 = vmatpush1.msra.mxu0 0.0
      %621 = vmatprep.subr.mxu0 0.0
      %622 = vmatpush1.msra.mxu0 0.0
      %623 = vmatprep.subr.mxu0 0.0
      %624 = vmatpush1.msra.mxu0 0.0
      %625 = vmatprep.subr.mxu0 0.0
      %626 = vmatpush1.msra.mxu0 0.0
      %627 = vmatprep.subr.mxu0 0.0
      %628 = vmatpush1.msra.mxu0 0.0
      %629 = vmatprep.subr.mxu0 0.0
      %630 = vmatpush1.msra.mxu0 0.0
      %631 = vmatprep.subr.mxu0 0.0
      %632 = vmatpush1.msra.mxu0 0.0
      %633 = vmatprep.subr.mxu0 0.0
      %634 = vmatpush1.msra.mxu0 0.0
      %635 = vmatprep.subr.mxu0 0.0
      %636 = vmatpush1.msra.mxu0 0.0
      %637 = vmatprep.subr.mxu0 0.0
      %638 = vmatpush1.msra.mxu0 0.0
      %639 = vmatprep.subr.mxu0 0.0
      %640 = vmatpush1.msra.mxu0 0.0
      %641 = vmatprep.subr.mxu0 0.0
      %642 = vmatpush1.msra.mxu0 0.0
      %643 = vmatprep.subr.mxu0 0.0
      %644 = vmatpush1.msra.mxu0 0.0
      %645 = vmatprep.subr.mxu0 0.0
      %646 = vmatpush1.msra.mxu0 0.0
      %647 = vmatprep.subr.mxu0 0.0
      %648 = vmatpush1.msra.mxu0 0.0
      %649 = vmatprep.subr.mxu0 0.0
      %650 = vmatpush1.msra.mxu0 0.0
      %651 = vmatprep.subr.mxu0 0.0
      %652 = vmatpush1.msra.mxu0 0.0
      %653 = vmatprep.subr.mxu0 0.0
      %654 = vmatpush1.msra.mxu0 0.0
      %655 = vmatprep.subr.mxu0 0.0
      %656 = vmatpush1.msra.mxu0 0.0
      %657 = vmatprep.subr.mxu0 0.0
      %658 = vmatpush1.msra.mxu0 0.0
      %659 = vmatprep.subr.mxu0 0.0
      %660 = vmatpush1.msra.mxu0 0.0
      %661 = vmatprep.mubr.f32.mxu0 0.0
      %662 = vmatmul.mubr.f32.gmra.mrb[0].mxu0 %v592
      %v663 = vpop.f32.mrb[0].mxu0
      %v664 = vadd.f32 %v589, %v663
      %v665 = vpop.f32.mrb[0].mxu0
      %666 = vmatprep.mubr.f32.mxu0 0.0
      %667 = vmatmul.mubr.f32.gmra.mrb[0].mxu0 %v595
      %v668 = vpop.f32.mrb[0].mxu0
      %v669 = vadd.f32 %v589, %v668
      %v670 = vpop.f32.mrb[0].mxu0
      %671 = vdwg.mxu0
      %v672 = vld [vmem:[%s453] sm:$0xff]
      %vm673 = vcmask 64512
      %v675 = vsel %vm673, %v579, 0
      %v678 = vsel %vm673, %v664, 0
      %v681 = vsel %vm673, %v669, 0
      %683 = vmatprep.subr.mxu0 0.0
      %684 = vmatpush1.xpose.msra.mxu0 %v678
      %685 = vmatprep.subr.mxu0 0.0
      %686 = vmatpush1.xpose.msra.mxu0 %v681
      %687 = vmatprep.subr.mxu0 0.0
      %688 = vmatpush1.xpose.msra.mxu0 0.0
      %689 = vmatprep.subr.mxu0 0.0
      %690 = vmatpush1.xpose.msra.mxu0 0.0
      %691 = vmatprep.subr.mxu0 0.0
      %692 = vmatpush1.xpose.msra.mxu0 0.0
      %693 = vmatprep.subr.mxu0 0.0
      %694 = vmatpush1.xpose.msra.mxu0 0.0
      %695 = vmatprep.subr.mxu0 0.0
      %696 = vmatpush1.xpose.msra.mxu0 0.0
      %697 = vmatprep.subr.mxu0 0.0
      %698 = vmatpush1.xpose.msra.mxu0 0.0
      %699 = vmatprep.subr.mxu0 0.0
      %700 = vmatpush1.xpose.msra.mxu0 0.0
      %701 = vmatprep.subr.mxu0 0.0
      %702 = vmatpush1.xpose.msra.mxu0 0.0
      %703 = vmatprep.subr.mxu0 0.0
      %704 = vmatpush1.xpose.msra.mxu0 0.0
      %705 = vmatprep.subr.mxu0 0.0
      %706 = vmatpush1.xpose.msra.mxu0 0.0
      %707 = vmatprep.subr.mxu0 0.0
      %708 = vmatpush1.xpose.msra.mxu0 0.0
      %709 = vmatprep.subr.mxu0 0.0
      %710 = vmatpush1.xpose.msra.mxu0 0.0
      %711 = vmatprep.subr.mxu0 0.0
      %712 = vmatpush1.xpose.msra.mxu0 0.0
      %713 = vmatprep.subr.mxu0 0.0
      %714 = vmatpush1.xpose.msra.mxu0 0.0
      %715 = vmatprep.subr.mxu0 0.0
      %716 = vmatpush1.xpose.msra.mxu0 0.0
      %717 = vmatprep.subr.mxu0 0.0
      %718 = vmatpush1.xpose.msra.mxu0 0.0
      %719 = vmatprep.subr.mxu0 0.0
      %720 = vmatpush1.xpose.msra.mxu0 0.0
      %721 = vmatprep.subr.mxu0 0.0
      %722 = vmatpush1.xpose.msra.mxu0 0.0
      %723 = vmatprep.subr.mxu0 0.0
      %724 = vmatpush1.xpose.msra.mxu0 0.0
      %725 = vmatprep.subr.mxu0 0.0
      %726 = vmatpush1.xpose.msra.mxu0 0.0
      %727 = vmatprep.subr.mxu0 0.0
      %728 = vmatpush1.xpose.msra.mxu0 0.0
      %729 = vmatprep.subr.mxu0 0.0
      %730 = vmatpush1.xpose.msra.mxu0 0.0
      %731 = vmatprep.subr.mxu0 0.0
      %732 = vmatpush1.xpose.msra.mxu0 0.0
      %733 = vmatprep.subr.mxu0 0.0
      %734 = vmatpush1.xpose.msra.mxu0 0.0
      %735 = vmatprep.subr.mxu0 0.0
      %736 = vmatpush1.xpose.msra.mxu0 0.0
      %737 = vmatprep.subr.mxu0 0.0
      %738 = vmatpush1.xpose.msra.mxu0 0.0
      %739 = vmatprep.subr.mxu0 0.0
      %740 = vmatpush1.xpose.msra.mxu0 0.0
      %741 = vmatprep.subr.mxu0 0.0
      %742 = vmatpush1.xpose.msra.mxu0 0.0
      %743 = vmatprep.subr.mxu0 0.0
      %744 = vmatpush1.xpose.msra.mxu0 0.0
      %745 = vmatprep.subr.mxu0 0.0
      %746 = vmatpush1.xpose.msra.mxu0 0.0
      %747 = vmatprep.mubr.f32.mxu0 0.0
      %748 = vmatmul.mubr.f32.gmra.mrb[0].mxu0 %v675
      %v749 = vpop.f32.mrb[0].mxu0
      %v750 = vadd.f32 %v672, %v749
      %v751 = vpop.f32.mrb[0].mxu0
      %752 = vdwg.mxu0
      %vm753 = vcmask 130048
      %v754 = vsel %vm753, %v750, -inf
      %755 = vmax.xlane.f32.xlu0 %v754
      %v756 = vpop.xlane.xlu0 %755
      %v757 = vsub.f32 %v750, %v756
      %v758 = vmul.f32 %v757, 1.442695
      %v759 = vpow.pop %v758
      %v760 = vsel %vm753, %v759, 0.0
      %761 = vadd.xlane.f32.xlu0 %v760
      %v762 = vpop.xlane.xlu0 %761
      %v763 = vrcp.pop %v762
      %v764 = vmul.f32 %v759, %v763
      %765 = vrot.lane.b32.xlu0 %v664, 96
      %v766 = vpop.permute.xlu0 %765
      %767 = vrot.lane.b32.xlu0 %v669, 96
      %v768 = vpop.permute.xlu0 %767
      %v772 = vsel %vm753, %v764, 0
      %774 = vmatprep.subr.mxu0 0.0
      %775 = vmatpush1.msra.mxu0 %v766
      %776 = vmatprep.subr.mxu0 0.0
      %777 = vmatpush1.msra.mxu0 %v768
      %778 = vmatprep.subr.mxu0 0.0
      %779 = vmatpush1.msra.mxu0 0.0
      %780 = vmatprep.subr.mxu0 0.0
      %781 = vmatpush1.msra.mxu0 0.0
      %782 = vmatprep.subr.mxu0 0.0
      %783 = vmatpush1.msra.mxu0 0.0
      %784 = vmatprep.subr.mxu0 0.0
      %785 = vmatpush1.msra.mxu0 0.0
      %786 = vmatprep.subr.mxu0 0.0
      %787 = vmatpush1.msra.mxu0 0.0
      %788 = vmatprep.subr.mxu0 0.0
      %789 = vmatpush1.msra.mxu0 0.0
      %790 = vmatprep.subr.mxu0 0.0
      %791 = vmatpush1.msra.mxu0 0.0
      %792 = vmatprep.subr.mxu0 0.0
      %793 = vmatpush1.msra.mxu0 0.0
      %794 = vmatprep.subr.mxu0 0.0
      %795 = vmatpush1.msra.mxu0 0.0
      %796 = vmatprep.subr.mxu0 0.0
      %797 = vmatpush1.msra.mxu0 0.0
      %798 = vmatprep.subr.mxu0 0.0
      %799 = vmatpush1.msra.mxu0 0.0
      %800 = vmatprep.subr.mxu0 0.0
      %801 = vmatpush1.msra.mxu0 0.0
      %802 = vmatprep.subr.mxu0 0.0
      %803 = vmatpush1.msra.mxu0 0.0
      %804 = vmatprep.subr.mxu0 0.0
      %805 = vmatpush1.msra.mxu0 0.0
      %806 = vmatprep.subr.mxu0 0.0
      %807 = vmatpush1.msra.mxu0 0.0
      %808 = vmatprep.subr.mxu0 0.0
      %809 = vmatpush1.msra.mxu0 0.0
      %810 = vmatprep.subr.mxu0 0.0
      %811 = vmatpush1.msra.mxu0 0.0
      %812 = vmatprep.subr.mxu0 0.0
      %813 = vmatpush1.msra.mxu0 0.0
      %814 = vmatprep.subr.mxu0 0.0
      %815 = vmatpush1.msra.mxu0 0.0
      %816 = vmatprep.subr.mxu0 0.0
      %817 = vmatpush1.msra.mxu0 0.0
      %818 = vmatprep.subr.mxu0 0.0
      %819 = vmatpush1.msra.mxu0 0.0
      %820 = vmatprep.subr.mxu0 0.0
      %821 = vmatpush1.msra.mxu0 0.0
      %822 = vmatprep.subr.mxu0 0.0
      %823 = vmatpush1.msra.mxu0 0.0
      %824 = vmatprep.subr.mxu0 0.0
      %825 = vmatpush1.msra.mxu0 0.0
      %826 = vmatprep.subr.mxu0 0.0
      %827 = vmatpush1.msra.mxu0 0.0
      %828 = vmatprep.subr.mxu0 0.0
      %829 = vmatpush1.msra.mxu0 0.0
      %830 = vmatprep.subr.mxu0 0.0
      %831 = vmatpush1.msra.mxu0 0.0
      %832 = vmatprep.subr.mxu0 0.0
      %833 = vmatpush1.msra.mxu0 0.0
      %834 = vmatprep.subr.mxu0 0.0
      %835 = vmatpush1.msra.mxu0 0.0
      %836 = vmatprep.subr.mxu0 0.0
      %837 = vmatpush1.msra.mxu0 0.0
      %838 = vmatprep.mubr.f32.mxu0 0.0
      %839 = vmatmul.mubr.f32.gmra.mrb[0].mxu0 %v772
      %v840 = vpop.f32.mrb[0].mxu0
      %v841 = vadd.f32 0.0, %v840
      %v842 = vpop.f32.mrb[0].mxu0
      %843 = vdwg.mxu0
      %844 = vrot.lane.b32.xlu0 %v579, 120
      %v845 = vpop.permute.xlu0 %844
      %846 = vrot.lane.b32.xlu0 %v664, 120
      %v847 = vpop.permute.xlu0 %846
      %848 = vrot.lane.b32.xlu0 %v669, 120
      %v849 = vpop.permute.xlu0 %848
      %v850 = vsel %vm673, %v845, 0
      %v852 = vsel %vm673, %v847, 0
      %v854 = vsel %vm673, %v849, 0
      %856 = vmatprep.subr.mxu0 0.0
      %857 = vmatpush1.xpose.msra.mxu0 %v852
      %858 = vmatprep.subr.mxu0 0.0
      %859 = vmatpush1.xpose.msra.mxu0 %v854
      %860 = vmatprep.subr.mxu0 0.0
      %861 = vmatpush1.xpose.msra.mxu0 0.0
      %862 = vmatprep.subr.mxu0 0.0
      %863 = vmatpush1.xpose.msra.mxu0 0.0
      %864 = vmatprep.subr.mxu0 0.0
      %865 = vmatpush1.xpose.msra.mxu0 0.0
      %866 = vmatprep.subr.mxu0 0.0
      %867 = vmatpush1.xpose.msra.mxu0 0.0
      %868 = vmatprep.subr.mxu0 0.0
      %869 = vmatpush1.xpose.msra.mxu0 0.0
      %870 = vmatprep.subr.mxu0 0.0
      %871 = vmatpush1.xpose.msra.mxu0 0.0
      %872 = vmatprep.subr.mxu0 0.0
      %873 = vmatpush1.xpose.msra.mxu0 0.0
      %874 = vmatprep.subr.mxu0 0.0
      %875 = vmatpush1.xpose.msra.mxu0 0.0
      %876 = vmatprep.subr.mxu0 0.0
      %877 = vmatpush1.xpose.msra.mxu0 0.0
      %878 = vmatprep.subr.mxu0 0.0
      %879 = vmatpush1.xpose.msra.mxu0 0.0
      %880 = vmatprep.subr.mxu0 0.0
      %881 = vmatpush1.xpose.msra.mxu0 0.0
      %882 = vmatprep.subr.mxu0 0.0
      %883 = vmatpush1.xpose.msra.mxu0 0.0
      %884 = vmatprep.subr.mxu0 0.0
      %885 = vmatpush1.xpose.msra.mxu0 0.0
      %886 = vmatprep.subr.mxu0 0.0
      %887 = vmatpush1.xpose.msra.mxu0 0.0
      %888 = vmatprep.subr.mxu0 0.0
      %889 = vmatpush1.xpose.msra.mxu0 0.0
      %890 = vmatprep.subr.mxu0 0.0
      %891 = vmatpush1.xpose.msra.mxu0 0.0
      %892 = vmatprep.subr.mxu0 0.0
      %893 = vmatpush1.xpose.msra.mxu0 0.0
      %894 = vmatprep.subr.mxu0 0.0
      %895 = vmatpush1.xpose.msra.mxu0 0.0
      %896 = vmatprep.subr.mxu0 0.0
      %897 = vmatpush1.xpose.msra.mxu0 0.0
      %898 = vmatprep.subr.mxu0 0.0
      %899 = vmatpush1.xpose.msra.mxu0 0.0
      %900 = vmatprep.subr.mxu0 0.0
      %901 = vmatpush1.xpose.msra.mxu0 0.0
      %902 = vmatprep.subr.mxu0 0.0
      %903 = vmatpush1.xpose.msra.mxu0 0.0
      %904 = vmatprep.subr.mxu0 0.0
      %905 = vmatpush1.xpose.msra.mxu0 0.0
      %906 = vmatprep.subr.mxu0 0.0
      %907 = vmatpush1.xpose.msra.mxu0 0.0
      %908 = vmatprep.subr.mxu0 0.0
      %909 = vmatpush1.xpose.msra.mxu0 0.0
      %910 = vmatprep.subr.mxu0 0.0
      %911 = vmatpush1.xpose.msra.mxu0 0.0
      %912 = vmatprep.subr.mxu0 0.0
      %913 = vmatpush1.xpose.msra.mxu0 0.0
      %914 = vmatprep.subr.mxu0 0.0
      %915 = vmatpush1.xpose.msra.mxu0 0.0
      %916 = vmatprep.subr.mxu0 0.0
      %917 = vmatpush1.xpose.msra.mxu0 0.0
      %918 = vmatprep.subr.mxu0 0.0
      %919 = vmatpush1.xpose.msra.mxu0 0.0
      %920 = vmatprep.mubr.f32.mxu0 0.0
      %921 = vmatmul.mubr.f32.gmra.mrb[0].mxu0 %v850
      %v922 = vpop.f32.mrb[0].mxu0
      %v923 = vadd.f32 %v672, %v922
      %v924 = vpop.f32.mrb[0].mxu0
      %925 = vdwg.mxu0
      %v926 = vsel %vm753, %v923, -inf
      %927 = vmax.xlane.f32.xlu0 %v926
      %v928 = vpop.xlane.xlu0 %927
      %v929 = vsub.f32 %v923, %v928
      %v930 = vmul.f32 %v929, 1.442695
      %v931 = vpow.pop %v930
      %v932 = vsel %vm753, %v931, 0.0
      %933 = vadd.xlane.f32.xlu0 %v932
      %v934 = vpop.xlane.xlu0 %933
      %v935 = vrcp.pop %v934
      %v936 = vmul.f32 %v931, %v935
      %937 = vrot.lane.b32.xlu0 %v664, 88
      %v938 = vpop.permute.xlu0 %937
      %939 = vrot.lane.b32.xlu0 %v669, 88
      %v940 = vpop.permute.xlu0 %939
      %v944 = vsel %vm753, %v936, 0
      %946 = vmatprep.subr.mxu0 0.0
      %947 = vmatpush1.msra.mxu0 %v938
      %948 = vmatprep.subr.mxu0 0.0
      %949 = vmatpush1.msra.mxu0 %v940
      %950 = vmatprep.subr.mxu0 0.0
      %951 = vmatpush1.msra.mxu0 0.0
      %952 = vmatprep.subr.mxu0 0.0
      %953 = vmatpush1.msra.mxu0 0.0
      %954 = vmatprep.subr.mxu0 0.0
      %955 = vmatpush1.msra.mxu0 0.0
      %956 = vmatprep.subr.mxu0 0.0
      %957 = vmatpush1.msra.mxu0 0.0
      %958 = vmatprep.subr.mxu0 0.0
      %959 = vmatpush1.msra.mxu0 0.0
      %960 = vmatprep.subr.mxu0 0.0
      %961 = vmatpush1.msra.mxu0 0.0
      %962 = vmatprep.subr.mxu0 0.0
      %963 = vmatpush1.msra.mxu0 0.0
      %964 = vmatprep.subr.mxu0 0.0
      %965 = vmatpush1.msra.mxu0 0.0
      %966 = vmatprep.subr.mxu0 0.0
      %967 = vmatpush1.msra.mxu0 0.0
      %968 = vmatprep.subr.mxu0 0.0
      %969 = vmatpush1.msra.mxu0 0.0
      %970 = vmatprep.subr.mxu0 0.0
      %971 = vmatpush1.msra.mxu0 0.0
      %972 = vmatprep.subr.mxu0 0.0
      %973 = vmatpush1.msra.mxu0 0.0
      %974 = vmatprep.subr.mxu0 0.0
      %975 = vmatpush1.msra.mxu0 0.0
      %976 = vmatprep.subr.mxu0 0.0
      %977 = vmatpush1.msra.mxu0 0.0
      %978 = vmatprep.subr.mxu0 0.0
      %979 = vmatpush1.msra.mxu0 0.0
      %980 = vmatprep.subr.mxu0 0.0
      %981 = vmatpush1.msra.mxu0 0.0
      %982 = vmatprep.subr.mxu0 0.0
      %983 = vmatpush1.msra.mxu0 0.0
      %984 = vmatprep.subr.mxu0 0.0
      %985 = vmatpush1.msra.mxu0 0.0
      %986 = vmatprep.subr.mxu0 0.0
      %987 = vmatpush1.msra.mxu0 0.0
      %988 = vmatprep.subr.mxu0 0.0
      %989 = vmatpush1.msra.mxu0 0.0
      %990 = vmatprep.subr.mxu0 0.0
      %991 = vmatpush1.msra.mxu0 0.0
      %992 = vmatprep.subr.mxu0 0.0
      %993 = vmatpush1.msra.mxu0 0.0
      %994 = vmatprep.subr.mxu0 0.0
      %995 = vmatpush1.msra.mxu0 0.0
      %996 = vmatprep.subr.mxu0 0.0
      %997 = vmatpush1.msra.mxu0 0.0
      %998 = vmatprep.subr.mxu0 0.0
      %999 = vmatpush1.msra.mxu0 0.0
      %1000 = vmatprep.subr.mxu0 0.0
      %1001 = vmatpush1.msra.mxu0 0.0
      %1002 = vmatprep.subr.mxu0 0.0
      %1003 = vmatpush1.msra.mxu0 0.0
      %1004 = vmatprep.subr.mxu0 0.0
      %1005 = vmatpush1.msra.mxu0 0.0
      %1006 = vmatprep.subr.mxu0 0.0
      %1007 = vmatpush1.msra.mxu0 0.0
      %1008 = vmatprep.subr.mxu0 0.0
      %1009 = vmatpush1.msra.mxu0 0.0
      %1010 = vmatprep.mubr.f32.mxu0 0.0
      %1011 = vmatmul.mubr.f32.gmra.mrb[0].mxu0 %v944
      %v1012 = vpop.f32.mrb[0].mxu0
      %v1013 = vadd.f32 0.0, %v1012
      %v1014 = vpop.f32.mrb[0].mxu0
      %1015 = vdwg.mxu0
      %1016 = vrot.lane.b32.xlu0 %v579, 112
      %v1017 = vpop.permute.xlu0 %1016
      %1018 = vrot.lane.b32.xlu0 %v664, 112
      %v1019 = vpop.permute.xlu0 %1018
      %1020 = vrot.lane.b32.xlu0 %v669, 112
      %v1021 = vpop.permute.xlu0 %1020
      %v1022 = vsel %vm673, %v1017, 0
      %v1024 = vsel %vm673, %v1019, 0
      %v1026 = vsel %vm673, %v1021, 0
      %1028 = vmatprep.subr.mxu0 0.0
      %1029 = vmatpush1.xpose.msra.mxu0 %v1024
      %1030 = vmatprep.subr.mxu0 0.0
      %1031 = vmatpush1.xpose.msra.mxu0 %v1026
      %1032 = vmatprep.subr.mxu0 0.0
      %1033 = vmatpush1.xpose.msra.mxu0 0.0
      %1034 = vmatprep.subr.mxu0 0.0
      %1035 = vmatpush1.xpose.msra.mxu0 0.0
      %1036 = vmatprep.subr.mxu0 0.0
      %1037 = vmatpush1.xpose.msra.mxu0 0.0
      %1038 = vmatprep.subr.mxu0 0.0
      %1039 = vmatpush1.xpose.msra.mxu0 0.0
      %1040 = vmatprep.subr.mxu0 0.0
      %1041 = vmatpush1.xpose.msra.mxu0 0.0
      %1042 = vmatprep.subr.mxu0 0.0
      %1043 = vmatpush1.xpose.msra.mxu0 0.0
      %1044 = vmatprep.subr.mxu0 0.0
      %1045 = vmatpush1.xpose.msra.mxu0 0.0
      %1046 = vmatprep.subr.mxu0 0.0
      %1047 = vmatpush1.xpose.msra.mxu0 0.0
      %1048 = vmatprep.subr.mxu0 0.0
      %1049 = vmatpush1.xpose.msra.mxu0 0.0
      %1050 = vmatprep.subr.mxu0 0.0
      %1051 = vmatpush1.xpose.msra.mxu0 0.0
      %1052 = vmatprep.subr.mxu0 0.0
      %1053 = vmatpush1.xpose.msra.mxu0 0.0
      %1054 = vmatprep.subr.mxu0 0.0
      %1055 = vmatpush1.xpose.msra.mxu0 0.0
      %1056 = vmatprep.subr.mxu0 0.0
      %1057 = vmatpush1.xpose.msra.mxu0 0.0
      %1058 = vmatprep.subr.mxu0 0.0
      %1059 = vmatpush1.xpose.msra.mxu0 0.0
      %1060 = vmatprep.subr.mxu0 0.0
      %1061 = vmatpush1.xpose.msra.mxu0 0.0
      %1062 = vmatprep.subr.mxu0 0.0
      %1063 = vmatpush1.xpose.msra.mxu0 0.0
      %1064 = vmatprep.subr.mxu0 0.0
      %1065 = vmatpush1.xpose.msra.mxu0 0.0
      %1066 = vmatprep.subr.mxu0 0.0
      %1067 = vmatpush1.xpose.msra.mxu0 0.0
      %1068 = vmatprep.subr.mxu0 0.0
      %1069 = vmatpush1.xpose.msra.mxu0 0.0
      %1070 = vmatprep.subr.mxu0 0.0
      %1071 = vmatpush1.xpose.msra.mxu0 0.0
      %1072 = vmatprep.subr.mxu0 0.0
      %1073 = vmatpush1.xpose.msra.mxu0 0.0
      %1074 = vmatprep.subr.mxu0 0.0
      %1075 = vmatpush1.xpose.msra.mxu0 0.0
      %1076 = vmatprep.subr.mxu0 0.0
      %1077 = vmatpush1.xpose.msra.mxu0 0.0
      %1078 = vmatprep.subr.mxu0 0.0
      %1079 = vmatpush1.xpose.msra.mxu0 0.0
      %1080 = vmatprep.subr.mxu0 0.0
      %1081 = vmatpush1.xpose.msra.mxu0 0.0
      %1082 = vmatprep.subr.mxu0 0.0
      %1083 = vmatpush1.xpose.msra.mxu0 0.0
      %1084 = vmatprep.subr.mxu0 0.0
      %1085 = vmatpush1.xpose.msra.mxu0 0.0
      %1086 = vmatprep.subr.mxu0 0.0
      %1087 = vmatpush1.xpose.msra.mxu0 0.0
      %1088 = vmatprep.subr.mxu0 0.0
      %1089 = vmatpush1.xpose.msra.mxu0 0.0
      %1090 = vmatprep.subr.mxu0 0.0
      %1091 = vmatpush1.xpose.msra.mxu0 0.0
      %1092 = vmatprep.mubr.f32.mxu0 0.0
      %1093 = vmatmul.mubr.f32.gmra.mrb[0].mxu0 %v1022
      %v1094 = vpop.f32.mrb[0].mxu0
      %v1095 = vadd.f32 %v672, %v1094
      %v1096 = vpop.f32.mrb[0].mxu0
      %1097 = vdwg.mxu0
      %v1098 = vsel %vm753, %v1095, -inf
      %1099 = vmax.xlane.f32.xlu0 %v1098
      %v1100 = vpop.xlane.xlu0 %1099
      %v1101 = vsub.f32 %v1095, %v1100
      %v1102 = vmul.f32 %v1101, 1.442695
      %v1103 = vpow.pop %v1102
      %v1104 = vsel %vm753, %v1103, 0.0
      %1105 = vadd.xlane.f32.xlu0 %v1104
      %v1106 = vpop.xlane.xlu0 %1105
      %v1107 = vrcp.pop %v1106
      %v1108 = vmul.f32 %v1103, %v1107
      %1109 = vrot.lane.b32.xlu0 %v664, 80
      %v1110 = vpop.permute.xlu0 %1109
      %1111 = vrot.lane.b32.xlu0 %v669, 80
      %v1112 = vpop.permute.xlu0 %1111
      %v1116 = vsel %vm753, %v1108, 0
      %1118 = vmatprep.subr.mxu0 0.0
      %1119 = vmatpush1.msra.mxu0 %v1110
      %1120 = vmatprep.subr.mxu0 0.0
      %1121 = vmatpush1.msra.mxu0 %v1112
      %1122 = vmatprep.subr.mxu0 0.0
      %1123 = vmatpush1.msra.mxu0 0.0
      %1124 = vmatprep.subr.mxu0 0.0
      %1125 = vmatpush1.msra.mxu0 0.0
      %1126 = vmatprep.subr.mxu0 0.0
      %1127 = vmatpush1.msra.mxu0 0.0
      %1128 = vmatprep.subr.mxu0 0.0
      %1129 = vmatpush1.msra.mxu0 0.0
      %1130 = vmatprep.subr.mxu0 0.0
      %1131 = vmatpush1.msra.mxu0 0.0
      %1132 = vmatprep.subr.mxu0 0.0
      %1133 = vmatpush1.msra.mxu0 0.0
      %1134 = vmatprep.subr.mxu0 0.0
      %1135 = vmatpush1.msra.mxu0 0.0
      %1136 = vmatprep.subr.mxu0 0.0
      %1137 = vmatpush1.msra.mxu0 0.0
      %1138 = vmatprep.subr.mxu0 0.0
      %1139 = vmatpush1.msra.mxu0 0.0
      %1140 = vmatprep.subr.mxu0 0.0
      %1141 = vmatpush1.msra.mxu0 0.0
      %1142 = vmatprep.subr.mxu0 0.0
      %1143 = vmatpush1.msra.mxu0 0.0
      %1144 = vmatprep.subr.mxu0 0.0
      %1145 = vmatpush1.msra.mxu0 0.0
      %1146 = vmatprep.subr.mxu0 0.0
      %1147 = vmatpush1.msra.mxu0 0.0
      %1148 = vmatprep.subr.mxu0 0.0
      %1149 = vmatpush1.msra.mxu0 0.0
      %1150 = vmatprep.subr.mxu0 0.0
      %1151 = vmatpush1.msra.mxu0 0.0
      %1152 = vmatprep.subr.mxu0 0.0
      %1153 = vmatpush1.msra.mxu0 0.0
      %1154 = vmatprep.subr.mxu0 0.0
      %1155 = vmatpush1.msra.mxu0 0.0
      %1156 = vmatprep.subr.mxu0 0.0
      %1157 = vmatpush1.msra.mxu0 0.0
      %1158 = vmatprep.subr.mxu0 0.0
      %1159 = vmatpush1.msra.mxu0 0.0
      %1160 = vmatprep.subr.mxu0 0.0
      %1161 = vmatpush1.msra.mxu0 0.0
      %1162 = vmatprep.subr.mxu0 0.0
      %1163 = vmatpush1.msra.mxu0 0.0
      %1164 = vmatprep.subr.mxu0 0.0
      %1165 = vmatpush1.msra.mxu0 0.0
      %1166 = vmatprep.subr.mxu0 0.0
      %1167 = vmatpush1.msra.mxu0 0.0
      %1168 = vmatprep.subr.mxu0 0.0
      %1169 = vmatpush1.msra.mxu0 0.0
      %1170 = vmatprep.subr.mxu0 0.0
      %1171 = vmatpush1.msra.mxu0 0.0
      %1172 = vmatprep.subr.mxu0 0.0
      %1173 = vmatpush1.msra.mxu0 0.0
      %1174 = vmatprep.subr.mxu0 0.0
      %1175 = vmatpush1.msra.mxu0 0.0
      %1176 = vmatprep.subr.mxu0 0.0
      %1177 = vmatpush1.msra.mxu0 0.0
      %1178 = vmatprep.subr.mxu0 0.0
      %1179 = vmatpush1.msra.mxu0 0.0
      %1180 = vmatprep.subr.mxu0 0.0
      %1181 = vmatpush1.msra.mxu0 0.0
      %1182 = vmatprep.mubr.f32.mxu0 0.0
      %1183 = vmatmul.mubr.f32.gmra.mrb[0].mxu0 %v1116
      %v1184 = vpop.f32.mrb[0].mxu0
      %v1185 = vadd.f32 0.0, %v1184
      %v1186 = vpop.f32.mrb[0].mxu0
      %1187 = vdwg.mxu0
      %1188 = vrot.lane.b32.xlu0 %v579, 104
      %v1189 = vpop.permute.xlu0 %1188
      %1190 = vrot.lane.b32.xlu0 %v664, 104
      %v1191 = vpop.permute.xlu0 %1190
      %1192 = vrot.lane.b32.xlu0 %v669, 104
      %v1193 = vpop.permute.xlu0 %1192
      %v1194 = vsel %vm673, %v1189, 0
      %v1196 = vsel %vm673, %v1191, 0
      %v1198 = vsel %vm673, %v1193, 0
      %1200 = vmatprep.subr.mxu0 0.0
      %1201 = vmatpush1.xpose.msra.mxu0 %v1196
      %1202 = vmatprep.subr.mxu0 0.0
      %1203 = vmatpush1.xpose.msra.mxu0 %v1198
      %1204 = vmatprep.subr.mxu0 0.0
      %1205 = vmatpush1.xpose.msra.mxu0 0.0
      %1206 = vmatprep.subr.mxu0 0.0
      %1207 = vmatpush1.xpose.msra.mxu0 0.0
      %1208 = vmatprep.subr.mxu0 0.0
      %1209 = vmatpush1.xpose.msra.mxu0 0.0
      %1210 = vmatprep.subr.mxu0 0.0
      %1211 = vmatpush1.xpose.msra.mxu0 0.0
      %1212 = vmatprep.subr.mxu0 0.0
      %1213 = vmatpush1.xpose.msra.mxu0 0.0
      %1214 = vmatprep.subr.mxu0 0.0
      %1215 = vmatpush1.xpose.msra.mxu0 0.0
      %1216 = vmatprep.subr.mxu0 0.0
      %1217 = vmatpush1.xpose.msra.mxu0 0.0
      %1218 = vmatprep.subr.mxu0 0.0
      %1219 = vmatpush1.xpose.msra.mxu0 0.0
      %1220 = vmatprep.subr.mxu0 0.0
      %1221 = vmatpush1.xpose.msra.mxu0 0.0
      %1222 = vmatprep.subr.mxu0 0.0
      %1223 = vmatpush1.xpose.msra.mxu0 0.0
      %1224 = vmatprep.subr.mxu0 0.0
      %1225 = vmatpush1.xpose.msra.mxu0 0.0
      %1226 = vmatprep.subr.mxu0 0.0
      %1227 = vmatpush1.xpose.msra.mxu0 0.0
      %1228 = vmatprep.subr.mxu0 0.0
      %1229 = vmatpush1.xpose.msra.mxu0 0.0
      %1230 = vmatprep.subr.mxu0 0.0
      %1231 = vmatpush1.xpose.msra.mxu0 0.0
      %1232 = vmatprep.subr.mxu0 0.0
      %1233 = vmatpush1.xpose.msra.mxu0 0.0
      %1234 = vmatprep.subr.mxu0 0.0
      %1235 = vmatpush1.xpose.msra.mxu0 0.0
      %1236 = vmatprep.subr.mxu0 0.0
      %1237 = vmatpush1.xpose.msra.mxu0 0.0
      %1238 = vmatprep.subr.mxu0 0.0
      %1239 = vmatpush1.xpose.msra.mxu0 0.0
      %1240 = vmatprep.subr.mxu0 0.0
      %1241 = vmatpush1.xpose.msra.mxu0 0.0
      %1242 = vmatprep.subr.mxu0 0.0
      %1243 = vmatpush1.xpose.msra.mxu0 0.0
      %1244 = vmatprep.subr.mxu0 0.0
      %1245 = vmatpush1.xpose.msra.mxu0 0.0
      %1246 = vmatprep.subr.mxu0 0.0
      %1247 = vmatpush1.xpose.msra.mxu0 0.0
      %1248 = vmatprep.subr.mxu0 0.0
      %1249 = vmatpush1.xpose.msra.mxu0 0.0
      %1250 = vmatprep.subr.mxu0 0.0
      %1251 = vmatpush1.xpose.msra.mxu0 0.0
      %1252 = vmatprep.subr.mxu0 0.0
      %1253 = vmatpush1.xpose.msra.mxu0 0.0
      %1254 = vmatprep.subr.mxu0 0.0
      %1255 = vmatpush1.xpose.msra.mxu0 0.0
      %1256 = vmatprep.subr.mxu0 0.0
      %1257 = vmatpush1.xpose.msra.mxu0 0.0
      %1258 = vmatprep.subr.mxu0 0.0
      %1259 = vmatpush1.xpose.msra.mxu0 0.0
      %1260 = vmatprep.subr.mxu0 0.0
      %1261 = vmatpush1.xpose.msra.mxu0 0.0
      %1262 = vmatprep.subr.mxu0 0.0
      %1263 = vmatpush1.xpose.msra.mxu0 0.0
      %1264 = vmatprep.mubr.f32.mxu0 0.0
      %1265 = vmatmul.mubr.f32.gmra.mrb[0].mxu0 %v1194
      %v1266 = vpop.f32.mrb[0].mxu0
      %v1267 = vadd.f32 %v672, %v1266
      %v1268 = vpop.f32.mrb[0].mxu0
      %1269 = vdwg.mxu0
      %v1270 = vsel %vm753, %v1267, -inf
      %1271 = vmax.xlane.f32.xlu0 %v1270
      %v1272 = vpop.xlane.xlu0 %1271
      %v1273 = vsub.f32 %v1267, %v1272
      %v1274 = vmul.f32 %v1273, 1.442695
      %v1275 = vpow.pop %v1274
      %v1276 = vsel %vm753, %v1275, 0.0
      %1277 = vadd.xlane.f32.xlu0 %v1276
      %v1278 = vpop.xlane.xlu0 %1277
      %v1279 = vrcp.pop %v1278
      %v1280 = vmul.f32 %v1275, %v1279
      %1281 = vrot.lane.b32.xlu0 %v664, 72
      %v1282 = vpop.permute.xlu0 %1281
      %1283 = vrot.lane.b32.xlu0 %v669, 72
      %v1284 = vpop.permute.xlu0 %1283
      %v1288 = vsel %vm753, %v1280, 0
      %1290 = vmatprep.subr.mxu0 0.0
      %1291 = vmatpush1.msra.mxu0 %v1282
      %1292 = vmatprep.subr.mxu0 0.0
      %1293 = vmatpush1.msra.mxu0 %v1284
      %1294 = vmatprep.subr.mxu0 0.0
      %1295 = vmatpush1.msra.mxu0 0.0
      %1296 = vmatprep.subr.mxu0 0.0
      %1297 = vmatpush1.msra.mxu0 0.0
      %1298 = vmatprep.subr.mxu0 0.0
      %1299 = vmatpush1.msra.mxu0 0.0
      %1300 = vmatprep.subr.mxu0 0.0
      %1301 = vmatpush1.msra.mxu0 0.0
      %1302 = vmatprep.subr.mxu0 0.0
      %1303 = vmatpush1.msra.mxu0 0.0
      %1304 = vmatprep.subr.mxu0 0.0
      %1305 = vmatpush1.msra.mxu0 0.0
      %1306 = vmatprep.subr.mxu0 0.0
      %1307 = vmatpush1.msra.mxu0 0.0
      %1308 = vmatprep.subr.mxu0 0.0
      %1309 = vmatpush1.msra.mxu0 0.0
      %1310 = vmatprep.subr.mxu0 0.0
      %1311 = vmatpush1.msra.mxu0 0.0
      %1312 = vmatprep.subr.mxu0 0.0
      %1313 = vmatpush1.msra.mxu0 0.0
      %1314 = vmatprep.subr.mxu0 0.0
      %1315 = vmatpush1.msra.mxu0 0.0
      %1316 = vmatprep.subr.mxu0 0.0
      %1317 = vmatpush1.msra.mxu0 0.0
      %1318 = vmatprep.subr.mxu0 0.0
      %1319 = vmatpush1.msra.mxu0 0.0
      %1320 = vmatprep.subr.mxu0 0.0
      %1321 = vmatpush1.msra.mxu0 0.0
      %1322 = vmatprep.subr.mxu0 0.0
      %1323 = vmatpush1.msra.mxu0 0.0
      %1324 = vmatprep.subr.mxu0 0.0
      %1325 = vmatpush1.msra.mxu0 0.0
      %1326 = vmatprep.subr.mxu0 0.0
      %1327 = vmatpush1.msra.mxu0 0.0
      %1328 = vmatprep.subr.mxu0 0.0
      %1329 = vmatpush1.msra.mxu0 0.0
      %1330 = vmatprep.subr.mxu0 0.0
      %1331 = vmatpush1.msra.mxu0 0.0
      %1332 = vmatprep.subr.mxu0 0.0
      %1333 = vmatpush1.msra.mxu0 0.0
      %1334 = vmatprep.subr.mxu0 0.0
      %1335 = vmatpush1.msra.mxu0 0.0
      %1336 = vmatprep.subr.mxu0 0.0
      %1337 = vmatpush1.msra.mxu0 0.0
      %1338 = vmatprep.subr.mxu0 0.0
      %1339 = vmatpush1.msra.mxu0 0.0
      %1340 = vmatprep.subr.mxu0 0.0
      %1341 = vmatpush1.msra.mxu0 0.0
      %1342 = vmatprep.subr.mxu0 0.0
      %1343 = vmatpush1.msra.mxu0 0.0
      %1344 = vmatprep.subr.mxu0 0.0
      %1345 = vmatpush1.msra.mxu0 0.0
      %1346 = vmatprep.subr.mxu0 0.0
      %1347 = vmatpush1.msra.mxu0 0.0
      %1348 = vmatprep.subr.mxu0 0.0
      %1349 = vmatpush1.msra.mxu0 0.0
      %1350 = vmatprep.subr.mxu0 0.0
      %1351 = vmatpush1.msra.mxu0 0.0
      %1352 = vmatprep.subr.mxu0 0.0
      %1353 = vmatpush1.msra.mxu0 0.0
      %1354 = vmatprep.mubr.f32.mxu0 0.0
      %1355 = vmatmul.mubr.f32.gmra.mrb[0].mxu0 %v1288
      %v1356 = vpop.f32.mrb[0].mxu0
      %v1357 = vadd.f32 0.0, %v1356
      %v1358 = vpop.f32.mrb[0].mxu0
      %1359 = vdwg.mxu0
      %1361 = vrot.lane.b32.xlu0 %v1013, 8
      %v1362 = vpop.permute.xlu0 %1361
      %1365 = vrot.lane.b32.xlu0 %v1185, 16
      %v1366 = vpop.permute.xlu0 %1365
      %1369 = vrot.lane.b32.xlu0 %v1357, 24
      %v1370 = vpop.permute.xlu0 %1369
      %v1372 = vsel %vm673, %v841, %v1362
      %v1373 = vsel %vm753, %v1372, %v1366
      %vm1374 = vcmask 195584
      %v1375 = vsel %vm1374, %v1373, %v1370
      %v1376 = vld [vmem:[%s9] sm:$0xff]
      %v1377 = vld [vmem:[%s9 + $0x8] sm:$0xff]
      %v1378 = vld [vmem:[%s9 + $0x10] sm:$0xff]
      %v1379 = vld [vmem:[%s9 + $0x18] sm:$0xff]
      %v1380 = vld [vmem:[%s10] sm:$0x1]
      %v1382 = vlaneseq
      %v1383 = vshrl.u32 %v1382, 7
      %v1384 = vsub.s32 0, %v1383
      %v1385 = vrot.slane %v1380, %v1384
      %v1388 = vsel %vm464, %v1375, 0
      %1390 = vmatprep.subr.mxu0 0.0
      %1391 = vmatpush1.msra.mxu0 %v1376
      %1392 = vmatprep.subr.mxu0 0.0
      %1393 = vmatpush1.msra.mxu0 %v1377
      %1394 = vmatprep.subr.mxu0 0.0
      %1395 = vmatpush1.msra.mxu0 %v1378
      %1396 = vmatprep.subr.mxu0 0.0
      %1397 = vmatpush1.msra.mxu0 %v1379
      %1398 = vmatprep.subr.mxu0 0.0
      %1399 = vmatpush1.msra.mxu0 0.0
      %1400 = vmatprep.subr.mxu0 0.0
      %1401 = vmatpush1.msra.mxu0 0.0
      %1402 = vmatprep.subr.mxu0 0.0
      %1403 = vmatpush1.msra.mxu0 0.0
      %1404 = vmatprep.subr.mxu0 0.0
      %1405 = vmatpush1.msra.mxu0 0.0
      %1406 = vmatprep.subr.mxu0 0.0
      %1407 = vmatpush1.msra.mxu0 0.0
      %1408 = vmatprep.subr.mxu0 0.0
      %1409 = vmatpush1.msra.mxu0 0.0
      %1410 = vmatprep.subr.mxu0 0.0
      %1411 = vmatpush1.msra.mxu0 0.0
      %1412 = vmatprep.subr.mxu0 0.0
      %1413 = vmatpush1.msra.mxu0 0.0
      %1414 = vmatprep.subr.mxu0 0.0
      %1415 = vmatpush1.msra.mxu0 0.0
      %1416 = vmatprep.subr.mxu0 0.0
      %1417 = vmatpush1.msra.mxu0 0.0
      %1418 = vmatprep.subr.mxu0 0.0
      %1419 = vmatpush1.msra.mxu0 0.0
      %1420 = vmatprep.subr.mxu0 0.0
      %1421 = vmatpush1.msra.mxu0 0.0
      %1422 = vmatprep.subr.mxu0 0.0
      %1423 = vmatpush1.msra.mxu0 0.0
      %1424 = vmatprep.subr.mxu0 0.0
      %1425 = vmatpush1.msra.mxu0 0.0
      %1426 = vmatprep.subr.mxu0 0.0
      %1427 = vmatpush1.msra.mxu0 0.0
      %1428 = vmatprep.subr.mxu0 0.0
      %1429 = vmatpush1.msra.mxu0 0.0
      %1430 = vmatprep.subr.mxu0 0.0
      %1431 = vmatpush1.msra.mxu0 0.0
      %1432 = vmatprep.subr.mxu0 0.0
      %1433 = vmatpush1.msra.mxu0 0.0
      %1434 = vmatprep.subr.mxu0 0.0
      %1435 = vmatpush1.msra.mxu0 0.0
      %1436 = vmatprep.subr.mxu0 0.0
      %1437 = vmatpush1.msra.mxu0 0.0
      %1438 = vmatprep.subr.mxu0 0.0
      %1439 = vmatpush1.msra.mxu0 0.0
      %1440 = vmatprep.subr.mxu0 0.0
      %1441 = vmatpush1.msra.mxu0 0.0
      %1442 = vmatprep.subr.mxu0 0.0
      %1443 = vmatpush1.msra.mxu0 0.0
      %1444 = vmatprep.subr.mxu0 0.0
      %1445 = vmatpush1.msra.mxu0 0.0
      %1446 = vmatprep.subr.mxu0 0.0
      %1447 = vmatpush1.msra.mxu0 0.0
      %1448 = vmatprep.subr.mxu0 0.0
      %1449 = vmatpush1.msra.mxu0 0.0
      %1450 = vmatprep.subr.mxu0 0.0
      %1451 = vmatpush1.msra.mxu0 0.0
      %1452 = vmatprep.subr.mxu0 0.0
      %1453 = vmatpush1.msra.mxu0 0.0
      %1454 = vmatprep.mubr.f32.mxu0 0.0
      %1455 = vmatmul.mubr.f32.gmra.mrb[0].mxu0 %v1388
      %v1456 = vpop.f32.mrb[0].mxu0
      %v1457 = vadd.f32 %v1385, %v1456
      %v1458 = vpop.f32.mrb[0].mxu0
      %1459 = vdwg.mxu0
      %v1460 = vadd.f32 %v461, %v1457
      %1461 = vst.msk [vmem:[%s460] sm:$0xff] %vm464, %v1460
      %p1462 = scmp.lt.s32.totalorder %s26, 1
      %s1463 = scalar_select %p1462, %s26, 1
      %p1464 = scmp.lt.s32.totalorder %s27, 0
      %s1465 = scalar_select %p1464, %s27, 0
      %s1466 = sadd.s32 %s1465, %s1463
      %s1467 = smul.addr %s1466, 8
      %s1468 = scalar_lea.vmem %s11, %s1467
      // Predicated region
      $region65: #{decoder_layer.4} parent=63 // pred_check
        %p1469 = pneg %p304
      $region66: #{decoder_layer.4} parent=63 // pred_check_branch
        %1471 = sbr.rel (%p1469) target = $region68
      $region67: #{decoder_layer.4} parent=63 // pred_region
        _
      $region68: #{decoder_layer.4} parent=63 // pred_fallthru
        _
    $region64: #{decoder_layer.4} parent=5 // pred_fallthru
      _
    %p1472 = scmp.le.s32.totalorder 2, %s17
    // Predicated region
    $region69: #{decoder_layer.4} parent=5 // pred_check
      %p1473 = pneg %p1472
    $region70: #{decoder_layer.4} parent=5 // pred_check_branch
      %1475 = sbr.rel (%p1473) target = $region72
    $region71: #{decoder_layer.4} parent=5 // pred_region
      %s1476 = ssub.s32 %s17, 2
      // Predicated region
      $region73: #{decoder_layer.4} parent=71 // pred_check
        %p1477 = pneg %p310
      $region74: #{decoder_layer.4} parent=71 // pred_check_branch
        %1479 = sbr.rel (%p1477) target = $region76
      $region75: #{decoder_layer.4} parent=71 // pred_region
        %p1480 = scmp.lt.s32.totalorder %s28, 1
        %s1481 = scalar_select %p1480, %s28, 1
        %p1482 = scmp.lt.s32.totalorder %s29, 0
        %s1483 = scalar_select %p1482, %s29, 0
        %s1484 = sadd.s32 %s1483, %s1481
        %s1485 = smul.addr %s1484, 8
        %s1486 = scalar_lea.vmem %s11, %s1485
      $region76: #{decoder_layer.4} parent=71 // pred_fallthru
        _
    $region72: #{decoder_layer.4} parent=5 // pred_fallthru
      _
  $region6: #{decoder_layer.4} parent=0 // loop_footer
    %s21 = sadd.s32 1, %s17
  $region7: #{decoder_layer.4} parent=0 // loop_footer_branch
    %16 = sbr.rel target = $region3
  $region8: #{decoder_layer.4} parent=0 // loop_exit
    _

</llo_original>
